<compile_context>
chip_gen: v6e
topology: v6e:2x2x1
jax: 0.10.0
libtpu: 0.0.40
codegen_flags: <defaults>
</compile_context>

<pallas_src>
import jax
import jax.numpy as jnp
from jax.experimental import pallas as pl
from jax.experimental.pallas import tpu as pltpu

IN_FEATURES = 64 * 6 * 6   # 2304
HIDDEN = 256
OUT_FEATURES = 1           # per complex part; fused output has 2 lanes (re, im)


def _round_up(x, m):
    return ((x + m - 1) // m) * m


def _complex_mlp_kernel(xr_ref, xi_ref, w1_ref, b1_re_ref, b1_im_ref,
                        w2_top_ref, w2_bot_ref, b2_ref, y_ref):
    # xr_ref / xi_ref: (TM, 2304) f32 -- cast to bf16 in-kernel (VPU cast,
    # hidden next to the MXU dots).
    xr = xr_ref[...].astype(jnp.bfloat16)
    xi = xi_ref[...].astype(jnp.bfloat16)
    w1 = w1_ref[...]                   # (2304, 512) bf16 = [w1r | w1i], resident

    # TODO(synk): ComplexDropout(0.25) is identity in eval mode; training-mode
    # shared random masking of real+imag parts is not implemented here.

    # ---- ComplexLinear(2304 -> 256): two fused MXU dots ------------------
    a = jnp.dot(xr, w1, preferred_element_type=jnp.float32)   # [xr@w1r | xr@w1i]
    c = jnp.dot(xi, w1, preferred_element_type=jnp.float32)   # [xi@w1r | xi@w1i]

    # b1_re_ref holds (b1r - b1i); b1_im_ref holds (b1r + b1i).
    hr = a[:, :HIDDEN] - c[:, HIDDEN:] + b1_re_ref[...]
    hi = c[:, :HIDDEN] + a[:, HIDDEN:] + b1_im_ref[...]

    # ---- complex_tanh (elementwise on each part, f32 on the EUP) ---------
    hr = jnp.tanh(hr)
    hi = jnp.tanh(hi)

    # ---- ComplexLinear(256 -> 1): two tiny dots, no concat ---------------
    y = (jnp.dot(hr, w2_top_ref[...], preferred_element_type=jnp.float32)
         + jnp.dot(hi, w2_bot_ref[...], preferred_element_type=jnp.float32)
         + b2_ref[...])
    y_ref[...] = y                                             # (TM, 2): [yr | yi]


def prepare_params(params):
    """Fold/concatenate raw (w1r,w1i,b1r,b1i,w2r,w2i,b2r,b2i) for the kernel."""
    w1r, w1i, b1r, b1i, w2r, w2i, b2r, b2i = params
    w1cat = jnp.concatenate([w1r, w1i], axis=1).astype(jnp.bfloat16)    # (2304, 512)
    b1_re = (b1r - b1i).astype(jnp.float32)                             # (1, 256)
    b1_im = (b1r + b1i).astype(jnp.float32)                             # (1, 256)
    w2_top = jnp.concatenate([w2r, w2i], axis=1).astype(jnp.float32)    # (256, 2)  (hr rows)
    w2_bot = jnp.concatenate([-w2i, w2r], axis=1).astype(jnp.float32)   # (256, 2)  (hi rows)
    b2cat = jnp.concatenate([b2r - b2i, b2r + b2i], axis=1).astype(jnp.float32)  # (1, 2)
    return w1cat, b1_re, b1_im, w2_top, w2_bot, b2cat


@jax.jit
def complex_linear_model(xr, xi, prepped):
    """xr, xi: (B, 64, 6, 6) real / imaginary parts.  Returns (yr, yi): (B, 1)."""
    B = xr.shape[0]
    xr2 = xr.reshape(B, IN_FEATURES)      # contiguous reshape only, stays f32
    xi2 = xi.reshape(B, IN_FEATURES)

    # Pad only up to the 8-sublane multiple (and only when needed); ragged
    # last blocks handle the rest (OOB rows sliced off below).
    B8 = _round_up(B, 8)
    if B8 != B:
        xr2 = jnp.pad(xr2, ((0, B8 - B), (0, 0)))
        xi2 = jnp.pad(xi2, ((0, B8 - B), (0, 0)))

    # Batch tile: aim for >= 2 grid steps when the batch allows it (so the
    # "parallel" batch axis can shard across v7x's two TensorCores), cap at
    # 512 so f32 ingestion + double-buffering fits 64 MiB VMEM (v7x).
    TM = min(512, max(8, _round_up(pl.cdiv(B8, 2), 8)))
    grid = (pl.cdiv(B8, TM),)

    w1cat, b1_re, b1_im, w2_top, w2_bot, b2cat = prepped

    cost = pl.CostEstimate(
        flops=4 * B8 * IN_FEATURES * HIDDEN + 8 * B8 * HIDDEN,
        transcendentals=2 * B8 * HIDDEN,
        bytes_accessed=(2 * B8 * IN_FEATURES * 4          # f32 activations in
                        + IN_FEATURES * 2 * HIDDEN * 2    # bf16 layer-1 weights
                        + 2 * (HIDDEN * 2 * 4)            # layer-2 weights
                        + 2 * HIDDEN * 4 + 2 * 4          # biases
                        + B8 * 2 * 4),                    # output
    )

    y = pl.pallas_call(
        _complex_mlp_kernel,
        out_shape=jax.ShapeDtypeStruct((B8, 2), jnp.float32),
        grid=grid,
        in_specs=[
            pl.BlockSpec((TM, IN_FEATURES), lambda i: (i, 0)),          # xr (f32)
            pl.BlockSpec((TM, IN_FEATURES), lambda i: (i, 0)),          # xi (f32)
            pl.BlockSpec((IN_FEATURES, 2 * HIDDEN), lambda i: (0, 0)),  # w1cat (resident)
            pl.BlockSpec((1, HIDDEN), lambda i: (0, 0)),                # b1r - b1i
            pl.BlockSpec((1, HIDDEN), lambda i: (0, 0)),                # b1r + b1i
            pl.BlockSpec((HIDDEN, 2), lambda i: (0, 0)),                # w2_top
            pl.BlockSpec((HIDDEN, 2), lambda i: (0, 0)),                # w2_bot
            pl.BlockSpec((1, 2), lambda i: (0, 0)),                     # b2cat
        ],
        out_specs=pl.BlockSpec((TM, 2), lambda i: (i, 0)),
        compiler_params=pltpu.CompilerParams(
            dimension_semantics=("parallel",),
            vmem_limit_bytes=48 * 1024 * 1024,
        ),
        cost_estimate=cost,
    )(xr2, xi2, w1cat, b1_re, b1_im, w2_top, w2_bot, b2cat)

    yr = y[:B, 0:1]
    yi = y[:B, 1:2]
    return yr, yi


def init_params(key):
    """Deterministic parameter init (PyTorch-Linear-like uniform bounds), f32."""
    ks = jax.random.split(key, 8)

    def lin(kw, kb, fan_in, fan_out):
        bound = 1.0 / jnp.sqrt(jnp.float32(fan_in))
        w = jax.random.uniform(kw, (fan_in, fan_out), jnp.float32, -bound, bound)
        b = jax.random.uniform(kb, (1, fan_out), jnp.float32, -bound, bound)
        return w, b

    w1r, b1r = lin(ks[0], ks[1], IN_FEATURES, HIDDEN)
    w1i, b1i = lin(ks[2], ks[3], IN_FEATURES, HIDDEN)
    w2r, b2r = lin(ks[4], ks[5], HIDDEN, OUT_FEATURES)
    w2i, b2i = lin(ks[6], ks[7], HIDDEN, OUT_FEATURES)
    return (w1r, w1i, b1r, b1i, w2r, w2i, b2r, b2i)


def reference_f32(xr, xi, params):
    """Pure-JAX f32 reference of the original module semantics."""
    w1r, w1i, b1r, b1i, w2r, w2i, b2r, b2i = params
    B = xr.shape[0]
    xr2 = xr.reshape(B, IN_FEATURES)
    xi2 = xi.reshape(B, IN_FEATURES)
    hr = xr2 @ w1r - xi2 @ w1i + (b1r - b1i)
    hi = xi2 @ w1r + xr2 @ w1i + (b1r + b1i)
    hr, hi = jnp.tanh(hr), jnp.tanh(hi)
    yr = hr @ w2r - hi @ w2i + (b2r - b2i)
    yi = hi @ w2r + hr @ w2i + (b2r + b2i)
    return yr, yi


def reference_prepped(xr, xi, prepped):
    """Reference that mirrors the kernel's dtype handling (bf16 layer 1)."""
    w1cat, b1_re, b1_im, w2_top, w2_bot, b2cat = prepped
    B = xr.shape[0]
    xr2 = xr.reshape(B, IN_FEATURES).astype(jnp.bfloat16)
    xi2 = xi.reshape(B, IN_FEATURES).astype(jnp.bfloat16)
    a = jnp.dot(xr2, w1cat, preferred_element_type=jnp.float32)
    c = jnp.dot(xi2, w1cat, preferred_element_type=jnp.float32)
    hr = jnp.tanh(a[:, :HIDDEN] - c[:, HIDDEN:] + b1_re)
    hi = jnp.tanh(c[:, :HIDDEN] + a[:, HIDDEN:] + b1_im)
    y = (jnp.dot(hr, w2_top, preferred_element_type=jnp.float32)
         + jnp.dot(hi, w2_bot, preferred_element_type=jnp.float32) + b2cat)
    return y[:, 0:1], y[:, 1:2]


if __name__ == "__main__":
    key = jax.random.PRNGKey(0)
    k_xr, k_xi, k_p = jax.random.split(key, 3)

    B = 2
    xr = jax.random.normal(k_xr, (B, 64, 6, 6), jnp.float32)
    xi = jax.random.normal(k_xi, (B, 64, 6, 6), jnp.float32)
    params = init_params(k_p)
    prepped = prepare_params(params)

    yr, yi = complex_linear_model(xr, xi, prepped)
    yr = jax.block_until_ready(yr)
    yi = jax.block_until_ready(yi)

    # Tight check vs. a reference that uses the same bf16 weights/inputs.
    yr_p, yi_p = reference_prepped(xr, xi, prepped)
    assert jnp.allclose(yr, yr_p, atol=1e-2, rtol=1e-2)
    assert jnp.allclose(yi, yi_p, atol=1e-2, rtol=1e-2)

    # Semantic check vs. pure-f32 original-parameter reference (bf16 tolerance).
    yr_f, yi_f = reference_f32(xr, xi, params)
    assert jnp.allclose(yr, yr_f, atol=3e-2, rtol=3e-2)
    assert jnp.allclose(yi, yi_f, atol=3e-2, rtol=3e-2)

    print("KERNEL_OK")
</pallas_src>

<mosaic_0001>
module attributes {stable_mosaic.version = 11 : i64} {
  func.func @_complex_mlp_kernel(%arg0: i32, %arg1: memref<8x2304xf32, #tpu.memory_space<vmem>>, %arg2: memref<8x2304xf32, #tpu.memory_space<vmem>>, %arg3: memref<2304x512xbf16, #tpu.memory_space<vmem>>, %arg4: memref<1x256xf32, #tpu.memory_space<vmem>>, %arg5: memref<1x256xf32, #tpu.memory_space<vmem>>, %arg6: memref<256x2xf32, #tpu.memory_space<vmem>>, %arg7: memref<256x2xf32, #tpu.memory_space<vmem>>, %arg8: memref<1x2xf32, #tpu.memory_space<vmem>>, %arg9: memref<8x2xf32, #tpu.memory_space<vmem>>) attributes {dimension_semantics = [#tpu.dimension_semantics<parallel>], iteration_bounds = array<i64: 1>, scalar_prefetch = 0 : i64, scratch_operands = 0 : i64, tpu.core_type = #tpu.core_type<tc>, window_params = [{transform_indices = @transform_0, window_bounds = array<i64: 8, 2304>}, {transform_indices = @transform_1, window_bounds = array<i64: 8, 2304>}, {pipeline_mode = #tpu.pipeline_mode<synchronous>, transform_indices = @transform_2, window_bounds = array<i64: 2304, 512>}, {pipeline_mode = #tpu.pipeline_mode<synchronous>, transform_indices = @transform_3, window_bounds = array<i64: 1, 256>}, {pipeline_mode = #tpu.pipeline_mode<synchronous>, transform_indices = @transform_4, window_bounds = array<i64: 1, 256>}, {pipeline_mode = #tpu.pipeline_mode<synchronous>, transform_indices = @transform_5, window_bounds = array<i64: 256, 2>}, {pipeline_mode = #tpu.pipeline_mode<synchronous>, transform_indices = @transform_6, window_bounds = array<i64: 256, 2>}, {pipeline_mode = #tpu.pipeline_mode<synchronous>, transform_indices = @transform_7, window_bounds = array<i64: 1, 2>}, {transform_indices = @transform_8, window_bounds = array<i64: 8, 2>}]} {
    %c0 = arith.constant 0 : index
    %c0_0 = arith.constant 0 : index
    %0 = vector.load %arg1[%c0, %c0_0] : memref<8x2304xf32, #tpu.memory_space<vmem>>, vector<8x2304xf32>
    %1 = arith.truncf %0 : vector<8x2304xf32> to vector<8x2304xbf16>
    %c0_1 = arith.constant 0 : index
    %c0_2 = arith.constant 0 : index
    %2 = vector.load %arg2[%c0_1, %c0_2] : memref<8x2304xf32, #tpu.memory_space<vmem>>, vector<8x2304xf32>
    %3 = arith.truncf %2 : vector<8x2304xf32> to vector<8x2304xbf16>
    %c0_3 = arith.constant 0 : index
    %c0_4 = arith.constant 0 : index
    %4 = vector.load %arg3[%c0_3, %c0_4] : memref<2304x512xbf16, #tpu.memory_space<vmem>>, vector<2304x512xbf16>
    %cst = arith.constant dense<0.000000e+00> : vector<8x512xf32>
    %5 = tpu.matmul %1, %4, %cst {dimension_numbers = #tpu.dot_dimension_numbers<[1], [0], [0], [1], [0, 0, 1, 1], [], []>} : vector<8x2304xbf16>, vector<2304x512xbf16>, vector<8x512xf32> -> vector<8x512xf32>
    %cst_5 = arith.constant dense<0.000000e+00> : vector<8x512xf32>
    %6 = tpu.matmul %3, %4, %cst_5 {dimension_numbers = #tpu.dot_dimension_numbers<[1], [0], [0], [1], [0, 0, 1, 1], [], []>} : vector<8x2304xbf16>, vector<2304x512xbf16>, vector<8x512xf32> -> vector<8x512xf32>
    %7 = vector.extract_strided_slice %5 {offsets = [0, 0], sizes = [8, 256], strides = [1, 1]} : vector<8x512xf32> to vector<8x256xf32>
    %8 = vector.extract_strided_slice %6 {offsets = [0, 256], sizes = [8, 256], strides = [1, 1]} : vector<8x512xf32> to vector<8x256xf32>
    %9 = arith.subf %7, %8 : vector<8x256xf32>
    %c0_6 = arith.constant 0 : index
    %c0_7 = arith.constant 0 : index
    %10 = vector.load %arg4[%c0_6, %c0_7] : memref<1x256xf32, #tpu.memory_space<vmem>>, vector<1x256xf32>
    %11 = vector.broadcast %10 : vector<1x256xf32> to vector<8x256xf32>
    %12 = arith.addf %9, %11 : vector<8x256xf32>
    %13 = vector.extract_strided_slice %6 {offsets = [0, 0], sizes = [8, 256], strides = [1, 1]} : vector<8x512xf32> to vector<8x256xf32>
    %14 = vector.extract_strided_slice %5 {offsets = [0, 256], sizes = [8, 256], strides = [1, 1]} : vector<8x512xf32> to vector<8x256xf32>
    %15 = arith.addf %13, %14 : vector<8x256xf32>
    %c0_8 = arith.constant 0 : index
    %c0_9 = arith.constant 0 : index
    %16 = vector.load %arg5[%c0_8, %c0_9] : memref<1x256xf32, #tpu.memory_space<vmem>>, vector<1x256xf32>
    %17 = vector.broadcast %16 : vector<1x256xf32> to vector<8x256xf32>
    %18 = arith.addf %15, %17 : vector<8x256xf32>
    %19 = math.tanh %12 : vector<8x256xf32>
    %20 = math.tanh %18 : vector<8x256xf32>
    %c0_10 = arith.constant 0 : index
    %c0_11 = arith.constant 0 : index
    %21 = vector.load %arg6[%c0_10, %c0_11] : memref<256x2xf32, #tpu.memory_space<vmem>>, vector<256x2xf32>
    %cst_12 = arith.constant dense<0.000000e+00> : vector<8x2xf32>
    %22 = tpu.matmul %19, %21, %cst_12 {dimension_numbers = #tpu.dot_dimension_numbers<[1], [0], [0], [1], [0, 0, 1, 1], [], []>} : vector<8x256xf32>, vector<256x2xf32>, vector<8x2xf32> -> vector<8x2xf32>
    %c0_13 = arith.constant 0 : index
    %c0_14 = arith.constant 0 : index
    %23 = vector.load %arg7[%c0_13, %c0_14] : memref<256x2xf32, #tpu.memory_space<vmem>>, vector<256x2xf32>
    %cst_15 = arith.constant dense<0.000000e+00> : vector<8x2xf32>
    %24 = tpu.matmul %20, %23, %cst_15 {dimension_numbers = #tpu.dot_dimension_numbers<[1], [0], [0], [1], [0, 0, 1, 1], [], []>} : vector<8x256xf32>, vector<256x2xf32>, vector<8x2xf32> -> vector<8x2xf32>
    %25 = arith.addf %22, %24 : vector<8x2xf32>
    %c0_16 = arith.constant 0 : index
    %c0_17 = arith.constant 0 : index
    %26 = vector.load %arg8[%c0_16, %c0_17] : memref<1x2xf32, #tpu.memory_space<vmem>>, vector<1x2xf32>
    %27 = vector.broadcast %26 : vector<1x2xf32> to vector<8x2xf32>
    %28 = arith.addf %25, %27 : vector<8x2xf32>
    %c0_18 = arith.constant 0 : index
    %c0_19 = arith.constant 0 : index
    %29 = vector.load %arg9[%c0_18, %c0_19] : memref<8x2xf32, #tpu.memory_space<vmem>>, vector<8x2xf32>
    tpu.vector_store %arg9[%c0_18, %c0_19], %28 {strides = array<i32>} : memref<8x2xf32, #tpu.memory_space<vmem>>, vector<8x2xf32>,
    return
  }
  func.func @transform_0(%arg0: i32) -> (i32, i32) {
    %c0_i32 = arith.constant 0 : i32
    %c0_i32_0 = arith.constant 0 : i32
    return %arg0, %c0_i32 : i32, i32
  }
  func.func @transform_1(%arg0: i32) -> (i32, i32) {
    %c0_i32 = arith.constant 0 : i32
    %c0_i32_0 = arith.constant 0 : i32
    return %arg0, %c0_i32 : i32, i32
  }
  func.func @transform_2(%arg0: i32) -> (i32, i32) {
    %c0_i32 = arith.constant 0 : i32
    %c0_i32_0 = arith.constant 0 : i32
    %c0_i32_1 = arith.constant 0 : i32
    return %c0_i32, %c0_i32_0 : i32, i32
  }
  func.func @transform_3(%arg0: i32) -> (i32, i32) {
    %c0_i32 = arith.constant 0 : i32
    %c0_i32_0 = arith.constant 0 : i32
    %c0_i32_1 = arith.constant 0 : i32
    return %c0_i32, %c0_i32_0 : i32, i32
  }
  func.func @transform_4(%arg0: i32) -> (i32, i32) {
    %c0_i32 = arith.constant 0 : i32
    %c0_i32_0 = arith.constant 0 : i32
    %c0_i32_1 = arith.constant 0 : i32
    return %c0_i32, %c0_i32_0 : i32, i32
  }
  func.func @transform_5(%arg0: i32) -> (i32, i32) {
    %c0_i32 = arith.constant 0 : i32
    %c0_i32_0 = arith.constant 0 : i32
    %c0_i32_1 = arith.constant 0 : i32
    return %c0_i32, %c0_i32_0 : i32, i32
  }
  func.func @transform_6(%arg0: i32) -> (i32, i32) {
    %c0_i32 = arith.constant 0 : i32
    %c0_i32_0 = arith.constant 0 : i32
    %c0_i32_1 = arith.constant 0 : i32
    return %c0_i32, %c0_i32_0 : i32, i32
  }
  func.func @transform_7(%arg0: i32) -> (i32, i32) {
    %c0_i32 = arith.constant 0 : i32
    %c0_i32_0 = arith.constant 0 : i32
    %c0_i32_1 = arith.constant 0 : i32
    return %c0_i32, %c0_i32_0 : i32, i32
  }
  func.func @transform_8(%arg0: i32) -> (i32, i32) {
    %c0_i32 = arith.constant 0 : i32
    %c0_i32_0 = arith.constant 0 : i32
    return %arg0, %c0_i32 : i32, i32
  }
}

</mosaic_0001>

<llo_original>
// kernel: complex_linear_model.1
$region0: #{complex_linear_model.1}
  #allocation0 [shape = 'u32[]', space=smem, size = 0x4, offset = 0x4, fixed_abs, tag = 'smem constant byte address 0x4 - core index']
  #allocation1 [shape = 'u32[144,128]{1,0:T(1,128)}', space=vmem, size = 0x12000, scoped, tag = 'internal scratch']
  %s0 = inlined_call_operand.vmem [shape: f32[8,2304], index: 0, kind: input, shape index: {}]
  %s1 = inlined_call_operand.vmem [shape: f32[8,2304], index: 1, kind: input, shape index: {}]
  %s2 = inlined_call_operand.vmem [shape: bf16[2304,512], index: 2, kind: input, shape index: {}]
  %s3 = inlined_call_operand.vmem [shape: f32[1,256], index: 3, kind: input, shape index: {}]
  %s4 = inlined_call_operand.vmem [shape: f32[1,256], index: 4, kind: input, shape index: {}]
  %s5 = inlined_call_operand.vmem [shape: f32[256,2], index: 5, kind: input, shape index: {}]
  %s6 = inlined_call_operand.vmem [shape: f32[256,2], index: 6, kind: input, shape index: {}]
  %s7 = inlined_call_operand.vmem [shape: f32[1,2], index: 7, kind: input, shape index: {}]
  %s8 = inlined_call_operand.vmem [shape: f32[8,2], index: 8, kind: output, shape index: {}]
  %s9 = sld [smem:[#allocation0]]
  $region42: #{complex_linear_model.1} parent=0
    _
  %s11 = ssub.s32 1, %s9
  %s12 = scalar_select 0, %s11, %s9
  // Predicated region
  $region2: #{complex_linear_model.1} parent=0 // pred_check
    _
  $region3: #{complex_linear_model.1} parent=0 // pred_check_branch
    %14 = sbr.rel (0) target = $region5
  $region4: #{complex_linear_model.1} parent=0 // pred_region
    _
  $region5: #{complex_linear_model.1} parent=0 // pred_fallthru
    _
  // Predicated region
  $region6: #{complex_linear_model.1} parent=0 // pred_check
    _
  $region7: #{complex_linear_model.1} parent=0 // pred_check_branch
    %16 = sbr.rel (0) target = $region9
  $region8: #{complex_linear_model.1} parent=0 // pred_region
    _
  $region9: #{complex_linear_model.1} parent=0 // pred_fallthru
    _
  // Predicated region
  $region10: #{complex_linear_model.1} parent=0 // pred_check
    _
  $region11: #{complex_linear_model.1} parent=0 // pred_check_branch
    %18 = sbr.rel (0) target = $region13
  $region12: #{complex_linear_model.1} parent=0 // pred_region
    _
  $region13: #{complex_linear_model.1} parent=0 // pred_fallthru
    _
  // Predicated region
  $region14: #{complex_linear_model.1} parent=0 // pred_check
    _
  $region15: #{complex_linear_model.1} parent=0 // pred_check_branch
    %20 = sbr.rel (0) target = $region17
  $region16: #{complex_linear_model.1} parent=0 // pred_region
    _
  $region17: #{complex_linear_model.1} parent=0 // pred_fallthru
    _
  // Predicated region
  $region18: #{complex_linear_model.1} parent=0 // pred_check
    _
  $region19: #{complex_linear_model.1} parent=0 // pred_check_branch
    %22 = sbr.rel (0) target = $region21
  $region20: #{complex_linear_model.1} parent=0 // pred_region
    _
  $region21: #{complex_linear_model.1} parent=0 // pred_fallthru
    _
  // Predicated region
  $region22: #{complex_linear_model.1} parent=0 // pred_check
    _
  $region23: #{complex_linear_model.1} parent=0 // pred_check_branch
    %24 = sbr.rel (0) target = $region25
  $region24: #{complex_linear_model.1} parent=0 // pred_region
    _
  $region25: #{complex_linear_model.1} parent=0 // pred_fallthru
    _
  // Predicated region
  $region26: #{complex_linear_model.1} parent=0 // pred_check
    _
  $region27: #{complex_linear_model.1} parent=0 // pred_check_branch
    %26 = sbr.rel (0) target = $region29
  $region28: #{complex_linear_model.1} parent=0 // pred_region
    _
  $region29: #{complex_linear_model.1} parent=0 // pred_fallthru
    _
  // Predicated region
  $region30: #{complex_linear_model.1} parent=0 // pred_check
    _
  $region31: #{complex_linear_model.1} parent=0 // pred_check_branch
    %28 = sbr.rel (0) target = $region33
  $region32: #{complex_linear_model.1} parent=0 // pred_region
    _
  $region33: #{complex_linear_model.1} parent=0 // pred_fallthru
    _
  %v29 = vld [vmem:[%s0] sm:$0xff]
  %v30 = vld [vmem:[%s0 + $0x8] sm:$0xff]
  %v31 = vld [vmem:[%s0 + $0x10] sm:$0xff]
  %v32 = vld [vmem:[%s0 + $0x18] sm:$0xff]
  %v33 = vld [vmem:[%s0 + $0x20] sm:$0xff]
  %v34 = vld [vmem:[%s0 + $0x28] sm:$0xff]
  %v35 = vld [vmem:[%s0 + $0x30] sm:$0xff]
  %v36 = vld [vmem:[%s0 + $0x38] sm:$0xff]
  %v37 = vld [vmem:[%s0 + $0x40] sm:$0xff]
  %v38 = vld [vmem:[%s0 + $0x48] sm:$0xff]
  %v39 = vld [vmem:[%s0 + $0x50] sm:$0xff]
  %v40 = vld [vmem:[%s0 + $0x58] sm:$0xff]
  %v41 = vld [vmem:[%s0 + $0x60] sm:$0xff]
  %v42 = vld [vmem:[%s0 + $0x68] sm:$0xff]
  %v43 = vld [vmem:[%s0 + $0x70] sm:$0xff]
  %v44 = vld [vmem:[%s0 + $0x78] sm:$0xff]
  %v45 = vld [vmem:[%s0 + $0x80] sm:$0xff]
  %v46 = vld [vmem:[%s0 + $0x88] sm:$0xff]
  %v47 = vpack.c.bf16 %v29, %v29
  %v48 = vpack.c.bf16 %v30, %v30
  %v49 = vpack.c.bf16 %v31, %v31
  %v50 = vpack.c.bf16 %v32, %v32
  %v51 = vpack.c.bf16 %v33, %v33
  %v52 = vpack.c.bf16 %v34, %v34
  %v53 = vpack.c.bf16 %v35, %v35
  %v54 = vpack.c.bf16 %v36, %v36
  %v55 = vpack.c.bf16 %v37, %v37
  %v56 = vpack.c.bf16 %v38, %v38
  %v57 = vpack.c.bf16 %v39, %v39
  %v58 = vpack.c.bf16 %v40, %v40
  %v59 = vpack.c.bf16 %v41, %v41
  %v60 = vpack.c.bf16 %v42, %v42
  %v61 = vpack.c.bf16 %v43, %v43
  %v62 = vpack.c.bf16 %v44, %v44
  %v63 = vpack.c.bf16 %v45, %v45
  %v64 = vpack.c.bf16 %v46, %v46
  %v65 = vld [vmem:[%s1] sm:$0xff]
  %v66 = vld [vmem:[%s1 + $0x8] sm:$0xff]
  %v67 = vld [vmem:[%s1 + $0x10] sm:$0xff]
  %v68 = vld [vmem:[%s1 + $0x18] sm:$0xff]
  %v69 = vld [vmem:[%s1 + $0x20] sm:$0xff]
  %v70 = vld [vmem:[%s1 + $0x28] sm:$0xff]
  %v71 = vld [vmem:[%s1 + $0x30] sm:$0xff]
  %v72 = vld [vmem:[%s1 + $0x38] sm:$0xff]
  %v73 = vld [vmem:[%s1 + $0x40] sm:$0xff]
  %v74 = vld [vmem:[%s1 + $0x48] sm:$0xff]
  %v75 = vld [vmem:[%s1 + $0x50] sm:$0xff]
  %v76 = vld [vmem:[%s1 + $0x58] sm:$0xff]
  %v77 = vld [vmem:[%s1 + $0x60] sm:$0xff]
  %v78 = vld [vmem:[%s1 + $0x68] sm:$0xff]
  %v79 = vld [vmem:[%s1 + $0x70] sm:$0xff]
  %v80 = vld [vmem:[%s1 + $0x78] sm:$0xff]
  %v81 = vld [vmem:[%s1 + $0x80] sm:$0xff]
  %v82 = vld [vmem:[%s1 + $0x88] sm:$0xff]
  %v83 = vpack.c.bf16 %v65, %v65
  %v84 = vpack.c.bf16 %v66, %v66
  %v85 = vpack.c.bf16 %v67, %v67
  %v86 = vpack.c.bf16 %v68, %v68
  %v87 = vpack.c.bf16 %v69, %v69
  %v88 = vpack.c.bf16 %v70, %v70
  %v89 = vpack.c.bf16 %v71, %v71
  %v90 = vpack.c.bf16 %v72, %v72
  %v91 = vpack.c.bf16 %v73, %v73
  %v92 = vpack.c.bf16 %v74, %v74
  %v93 = vpack.c.bf16 %v75, %v75
  %v94 = vpack.c.bf16 %v76, %v76
  %v95 = vpack.c.bf16 %v77, %v77
  %v96 = vpack.c.bf16 %v78, %v78
  %v97 = vpack.c.bf16 %v79, %v79
  %v98 = vpack.c.bf16 %v80, %v80
  %v99 = vpack.c.bf16 %v81, %v81
  %v100 = vpack.c.bf16 %v82, %v82
  %v101 = vld [vmem:[%s2] sm:$0xff]
  %v102 = vld [vmem:[%s2 + $0x8] sm:$0xff]
  %v103 = vld [vmem:[%s2 + $0x10] sm:$0xff]
  %v104 = vld [vmem:[%s2 + $0x18] sm:$0xff]
  %v105 = vld [vmem:[%s2 + $0x20] sm:$0xff]
  %v106 = vld [vmem:[%s2 + $0x28] sm:$0xff]
  %v107 = vld [vmem:[%s2 + $0x30] sm:$0xff]
  %v108 = vld [vmem:[%s2 + $0x38] sm:$0xff]
  %v109 = vld [vmem:[%s2 + $0x40] sm:$0xff]
  %v110 = vld [vmem:[%s2 + $0x48] sm:$0xff]
  %v111 = vld [vmem:[%s2 + $0x50] sm:$0xff]
  %v112 = vld [vmem:[%s2 + $0x58] sm:$0xff]
  %v113 = vld [vmem:[%s2 + $0x60] sm:$0xff]
  %v114 = vld [vmem:[%s2 + $0x68] sm:$0xff]
  %v115 = vld [vmem:[%s2 + $0x70] sm:$0xff]
  %v116 = vld [vmem:[%s2 + $0x78] sm:$0xff]
  %v117 = vld [vmem:[%s2 + $0x80] sm:$0xff]
  %v118 = vld [vmem:[%s2 + $0x88] sm:$0xff]
  %v119 = vld [vmem:[%s2 + $0x90] sm:$0xff]
  %v120 = vld [vmem:[%s2 + $0x98] sm:$0xff]
  %v121 = vld [vmem:[%s2 + $0xa0] sm:$0xff]
  %v122 = vld [vmem:[%s2 + $0xa8] sm:$0xff]
  %v123 = vld [vmem:[%s2 + $0xb0] sm:$0xff]
  %v124 = vld [vmem:[%s2 + $0xb8] sm:$0xff]
  %v125 = vld [vmem:[%s2 + $0xc0] sm:$0xff]
  %v126 = vld [vmem:[%s2 + $0xc8] sm:$0xff]
  %v127 = vld [vmem:[%s2 + $0xd0] sm:$0xff]
  %v128 = vld [vmem:[%s2 + $0xd8] sm:$0xff]
  %v129 = vld [vmem:[%s2 + $0xe0] sm:$0xff]
  %v130 = vld [vmem:[%s2 + $0xe8] sm:$0xff]
  %v131 = vld [vmem:[%s2 + $0xf0] sm:$0xff]
  %v132 = vld [vmem:[%s2 + $0xf8] sm:$0xff]
  %v133 = vld [vmem:[%s2 + $0x100] sm:$0xff]
  %v134 = vld [vmem:[%s2 + $0x108] sm:$0xff]
  %v135 = vld [vmem:[%s2 + $0x110] sm:$0xff]
  %v136 = vld [vmem:[%s2 + $0x118] sm:$0xff]
  %v137 = vld [vmem:[%s2 + $0x120] sm:$0xff]
  %v138 = vld [vmem:[%s2 + $0x128] sm:$0xff]
  %v139 = vld [vmem:[%s2 + $0x130] sm:$0xff]
  %v140 = vld [vmem:[%s2 + $0x138] sm:$0xff]
  %v141 = vld [vmem:[%s2 + $0x140] sm:$0xff]
  %v142 = vld [vmem:[%s2 + $0x148] sm:$0xff]
  %v143 = vld [vmem:[%s2 + $0x150] sm:$0xff]
  %v144 = vld [vmem:[%s2 + $0x158] sm:$0xff]
  %v145 = vld [vmem:[%s2 + $0x160] sm:$0xff]
  %v146 = vld [vmem:[%s2 + $0x168] sm:$0xff]
  %v147 = vld [vmem:[%s2 + $0x170] sm:$0xff]
  %v148 = vld [vmem:[%s2 + $0x178] sm:$0xff]
  %v149 = vld [vmem:[%s2 + $0x180] sm:$0xff]
  %v150 = vld [vmem:[%s2 + $0x188] sm:$0xff]
  %v151 = vld [vmem:[%s2 + $0x190] sm:$0xff]
  %v152 = vld [vmem:[%s2 + $0x198] sm:$0xff]
  %v153 = vld [vmem:[%s2 + $0x1a0] sm:$0xff]
  %v154 = vld [vmem:[%s2 + $0x1a8] sm:$0xff]
  %v155 = vld [vmem:[%s2 + $0x1b0] sm:$0xff]
  %v156 = vld [vmem:[%s2 + $0x1b8] sm:$0xff]
  %v157 = vld [vmem:[%s2 + $0x1c0] sm:$0xff]
  %v158 = vld [vmem:[%s2 + $0x1c8] sm:$0xff]
  %v159 = vld [vmem:[%s2 + $0x1d0] sm:$0xff]
  %v160 = vld [vmem:[%s2 + $0x1d8] sm:$0xff]
  %v161 = vld [vmem:[%s2 + $0x1e0] sm:$0xff]
  %v162 = vld [vmem:[%s2 + $0x1e8] sm:$0xff]
  %v163 = vld [vmem:[%s2 + $0x1f0] sm:$0xff]
  %v164 = vld [vmem:[%s2 + $0x1f8] sm:$0xff]
  %v165 = vld [vmem:[%s2 + $0x200] sm:$0xff]
  %v166 = vld [vmem:[%s2 + $0x208] sm:$0xff]
  %v167 = vld [vmem:[%s2 + $0x210] sm:$0xff]
  %v168 = vld [vmem:[%s2 + $0x218] sm:$0xff]
  %v169 = vld [vmem:[%s2 + $0x220] sm:$0xff]
  %v170 = vld [vmem:[%s2 + $0x228] sm:$0xff]
  %v171 = vld [vmem:[%s2 + $0x230] sm:$0xff]
  %v172 = vld [vmem:[%s2 + $0x238] sm:$0xff]
  %v173 = vld [vmem:[%s2 + $0x240] sm:$0xff]
  %v174 = vld [vmem:[%s2 + $0x248] sm:$0xff]
  %v175 = vld [vmem:[%s2 + $0x250] sm:$0xff]
  %v176 = vld [vmem:[%s2 + $0x258] sm:$0xff]
  %v177 = vld [vmem:[%s2 + $0x260] sm:$0xff]
  %v178 = vld [vmem:[%s2 + $0x268] sm:$0xff]
  %v179 = vld [vmem:[%s2 + $0x270] sm:$0xff]
  %v180 = vld [vmem:[%s2 + $0x278] sm:$0xff]
  %v181 = vld [vmem:[%s2 + $0x280] sm:$0xff]
  %v182 = vld [vmem:[%s2 + $0x288] sm:$0xff]
  %v183 = vld [vmem:[%s2 + $0x290] sm:$0xff]
  %v184 = vld [vmem:[%s2 + $0x298] sm:$0xff]
  %v185 = vld [vmem:[%s2 + $0x2a0] sm:$0xff]
  %v186 = vld [vmem:[%s2 + $0x2a8] sm:$0xff]
  %v187 = vld [vmem:[%s2 + $0x2b0] sm:$0xff]
  %v188 = vld [vmem:[%s2 + $0x2b8] sm:$0xff]
  %v189 = vld [vmem:[%s2 + $0x2c0] sm:$0xff]
  %v190 = vld [vmem:[%s2 + $0x2c8] sm:$0xff]
  %v191 = vld [vmem:[%s2 + $0x2d0] sm:$0xff]
  %v192 = vld [vmem:[%s2 + $0x2d8] sm:$0xff]
  %v193 = vld [vmem:[%s2 + $0x2e0] sm:$0xff]
  %v194 = vld [vmem:[%s2 + $0x2e8] sm:$0xff]
  %v195 = vld [vmem:[%s2 + $0x2f0] sm:$0xff]
  %v196 = vld [vmem:[%s2 + $0x2f8] sm:$0xff]
  %v197 = vld [vmem:[%s2 + $0x300] sm:$0xff]
  %v198 = vld [vmem:[%s2 + $0x308] sm:$0xff]
  %v199 = vld [vmem:[%s2 + $0x310] sm:$0xff]
  %v200 = vld [vmem:[%s2 + $0x318] sm:$0xff]
  %v201 = vld [vmem:[%s2 + $0x320] sm:$0xff]
  %v202 = vld [vmem:[%s2 + $0x328] sm:$0xff]
  %v203 = vld [vmem:[%s2 + $0x330] sm:$0xff]
  %v204 = vld [vmem:[%s2 + $0x338] sm:$0xff]
  %v205 = vld [vmem:[%s2 + $0x340] sm:$0xff]
  %v206 = vld [vmem:[%s2 + $0x348] sm:$0xff]
  %v207 = vld [vmem:[%s2 + $0x350] sm:$0xff]
  %v208 = vld [vmem:[%s2 + $0x358] sm:$0xff]
  %v209 = vld [vmem:[%s2 + $0x360] sm:$0xff]
  %v210 = vld [vmem:[%s2 + $0x368] sm:$0xff]
  %v211 = vld [vmem:[%s2 + $0x370] sm:$0xff]
  %v212 = vld [vmem:[%s2 + $0x378] sm:$0xff]
  %v213 = vld [vmem:[%s2 + $0x380] sm:$0xff]
  %v214 = vld [vmem:[%s2 + $0x388] sm:$0xff]
  %v215 = vld [vmem:[%s2 + $0x390] sm:$0xff]
  %v216 = vld [vmem:[%s2 + $0x398] sm:$0xff]
  %v217 = vld [vmem:[%s2 + $0x3a0] sm:$0xff]
  %v218 = vld [vmem:[%s2 + $0x3a8] sm:$0xff]
  %v219 = vld [vmem:[%s2 + $0x3b0] sm:$0xff]
  %v220 = vld [vmem:[%s2 + $0x3b8] sm:$0xff]
  %v221 = vld [vmem:[%s2 + $0x3c0] sm:$0xff]
  %v222 = vld [vmem:[%s2 + $0x3c8] sm:$0xff]
  %v223 = vld [vmem:[%s2 + $0x3d0] sm:$0xff]
  %v224 = vld [vmem:[%s2 + $0x3d8] sm:$0xff]
  %v225 = vld [vmem:[%s2 + $0x3e0] sm:$0xff]
  %v226 = vld [vmem:[%s2 + $0x3e8] sm:$0xff]
  %v227 = vld [vmem:[%s2 + $0x3f0] sm:$0xff]
  %v228 = vld [vmem:[%s2 + $0x3f8] sm:$0xff]
  %v229 = vld [vmem:[%s2 + $0x400] sm:$0xff]
  %v230 = vld [vmem:[%s2 + $0x408] sm:$0xff]
  %v231 = vld [vmem:[%s2 + $0x410] sm:$0xff]
  %v232 = vld [vmem:[%s2 + $0x418] sm:$0xff]
  %v233 = vld [vmem:[%s2 + $0x420] sm:$0xff]
  %v234 = vld [vmem:[%s2 + $0x428] sm:$0xff]
  %v235 = vld [vmem:[%s2 + $0x430] sm:$0xff]
  %v236 = vld [vmem:[%s2 + $0x438] sm:$0xff]
  %v237 = vld [vmem:[%s2 + $0x440] sm:$0xff]
  %v238 = vld [vmem:[%s2 + $0x448] sm:$0xff]
  %v239 = vld [vmem:[%s2 + $0x450] sm:$0xff]
  %v240 = vld [vmem:[%s2 + $0x458] sm:$0xff]
  %v241 = vld [vmem:[%s2 + $0x460] sm:$0xff]
  %v242 = vld [vmem:[%s2 + $0x468] sm:$0xff]
  %v243 = vld [vmem:[%s2 + $0x470] sm:$0xff]
  %v244 = vld [vmem:[%s2 + $0x478] sm:$0xff]
  %v245 = vld [vmem:[%s2 + $0x480] sm:$0xff]
  %v246 = vld [vmem:[%s2 + $0x488] sm:$0xff]
  %v247 = vld [vmem:[%s2 + $0x490] sm:$0xff]
  %v248 = vld [vmem:[%s2 + $0x498] sm:$0xff]
  %v249 = vld [vmem:[%s2 + $0x4a0] sm:$0xff]
  %v250 = vld [vmem:[%s2 + $0x4a8] sm:$0xff]
  %v251 = vld [vmem:[%s2 + $0x4b0] sm:$0xff]
  %v252 = vld [vmem:[%s2 + $0x4b8] sm:$0xff]
  %v253 = vld [vmem:[%s2 + $0x4c0] sm:$0xff]
  %v254 = vld [vmem:[%s2 + $0x4c8] sm:$0xff]
  %v255 = vld [vmem:[%s2 + $0x4d0] sm:$0xff]
  %v256 = vld [vmem:[%s2 + $0x4d8] sm:$0xff]
  %v257 = vld [vmem:[%s2 + $0x4e0] sm:$0xff]
  %v258 = vld [vmem:[%s2 + $0x4e8] sm:$0xff]
  %v259 = vld [vmem:[%s2 + $0x4f0] sm:$0xff]
  %v260 = vld [vmem:[%s2 + $0x4f8] sm:$0xff]
  %v261 = vld [vmem:[%s2 + $0x500] sm:$0xff]
  %v262 = vld [vmem:[%s2 + $0x508] sm:$0xff]
  %v263 = vld [vmem:[%s2 + $0x510] sm:$0xff]
  %v264 = vld [vmem:[%s2 + $0x518] sm:$0xff]
  %v265 = vld [vmem:[%s2 + $0x520] sm:$0xff]
  %v266 = vld [vmem:[%s2 + $0x528] sm:$0xff]
  %v267 = vld [vmem:[%s2 + $0x530] sm:$0xff]
  %v268 = vld [vmem:[%s2 + $0x538] sm:$0xff]
  %v269 = vld [vmem:[%s2 + $0x540] sm:$0xff]
  %v270 = vld [vmem:[%s2 + $0x548] sm:$0xff]
  %v271 = vld [vmem:[%s2 + $0x550] sm:$0xff]
  %v272 = vld [vmem:[%s2 + $0x558] sm:$0xff]
  %v273 = vld [vmem:[%s2 + $0x560] sm:$0xff]
  %v274 = vld [vmem:[%s2 + $0x568] sm:$0xff]
  %v275 = vld [vmem:[%s2 + $0x570] sm:$0xff]
  %v276 = vld [vmem:[%s2 + $0x578] sm:$0xff]
  %v277 = vld [vmem:[%s2 + $0x580] sm:$0xff]
  %v278 = vld [vmem:[%s2 + $0x588] sm:$0xff]
  %v279 = vld [vmem:[%s2 + $0x590] sm:$0xff]
  %v280 = vld [vmem:[%s2 + $0x598] sm:$0xff]
  %v281 = vld [vmem:[%s2 + $0x5a0] sm:$0xff]
  %v282 = vld [vmem:[%s2 + $0x5a8] sm:$0xff]
  %v283 = vld [vmem:[%s2 + $0x5b0] sm:$0xff]
  %v284 = vld [vmem:[%s2 + $0x5b8] sm:$0xff]
  %v285 = vld [vmem:[%s2 + $0x5c0] sm:$0xff]
  %v286 = vld [vmem:[%s2 + $0x5c8] sm:$0xff]
  %v287 = vld [vmem:[%s2 + $0x5d0] sm:$0xff]
  %v288 = vld [vmem:[%s2 + $0x5d8] sm:$0xff]
  %v289 = vld [vmem:[%s2 + $0x5e0] sm:$0xff]
  %v290 = vld [vmem:[%s2 + $0x5e8] sm:$0xff]
  %v291 = vld [vmem:[%s2 + $0x5f0] sm:$0xff]
  %v292 = vld [vmem:[%s2 + $0x5f8] sm:$0xff]
  %v293 = vld [vmem:[%s2 + $0x600] sm:$0xff]
  %v294 = vld [vmem:[%s2 + $0x608] sm:$0xff]
  %v295 = vld [vmem:[%s2 + $0x610] sm:$0xff]
  %v296 = vld [vmem:[%s2 + $0x618] sm:$0xff]
  %v297 = vld [vmem:[%s2 + $0x620] sm:$0xff]
  %v298 = vld [vmem:[%s2 + $0x628] sm:$0xff]
  %v299 = vld [vmem:[%s2 + $0x630] sm:$0xff]
  %v300 = vld [vmem:[%s2 + $0x638] sm:$0xff]
  %v301 = vld [vmem:[%s2 + $0x640] sm:$0xff]
  %v302 = vld [vmem:[%s2 + $0x648] sm:$0xff]
  %v303 = vld [vmem:[%s2 + $0x650] sm:$0xff]
  %v304 = vld [vmem:[%s2 + $0x658] sm:$0xff]
  %v305 = vld [vmem:[%s2 + $0x660] sm:$0xff]
  %v306 = vld [vmem:[%s2 + $0x668] sm:$0xff]
  %v307 = vld [vmem:[%s2 + $0x670] sm:$0xff]
  %v308 = vld [vmem:[%s2 + $0x678] sm:$0xff]
  %v309 = vld [vmem:[%s2 + $0x680] sm:$0xff]
  %v310 = vld [vmem:[%s2 + $0x688] sm:$0xff]
  %v311 = vld [vmem:[%s2 + $0x690] sm:$0xff]
  %v312 = vld [vmem:[%s2 + $0x698] sm:$0xff]
  %v313 = vld [vmem:[%s2 + $0x6a0] sm:$0xff]
  %v314 = vld [vmem:[%s2 + $0x6a8] sm:$0xff]
  %v315 = vld [vmem:[%s2 + $0x6b0] sm:$0xff]
  %v316 = vld [vmem:[%s2 + $0x6b8] sm:$0xff]
  %v317 = vld [vmem:[%s2 + $0x6c0] sm:$0xff]
  %v318 = vld [vmem:[%s2 + $0x6c8] sm:$0xff]
  %v319 = vld [vmem:[%s2 + $0x6d0] sm:$0xff]
  %v320 = vld [vmem:[%s2 + $0x6d8] sm:$0xff]
  %v321 = vld [vmem:[%s2 + $0x6e0] sm:$0xff]
  %v322 = vld [vmem:[%s2 + $0x6e8] sm:$0xff]
  %v323 = vld [vmem:[%s2 + $0x6f0] sm:$0xff]
  %v324 = vld [vmem:[%s2 + $0x6f8] sm:$0xff]
  %v325 = vld [vmem:[%s2 + $0x700] sm:$0xff]
  %v326 = vld [vmem:[%s2 + $0x708] sm:$0xff]
  %v327 = vld [vmem:[%s2 + $0x710] sm:$0xff]
  %v328 = vld [vmem:[%s2 + $0x718] sm:$0xff]
  %v329 = vld [vmem:[%s2 + $0x720] sm:$0xff]
  %v330 = vld [vmem:[%s2 + $0x728] sm:$0xff]
  %v331 = vld [vmem:[%s2 + $0x730] sm:$0xff]
  %v332 = vld [vmem:[%s2 + $0x738] sm:$0xff]
  %v333 = vld [vmem:[%s2 + $0x740] sm:$0xff]
  %v334 = vld [vmem:[%s2 + $0x748] sm:$0xff]
  %v335 = vld [vmem:[%s2 + $0x750] sm:$0xff]
  %v336 = vld [vmem:[%s2 + $0x758] sm:$0xff]
  %v337 = vld [vmem:[%s2 + $0x760] sm:$0xff]
  %v338 = vld [vmem:[%s2 + $0x768] sm:$0xff]
  %v339 = vld [vmem:[%s2 + $0x770] sm:$0xff]
  %v340 = vld [vmem:[%s2 + $0x778] sm:$0xff]
  %v341 = vld [vmem:[%s2 + $0x780] sm:$0xff]
  %v342 = vld [vmem:[%s2 + $0x788] sm:$0xff]
  %v343 = vld [vmem:[%s2 + $0x790] sm:$0xff]
  %v344 = vld [vmem:[%s2 + $0x798] sm:$0xff]
  %v345 = vld [vmem:[%s2 + $0x7a0] sm:$0xff]
  %v346 = vld [vmem:[%s2 + $0x7a8] sm:$0xff]
  %v347 = vld [vmem:[%s2 + $0x7b0] sm:$0xff]
  %v348 = vld [vmem:[%s2 + $0x7b8] sm:$0xff]
  %v349 = vld [vmem:[%s2 + $0x7c0] sm:$0xff]
  %v350 = vld [vmem:[%s2 + $0x7c8] sm:$0xff]
  %v351 = vld [vmem:[%s2 + $0x7d0] sm:$0xff]
  %v352 = vld [vmem:[%s2 + $0x7d8] sm:$0xff]
  %v353 = vld [vmem:[%s2 + $0x7e0] sm:$0xff]
  %v354 = vld [vmem:[%s2 + $0x7e8] sm:$0xff]
  %v355 = vld [vmem:[%s2 + $0x7f0] sm:$0xff]
  %v356 = vld [vmem:[%s2 + $0x7f8] sm:$0xff]
  %v357 = vld [vmem:[%s2 + $0x800] sm:$0xff]
  %v358 = vld [vmem:[%s2 + $0x808] sm:$0xff]
  %v359 = vld [vmem:[%s2 + $0x810] sm:$0xff]
  %v360 = vld [vmem:[%s2 + $0x818] sm:$0xff]
  %v361 = vld [vmem:[%s2 + $0x820] sm:$0xff]
  %v362 = vld [vmem:[%s2 + $0x828] sm:$0xff]
  %v363 = vld [vmem:[%s2 + $0x830] sm:$0xff]
  %v364 = vld [vmem:[%s2 + $0x838] sm:$0xff]
  %v365 = vld [vmem:[%s2 + $0x840] sm:$0xff]
  %v366 = vld [vmem:[%s2 + $0x848] sm:$0xff]
  %v367 = vld [vmem:[%s2 + $0x850] sm:$0xff]
  %v368 = vld [vmem:[%s2 + $0x858] sm:$0xff]
  %v369 = vld [vmem:[%s2 + $0x860] sm:$0xff]
  %v370 = vld [vmem:[%s2 + $0x868] sm:$0xff]
  %v371 = vld [vmem:[%s2 + $0x870] sm:$0xff]
  %v372 = vld [vmem:[%s2 + $0x878] sm:$0xff]
  %v373 = vld [vmem:[%s2 + $0x880] sm:$0xff]
  %v374 = vld [vmem:[%s2 + $0x888] sm:$0xff]
  %v375 = vld [vmem:[%s2 + $0x890] sm:$0xff]
  %v376 = vld [vmem:[%s2 + $0x898] sm:$0xff]
  %v377 = vld [vmem:[%s2 + $0x8a0] sm:$0xff]
  %v378 = vld [vmem:[%s2 + $0x8a8] sm:$0xff]
  %v379 = vld [vmem:[%s2 + $0x8b0] sm:$0xff]
  %v380 = vld [vmem:[%s2 + $0x8b8] sm:$0xff]
  %v381 = vld [vmem:[%s2 + $0x8c0] sm:$0xff]
  %v382 = vld [vmem:[%s2 + $0x8c8] sm:$0xff]
  %v383 = vld [vmem:[%s2 + $0x8d0] sm:$0xff]
  %v384 = vld [vmem:[%s2 + $0x8d8] sm:$0xff]
  %v385 = vld [vmem:[%s2 + $0x8e0] sm:$0xff]
  %v386 = vld [vmem:[%s2 + $0x8e8] sm:$0xff]
  %v387 = vld [vmem:[%s2 + $0x8f0] sm:$0xff]
  %v388 = vld [vmem:[%s2 + $0x8f8] sm:$0xff]
  %v389 = vld [vmem:[%s2 + $0x900] sm:$0xff]
  %v390 = vld [vmem:[%s2 + $0x908] sm:$0xff]
  %v391 = vld [vmem:[%s2 + $0x910] sm:$0xff]
  %v392 = vld [vmem:[%s2 + $0x918] sm:$0xff]
  %v393 = vld [vmem:[%s2 + $0x920] sm:$0xff]
  %v394 = vld [vmem:[%s2 + $0x928] sm:$0xff]
  %v395 = vld [vmem:[%s2 + $0x930] sm:$0xff]
  %v396 = vld [vmem:[%s2 + $0x938] sm:$0xff]
  %v397 = vld [vmem:[%s2 + $0x940] sm:$0xff]
  %v398 = vld [vmem:[%s2 + $0x948] sm:$0xff]
  %v399 = vld [vmem:[%s2 + $0x950] sm:$0xff]
  %v400 = vld [vmem:[%s2 + $0x958] sm:$0xff]
  %v401 = vld [vmem:[%s2 + $0x960] sm:$0xff]
  %v402 = vld [vmem:[%s2 + $0x968] sm:$0xff]
  %v403 = vld [vmem:[%s2 + $0x970] sm:$0xff]
  %v404 = vld [vmem:[%s2 + $0x978] sm:$0xff]
  %v405 = vld [vmem:[%s2 + $0x980] sm:$0xff]
  %v406 = vld [vmem:[%s2 + $0x988] sm:$0xff]
  %v407 = vld [vmem:[%s2 + $0x990] sm:$0xff]
  %v408 = vld [vmem:[%s2 + $0x998] sm:$0xff]
  %v409 = vld [vmem:[%s2 + $0x9a0] sm:$0xff]
  %v410 = vld [vmem:[%s2 + $0x9a8] sm:$0xff]
  %v411 = vld [vmem:[%s2 + $0x9b0] sm:$0xff]
  %v412 = vld [vmem:[%s2 + $0x9b8] sm:$0xff]
  %v413 = vld [vmem:[%s2 + $0x9c0] sm:$0xff]
  %v414 = vld [vmem:[%s2 + $0x9c8] sm:$0xff]
  %v415 = vld [vmem:[%s2 + $0x9d0] sm:$0xff]
  %v416 = vld [vmem:[%s2 + $0x9d8] sm:$0xff]
  %v417 = vld [vmem:[%s2 + $0x9e0] sm:$0xff]
  %v418 = vld [vmem:[%s2 + $0x9e8] sm:$0xff]
  %v419 = vld [vmem:[%s2 + $0x9f0] sm:$0xff]
  %v420 = vld [vmem:[%s2 + $0x9f8] sm:$0xff]
  %v421 = vld [vmem:[%s2 + $0xa00] sm:$0xff]
  %v422 = vld [vmem:[%s2 + $0xa08] sm:$0xff]
  %v423 = vld [vmem:[%s2 + $0xa10] sm:$0xff]
  %v424 = vld [vmem:[%s2 + $0xa18] sm:$0xff]
  %v425 = vld [vmem:[%s2 + $0xa20] sm:$0xff]
  %v426 = vld [vmem:[%s2 + $0xa28] sm:$0xff]
  %v427 = vld [vmem:[%s2 + $0xa30] sm:$0xff]
  %v428 = vld [vmem:[%s2 + $0xa38] sm:$0xff]
  %v429 = vld [vmem:[%s2 + $0xa40] sm:$0xff]
  %v430 = vld [vmem:[%s2 + $0xa48] sm:$0xff]
  %v431 = vld [vmem:[%s2 + $0xa50] sm:$0xff]
  %v432 = vld [vmem:[%s2 + $0xa58] sm:$0xff]
  %v433 = vld [vmem:[%s2 + $0xa60] sm:$0xff]
  %v434 = vld [vmem:[%s2 + $0xa68] sm:$0xff]
  %v435 = vld [vmem:[%s2 + $0xa70] sm:$0xff]
  %v436 = vld [vmem:[%s2 + $0xa78] sm:$0xff]
  %v437 = vld [vmem:[%s2 + $0xa80] sm:$0xff]
  %v438 = vld [vmem:[%s2 + $0xa88] sm:$0xff]
  %v439 = vld [vmem:[%s2 + $0xa90] sm:$0xff]
  %v440 = vld [vmem:[%s2 + $0xa98] sm:$0xff]
  %v441 = vld [vmem:[%s2 + $0xaa0] sm:$0xff]
  %v442 = vld [vmem:[%s2 + $0xaa8] sm:$0xff]
  %v443 = vld [vmem:[%s2 + $0xab0] sm:$0xff]
  %v444 = vld [vmem:[%s2 + $0xab8] sm:$0xff]
  %v445 = vld [vmem:[%s2 + $0xac0] sm:$0xff]
  %v446 = vld [vmem:[%s2 + $0xac8] sm:$0xff]
  %v447 = vld [vmem:[%s2 + $0xad0] sm:$0xff]
  %v448 = vld [vmem:[%s2 + $0xad8] sm:$0xff]
  %v449 = vld [vmem:[%s2 + $0xae0] sm:$0xff]
  %v450 = vld [vmem:[%s2 + $0xae8] sm:$0xff]
  %v451 = vld [vmem:[%s2 + $0xaf0] sm:$0xff]
  %v452 = vld [vmem:[%s2 + $0xaf8] sm:$0xff]
  %v453 = vld [vmem:[%s2 + $0xb00] sm:$0xff]
  %v454 = vld [vmem:[%s2 + $0xb08] sm:$0xff]
  %v455 = vld [vmem:[%s2 + $0xb10] sm:$0xff]
  %v456 = vld [vmem:[%s2 + $0xb18] sm:$0xff]
  %v457 = vld [vmem:[%s2 + $0xb20] sm:$0xff]
  %v458 = vld [vmem:[%s2 + $0xb28] sm:$0xff]
  %v459 = vld [vmem:[%s2 + $0xb30] sm:$0xff]
  %v460 = vld [vmem:[%s2 + $0xb38] sm:$0xff]
  %v461 = vld [vmem:[%s2 + $0xb40] sm:$0xff]
  %v462 = vld [vmem:[%s2 + $0xb48] sm:$0xff]
  %v463 = vld [vmem:[%s2 + $0xb50] sm:$0xff]
  %v464 = vld [vmem:[%s2 + $0xb58] sm:$0xff]
  %v465 = vld [vmem:[%s2 + $0xb60] sm:$0xff]
  %v466 = vld [vmem:[%s2 + $0xb68] sm:$0xff]
  %v467 = vld [vmem:[%s2 + $0xb70] sm:$0xff]
  %v468 = vld [vmem:[%s2 + $0xb78] sm:$0xff]
  %v469 = vld [vmem:[%s2 + $0xb80] sm:$0xff]
  %v470 = vld [vmem:[%s2 + $0xb88] sm:$0xff]
  %v471 = vld [vmem:[%s2 + $0xb90] sm:$0xff]
  %v472 = vld [vmem:[%s2 + $0xb98] sm:$0xff]
  %v473 = vld [vmem:[%s2 + $0xba0] sm:$0xff]
  %v474 = vld [vmem:[%s2 + $0xba8] sm:$0xff]
  %v475 = vld [vmem:[%s2 + $0xbb0] sm:$0xff]
  %v476 = vld [vmem:[%s2 + $0xbb8] sm:$0xff]
  %v477 = vld [vmem:[%s2 + $0xbc0] sm:$0xff]
  %v478 = vld [vmem:[%s2 + $0xbc8] sm:$0xff]
  %v479 = vld [vmem:[%s2 + $0xbd0] sm:$0xff]
  %v480 = vld [vmem:[%s2 + $0xbd8] sm:$0xff]
  %v481 = vld [vmem:[%s2 + $0xbe0] sm:$0xff]
  %v482 = vld [vmem:[%s2 + $0xbe8] sm:$0xff]
  %v483 = vld [vmem:[%s2 + $0xbf0] sm:$0xff]
  %v484 = vld [vmem:[%s2 + $0xbf8] sm:$0xff]
  %v485 = vld [vmem:[%s2 + $0xc00] sm:$0xff]
  %v486 = vld [vmem:[%s2 + $0xc08] sm:$0xff]
  %v487 = vld [vmem:[%s2 + $0xc10] sm:$0xff]
  %v488 = vld [vmem:[%s2 + $0xc18] sm:$0xff]
  %v489 = vld [vmem:[%s2 + $0xc20] sm:$0xff]
  %v490 = vld [vmem:[%s2 + $0xc28] sm:$0xff]
  %v491 = vld [vmem:[%s2 + $0xc30] sm:$0xff]
  %v492 = vld [vmem:[%s2 + $0xc38] sm:$0xff]
  %v493 = vld [vmem:[%s2 + $0xc40] sm:$0xff]
  %v494 = vld [vmem:[%s2 + $0xc48] sm:$0xff]
  %v495 = vld [vmem:[%s2 + $0xc50] sm:$0xff]
  %v496 = vld [vmem:[%s2 + $0xc58] sm:$0xff]
  %v497 = vld [vmem:[%s2 + $0xc60] sm:$0xff]
  %v498 = vld [vmem:[%s2 + $0xc68] sm:$0xff]
  %v499 = vld [vmem:[%s2 + $0xc70] sm:$0xff]
  %v500 = vld [vmem:[%s2 + $0xc78] sm:$0xff]
  %v501 = vld [vmem:[%s2 + $0xc80] sm:$0xff]
  %v502 = vld [vmem:[%s2 + $0xc88] sm:$0xff]
  %v503 = vld [vmem:[%s2 + $0xc90] sm:$0xff]
  %v504 = vld [vmem:[%s2 + $0xc98] sm:$0xff]
  %v505 = vld [vmem:[%s2 + $0xca0] sm:$0xff]
  %v506 = vld [vmem:[%s2 + $0xca8] sm:$0xff]
  %v507 = vld [vmem:[%s2 + $0xcb0] sm:$0xff]
  %v508 = vld [vmem:[%s2 + $0xcb8] sm:$0xff]
  %v509 = vld [vmem:[%s2 + $0xcc0] sm:$0xff]
  %v510 = vld [vmem:[%s2 + $0xcc8] sm:$0xff]
  %v511 = vld [vmem:[%s2 + $0xcd0] sm:$0xff]
  %v512 = vld [vmem:[%s2 + $0xcd8] sm:$0xff]
  %v513 = vld [vmem:[%s2 + $0xce0] sm:$0xff]
  %v514 = vld [vmem:[%s2 + $0xce8] sm:$0xff]
  %v515 = vld [vmem:[%s2 + $0xcf0] sm:$0xff]
  %v516 = vld [vmem:[%s2 + $0xcf8] sm:$0xff]
  %v517 = vld [vmem:[%s2 + $0xd00] sm:$0xff]
  %v518 = vld [vmem:[%s2 + $0xd08] sm:$0xff]
  %v519 = vld [vmem:[%s2 + $0xd10] sm:$0xff]
  %v520 = vld [vmem:[%s2 + $0xd18] sm:$0xff]
  %v521 = vld [vmem:[%s2 + $0xd20] sm:$0xff]
  %v522 = vld [vmem:[%s2 + $0xd28] sm:$0xff]
  %v523 = vld [vmem:[%s2 + $0xd30] sm:$0xff]
  %v524 = vld [vmem:[%s2 + $0xd38] sm:$0xff]
  %v525 = vld [vmem:[%s2 + $0xd40] sm:$0xff]
  %v526 = vld [vmem:[%s2 + $0xd48] sm:$0xff]
  %v527 = vld [vmem:[%s2 + $0xd50] sm:$0xff]
  %v528 = vld [vmem:[%s2 + $0xd58] sm:$0xff]
  %v529 = vld [vmem:[%s2 + $0xd60] sm:$0xff]
  %v530 = vld [vmem:[%s2 + $0xd68] sm:$0xff]
  %v531 = vld [vmem:[%s2 + $0xd70] sm:$0xff]
  %v532 = vld [vmem:[%s2 + $0xd78] sm:$0xff]
  %v533 = vld [vmem:[%s2 + $0xd80] sm:$0xff]
  %v534 = vld [vmem:[%s2 + $0xd88] sm:$0xff]
  %v535 = vld [vmem:[%s2 + $0xd90] sm:$0xff]
  %v536 = vld [vmem:[%s2 + $0xd98] sm:$0xff]
  %v537 = vld [vmem:[%s2 + $0xda0] sm:$0xff]
  %v538 = vld [vmem:[%s2 + $0xda8] sm:$0xff]
  %v539 = vld [vmem:[%s2 + $0xdb0] sm:$0xff]
  %v540 = vld [vmem:[%s2 + $0xdb8] sm:$0xff]
  %v541 = vld [vmem:[%s2 + $0xdc0] sm:$0xff]
  %v542 = vld [vmem:[%s2 + $0xdc8] sm:$0xff]
  %v543 = vld [vmem:[%s2 + $0xdd0] sm:$0xff]
  %v544 = vld [vmem:[%s2 + $0xdd8] sm:$0xff]
  %v545 = vld [vmem:[%s2 + $0xde0] sm:$0xff]
  %v546 = vld [vmem:[%s2 + $0xde8] sm:$0xff]
  %v547 = vld [vmem:[%s2 + $0xdf0] sm:$0xff]
  %v548 = vld [vmem:[%s2 + $0xdf8] sm:$0xff]
  %v549 = vld [vmem:[%s2 + $0xe00] sm:$0xff]
  %v550 = vld [vmem:[%s2 + $0xe08] sm:$0xff]
  %v551 = vld [vmem:[%s2 + $0xe10] sm:$0xff]
  %v552 = vld [vmem:[%s2 + $0xe18] sm:$0xff]
  %v553 = vld [vmem:[%s2 + $0xe20] sm:$0xff]
  %v554 = vld [vmem:[%s2 + $0xe28] sm:$0xff]
  %v555 = vld [vmem:[%s2 + $0xe30] sm:$0xff]
  %v556 = vld [vmem:[%s2 + $0xe38] sm:$0xff]
  %v557 = vld [vmem:[%s2 + $0xe40] sm:$0xff]
  %v558 = vld [vmem:[%s2 + $0xe48] sm:$0xff]
  %v559 = vld [vmem:[%s2 + $0xe50] sm:$0xff]
  %v560 = vld [vmem:[%s2 + $0xe58] sm:$0xff]
  %v561 = vld [vmem:[%s2 + $0xe60] sm:$0xff]
  %v562 = vld [vmem:[%s2 + $0xe68] sm:$0xff]
  %v563 = vld [vmem:[%s2 + $0xe70] sm:$0xff]
  %v564 = vld [vmem:[%s2 + $0xe78] sm:$0xff]
  %v565 = vld [vmem:[%s2 + $0xe80] sm:$0xff]
  %v566 = vld [vmem:[%s2 + $0xe88] sm:$0xff]
  %v567 = vld [vmem:[%s2 + $0xe90] sm:$0xff]
  %v568 = vld [vmem:[%s2 + $0xe98] sm:$0xff]
  %v569 = vld [vmem:[%s2 + $0xea0] sm:$0xff]
  %v570 = vld [vmem:[%s2 + $0xea8] sm:$0xff]
  %v571 = vld [vmem:[%s2 + $0xeb0] sm:$0xff]
  %v572 = vld [vmem:[%s2 + $0xeb8] sm:$0xff]
  %v573 = vld [vmem:[%s2 + $0xec0] sm:$0xff]
  %v574 = vld [vmem:[%s2 + $0xec8] sm:$0xff]
  %v575 = vld [vmem:[%s2 + $0xed0] sm:$0xff]
  %v576 = vld [vmem:[%s2 + $0xed8] sm:$0xff]
  %v577 = vld [vmem:[%s2 + $0xee0] sm:$0xff]
  %v578 = vld [vmem:[%s2 + $0xee8] sm:$0xff]
  %v579 = vld [vmem:[%s2 + $0xef0] sm:$0xff]
  %v580 = vld [vmem:[%s2 + $0xef8] sm:$0xff]
  %v581 = vld [vmem:[%s2 + $0xf00] sm:$0xff]
  %v582 = vld [vmem:[%s2 + $0xf08] sm:$0xff]
  %v583 = vld [vmem:[%s2 + $0xf10] sm:$0xff]
  %v584 = vld [vmem:[%s2 + $0xf18] sm:$0xff]
  %v585 = vld [vmem:[%s2 + $0xf20] sm:$0xff]
  %v586 = vld [vmem:[%s2 + $0xf28] sm:$0xff]
  %v587 = vld [vmem:[%s2 + $0xf30] sm:$0xff]
  %v588 = vld [vmem:[%s2 + $0xf38] sm:$0xff]
  %v589 = vld [vmem:[%s2 + $0xf40] sm:$0xff]
  %v590 = vld [vmem:[%s2 + $0xf48] sm:$0xff]
  %v591 = vld [vmem:[%s2 + $0xf50] sm:$0xff]
  %v592 = vld [vmem:[%s2 + $0xf58] sm:$0xff]
  %v593 = vld [vmem:[%s2 + $0xf60] sm:$0xff]
  %v594 = vld [vmem:[%s2 + $0xf68] sm:$0xff]
  %v595 = vld [vmem:[%s2 + $0xf70] sm:$0xff]
  %v596 = vld [vmem:[%s2 + $0xf78] sm:$0xff]
  %v597 = vld [vmem:[%s2 + $0xf80] sm:$0xff]
  %v598 = vld [vmem:[%s2 + $0xf88] sm:$0xff]
  %v599 = vld [vmem:[%s2 + $0xf90] sm:$0xff]
  %v600 = vld [vmem:[%s2 + $0xf98] sm:$0xff]
  %v601 = vld [vmem:[%s2 + $0xfa0] sm:$0xff]
  %v602 = vld [vmem:[%s2 + $0xfa8] sm:$0xff]
  %v603 = vld [vmem:[%s2 + $0xfb0] sm:$0xff]
  %v604 = vld [vmem:[%s2 + $0xfb8] sm:$0xff]
  %v605 = vld [vmem:[%s2 + $0xfc0] sm:$0xff]
  %v606 = vld [vmem:[%s2 + $0xfc8] sm:$0xff]
  %v607 = vld [vmem:[%s2 + $0xfd0] sm:$0xff]
  %v608 = vld [vmem:[%s2 + $0xfd8] sm:$0xff]
  %v609 = vld [vmem:[%s2 + $0xfe0] sm:$0xff]
  %v610 = vld [vmem:[%s2 + $0xfe8] sm:$0xff]
  %v611 = vld [vmem:[%s2 + $0xff0] sm:$0xff]
  %v612 = vld [vmem:[%s2 + $0xff8] sm:$0xff]
  %v613 = vld [vmem:[%s2 + $0x1000] sm:$0xff]
  %v614 = vld [vmem:[%s2 + $0x1008] sm:$0xff]
  %v615 = vld [vmem:[%s2 + $0x1010] sm:$0xff]
  %v616 = vld [vmem:[%s2 + $0x1018] sm:$0xff]
  %v617 = vld [vmem:[%s2 + $0x1020] sm:$0xff]
  %v618 = vld [vmem:[%s2 + $0x1028] sm:$0xff]
  %v619 = vld [vmem:[%s2 + $0x1030] sm:$0xff]
  %v620 = vld [vmem:[%s2 + $0x1038] sm:$0xff]
  %v621 = vld [vmem:[%s2 + $0x1040] sm:$0xff]
  %v622 = vld [vmem:[%s2 + $0x1048] sm:$0xff]
  %v623 = vld [vmem:[%s2 + $0x1050] sm:$0xff]
  %v624 = vld [vmem:[%s2 + $0x1058] sm:$0xff]
  %v625 = vld [vmem:[%s2 + $0x1060] sm:$0xff]
  %v626 = vld [vmem:[%s2 + $0x1068] sm:$0xff]
  %v627 = vld [vmem:[%s2 + $0x1070] sm:$0xff]
  %v628 = vld [vmem:[%s2 + $0x1078] sm:$0xff]
  %v629 = vld [vmem:[%s2 + $0x1080] sm:$0xff]
  %v630 = vld [vmem:[%s2 + $0x1088] sm:$0xff]
  %v631 = vld [vmem:[%s2 + $0x1090] sm:$0xff]
  %v632 = vld [vmem:[%s2 + $0x1098] sm:$0xff]
  %v633 = vld [vmem:[%s2 + $0x10a0] sm:$0xff]
  %v634 = vld [vmem:[%s2 + $0x10a8] sm:$0xff]
  %v635 = vld [vmem:[%s2 + $0x10b0] sm:$0xff]
  %v636 = vld [vmem:[%s2 + $0x10b8] sm:$0xff]
  %v637 = vld [vmem:[%s2 + $0x10c0] sm:$0xff]
  %v638 = vld [vmem:[%s2 + $0x10c8] sm:$0xff]
  %v639 = vld [vmem:[%s2 + $0x10d0] sm:$0xff]
  %v640 = vld [vmem:[%s2 + $0x10d8] sm:$0xff]
  %v641 = vld [vmem:[%s2 + $0x10e0] sm:$0xff]
  %v642 = vld [vmem:[%s2 + $0x10e8] sm:$0xff]
  %v643 = vld [vmem:[%s2 + $0x10f0] sm:$0xff]
  %v644 = vld [vmem:[%s2 + $0x10f8] sm:$0xff]
  %v645 = vld [vmem:[%s2 + $0x1100] sm:$0xff]
  %v646 = vld [vmem:[%s2 + $0x1108] sm:$0xff]
  %v647 = vld [vmem:[%s2 + $0x1110] sm:$0xff]
  %v648 = vld [vmem:[%s2 + $0x1118] sm:$0xff]
  %v649 = vld [vmem:[%s2 + $0x1120] sm:$0xff]
  %v650 = vld [vmem:[%s2 + $0x1128] sm:$0xff]
  %v651 = vld [vmem:[%s2 + $0x1130] sm:$0xff]
  %v652 = vld [vmem:[%s2 + $0x1138] sm:$0xff]
  %v653 = vld [vmem:[%s2 + $0x1140] sm:$0xff]
  %v654 = vld [vmem:[%s2 + $0x1148] sm:$0xff]
  %v655 = vld [vmem:[%s2 + $0x1150] sm:$0xff]
  %v656 = vld [vmem:[%s2 + $0x1158] sm:$0xff]
  %v657 = vld [vmem:[%s2 + $0x1160] sm:$0xff]
  %v658 = vld [vmem:[%s2 + $0x1168] sm:$0xff]
  %v659 = vld [vmem:[%s2 + $0x1170] sm:$0xff]
  %v660 = vld [vmem:[%s2 + $0x1178] sm:$0xff]
  %v661 = vld [vmem:[%s2 + $0x1180] sm:$0xff]
  %v662 = vld [vmem:[%s2 + $0x1188] sm:$0xff]
  %v663 = vld [vmem:[%s2 + $0x1190] sm:$0xff]
  %v664 = vld [vmem:[%s2 + $0x1198] sm:$0xff]
  %v665 = vld [vmem:[%s2 + $0x11a0] sm:$0xff]
  %v666 = vld [vmem:[%s2 + $0x11a8] sm:$0xff]
  %v667 = vld [vmem:[%s2 + $0x11b0] sm:$0xff]
  %v668 = vld [vmem:[%s2 + $0x11b8] sm:$0xff]
  %v669 = vld [vmem:[%s2 + $0x11c0] sm:$0xff]
  %v670 = vld [vmem:[%s2 + $0x11c8] sm:$0xff]
  %v671 = vld [vmem:[%s2 + $0x11d0] sm:$0xff]
  %v672 = vld [vmem:[%s2 + $0x11d8] sm:$0xff]
  %v673 = vld [vmem:[%s2 + $0x11e0] sm:$0xff]
  %v674 = vld [vmem:[%s2 + $0x11e8] sm:$0xff]
  %v675 = vld [vmem:[%s2 + $0x11f0] sm:$0xff]
  %v676 = vld [vmem:[%s2 + $0x11f8] sm:$0xff]
  %v1253 = vunpack.c.l.b16 %v101
  %v1254 = vunpack.c.h.b16 %v101
  %v1255 = vunpack.c.l.b16 %v102
  %v1256 = vunpack.c.h.b16 %v102
  %v1257 = vunpack.c.l.b16 %v103
  %v1258 = vunpack.c.h.b16 %v103
  %v1259 = vunpack.c.l.b16 %v104
  %v1260 = vunpack.c.h.b16 %v104
  %v1261 = vunpack.c.l.b16 %v105
  %v1262 = vunpack.c.h.b16 %v105
  %v1263 = vunpack.c.l.b16 %v106
  %v1264 = vunpack.c.h.b16 %v106
  %v1265 = vunpack.c.l.b16 %v107
  %v1266 = vunpack.c.h.b16 %v107
  %v1267 = vunpack.c.l.b16 %v108
  %v1268 = vunpack.c.h.b16 %v108
  %v1269 = vunpack.c.l.b16 %v109
  %v1270 = vunpack.c.h.b16 %v109
  %v1271 = vunpack.c.l.b16 %v110
  %v1272 = vunpack.c.h.b16 %v110
  %v1273 = vunpack.c.l.b16 %v111
  %v1274 = vunpack.c.h.b16 %v111
  %v1275 = vunpack.c.l.b16 %v112
  %v1276 = vunpack.c.h.b16 %v112
  %v1277 = vunpack.c.l.b16 %v113
  %v1278 = vunpack.c.h.b16 %v113
  %v1279 = vunpack.c.l.b16 %v114
  %v1280 = vunpack.c.h.b16 %v114
  %v1281 = vunpack.c.l.b16 %v115
  %v1282 = vunpack.c.h.b16 %v115
  %v1283 = vunpack.c.l.b16 %v116
  %v1284 = vunpack.c.h.b16 %v116
  %v1285 = vunpack.c.l.b16 %v117
  %v1286 = vunpack.c.h.b16 %v117
  %v1287 = vunpack.c.l.b16 %v118
  %v1288 = vunpack.c.h.b16 %v118
  %v1289 = vunpack.c.l.b16 %v119
  %v1290 = vunpack.c.h.b16 %v119
  %v1291 = vunpack.c.l.b16 %v120
  %v1292 = vunpack.c.h.b16 %v120
  %v1293 = vunpack.c.l.b16 %v121
  %v1294 = vunpack.c.h.b16 %v121
  %v1295 = vunpack.c.l.b16 %v122
  %v1296 = vunpack.c.h.b16 %v122
  %v1297 = vunpack.c.l.b16 %v123
  %v1298 = vunpack.c.h.b16 %v123
  %v1299 = vunpack.c.l.b16 %v124
  %v1300 = vunpack.c.h.b16 %v124
  %v1301 = vunpack.c.l.b16 %v125
  %v1302 = vunpack.c.h.b16 %v125
  %v1303 = vunpack.c.l.b16 %v126
  %v1304 = vunpack.c.h.b16 %v126
  %v1305 = vunpack.c.l.b16 %v127
  %v1306 = vunpack.c.h.b16 %v127
  %v1307 = vunpack.c.l.b16 %v128
  %v1308 = vunpack.c.h.b16 %v128
  %v1309 = vunpack.c.l.b16 %v129
  %v1310 = vunpack.c.h.b16 %v129
  %v1311 = vunpack.c.l.b16 %v130
  %v1312 = vunpack.c.h.b16 %v130
  %v1313 = vunpack.c.l.b16 %v131
  %v1314 = vunpack.c.h.b16 %v131
  %v1315 = vunpack.c.l.b16 %v132
  %v1316 = vunpack.c.h.b16 %v132
  %v1317 = vunpack.c.l.b16 %v133
  %v1318 = vunpack.c.h.b16 %v133
  %v1319 = vunpack.c.l.b16 %v134
  %v1320 = vunpack.c.h.b16 %v134
  %v1321 = vunpack.c.l.b16 %v135
  %v1322 = vunpack.c.h.b16 %v135
  %v1323 = vunpack.c.l.b16 %v136
  %v1324 = vunpack.c.h.b16 %v136
  %v1325 = vunpack.c.l.b16 %v137
  %v1326 = vunpack.c.h.b16 %v137
  %v1327 = vunpack.c.l.b16 %v138
  %v1328 = vunpack.c.h.b16 %v138
  %v1329 = vunpack.c.l.b16 %v139
  %v1330 = vunpack.c.h.b16 %v139
  %v1331 = vunpack.c.l.b16 %v140
  %v1332 = vunpack.c.h.b16 %v140
  %v1333 = vunpack.c.l.b16 %v141
  %v1334 = vunpack.c.h.b16 %v141
  %v1335 = vunpack.c.l.b16 %v142
  %v1336 = vunpack.c.h.b16 %v142
  %v1337 = vunpack.c.l.b16 %v143
  %v1338 = vunpack.c.h.b16 %v143
  %v1339 = vunpack.c.l.b16 %v144
  %v1340 = vunpack.c.h.b16 %v144
  %v1341 = vunpack.c.l.b16 %v145
  %v1342 = vunpack.c.h.b16 %v145
  %v1343 = vunpack.c.l.b16 %v146
  %v1344 = vunpack.c.h.b16 %v146
  %v1345 = vunpack.c.l.b16 %v147
  %v1346 = vunpack.c.h.b16 %v147
  %v1347 = vunpack.c.l.b16 %v148
  %v1348 = vunpack.c.h.b16 %v148
  %v1349 = vunpack.c.l.b16 %v149
  %v1350 = vunpack.c.h.b16 %v149
  %v1351 = vunpack.c.l.b16 %v150
  %v1352 = vunpack.c.h.b16 %v150
  %v1353 = vunpack.c.l.b16 %v151
  %v1354 = vunpack.c.h.b16 %v151
  %v1355 = vunpack.c.l.b16 %v152
  %v1356 = vunpack.c.h.b16 %v152
  %v1357 = vunpack.c.l.b16 %v153
  %v1358 = vunpack.c.h.b16 %v153
  %v1359 = vunpack.c.l.b16 %v154
  %v1360 = vunpack.c.h.b16 %v154
  %v1361 = vunpack.c.l.b16 %v155
  %v1362 = vunpack.c.h.b16 %v155
  %v1363 = vunpack.c.l.b16 %v156
  %v1364 = vunpack.c.h.b16 %v156
  %v1365 = vunpack.c.l.b16 %v157
  %v1366 = vunpack.c.h.b16 %v157
  %v1367 = vunpack.c.l.b16 %v158
  %v1368 = vunpack.c.h.b16 %v158
  %v1369 = vunpack.c.l.b16 %v159
  %v1370 = vunpack.c.h.b16 %v159
  %v1371 = vunpack.c.l.b16 %v160
  %v1372 = vunpack.c.h.b16 %v160
  %v1373 = vunpack.c.l.b16 %v161
  %v1374 = vunpack.c.h.b16 %v161
  %v1375 = vunpack.c.l.b16 %v162
  %v1376 = vunpack.c.h.b16 %v162
  %v1377 = vunpack.c.l.b16 %v163
  %v1378 = vunpack.c.h.b16 %v163
  %v1379 = vunpack.c.l.b16 %v164
  %v1380 = vunpack.c.h.b16 %v164
  %v1381 = vunpack.c.l.b16 %v165
  %v1382 = vunpack.c.h.b16 %v165
  %v1383 = vunpack.c.l.b16 %v166
  %v1384 = vunpack.c.h.b16 %v166
  %v1385 = vunpack.c.l.b16 %v167
  %v1386 = vunpack.c.h.b16 %v167
  %v1387 = vunpack.c.l.b16 %v168
  %v1388 = vunpack.c.h.b16 %v168
  %v1389 = vunpack.c.l.b16 %v169
  %v1390 = vunpack.c.h.b16 %v169
  %v1391 = vunpack.c.l.b16 %v170
  %v1392 = vunpack.c.h.b16 %v170
  %v1393 = vunpack.c.l.b16 %v171
  %v1394 = vunpack.c.h.b16 %v171
  %v1395 = vunpack.c.l.b16 %v172
  %v1396 = vunpack.c.h.b16 %v172
  %v1397 = vunpack.c.l.b16 %v173
  %v1398 = vunpack.c.h.b16 %v173
  %v1399 = vunpack.c.l.b16 %v174
  %v1400 = vunpack.c.h.b16 %v174
  %v1401 = vunpack.c.l.b16 %v175
  %v1402 = vunpack.c.h.b16 %v175
  %v1403 = vunpack.c.l.b16 %v176
  %v1404 = vunpack.c.h.b16 %v176
  %v1405 = vunpack.c.l.b16 %v177
  %v1406 = vunpack.c.h.b16 %v177
  %v1407 = vunpack.c.l.b16 %v178
  %v1408 = vunpack.c.h.b16 %v178
  %v1409 = vunpack.c.l.b16 %v179
  %v1410 = vunpack.c.h.b16 %v179
  %v1411 = vunpack.c.l.b16 %v180
  %v1412 = vunpack.c.h.b16 %v180
  %v1413 = vunpack.c.l.b16 %v181
  %v1414 = vunpack.c.h.b16 %v181
  %v1415 = vunpack.c.l.b16 %v182
  %v1416 = vunpack.c.h.b16 %v182
  %v1417 = vunpack.c.l.b16 %v183
  %v1418 = vunpack.c.h.b16 %v183
  %v1419 = vunpack.c.l.b16 %v184
  %v1420 = vunpack.c.h.b16 %v184
  %v1421 = vunpack.c.l.b16 %v185
  %v1422 = vunpack.c.h.b16 %v185
  %v1423 = vunpack.c.l.b16 %v186
  %v1424 = vunpack.c.h.b16 %v186
  %v1425 = vunpack.c.l.b16 %v187
  %v1426 = vunpack.c.h.b16 %v187
  %v1427 = vunpack.c.l.b16 %v188
  %v1428 = vunpack.c.h.b16 %v188
  %v1429 = vunpack.c.l.b16 %v189
  %v1430 = vunpack.c.h.b16 %v189
  %v1431 = vunpack.c.l.b16 %v190
  %v1432 = vunpack.c.h.b16 %v190
  %v1433 = vunpack.c.l.b16 %v191
  %v1434 = vunpack.c.h.b16 %v191
  %v1435 = vunpack.c.l.b16 %v192
  %v1436 = vunpack.c.h.b16 %v192
  %v1437 = vunpack.c.l.b16 %v193
  %v1438 = vunpack.c.h.b16 %v193
  %v1439 = vunpack.c.l.b16 %v194
  %v1440 = vunpack.c.h.b16 %v194
  %v1441 = vunpack.c.l.b16 %v195
  %v1442 = vunpack.c.h.b16 %v195
  %v1443 = vunpack.c.l.b16 %v196
  %v1444 = vunpack.c.h.b16 %v196
  %v1445 = vunpack.c.l.b16 %v197
  %v1446 = vunpack.c.h.b16 %v197
  %v1447 = vunpack.c.l.b16 %v198
  %v1448 = vunpack.c.h.b16 %v198
  %v1449 = vunpack.c.l.b16 %v199
  %v1450 = vunpack.c.h.b16 %v199
  %v1451 = vunpack.c.l.b16 %v200
  %v1452 = vunpack.c.h.b16 %v200
  %v1453 = vunpack.c.l.b16 %v201
  %v1454 = vunpack.c.h.b16 %v201
  %v1455 = vunpack.c.l.b16 %v202
  %v1456 = vunpack.c.h.b16 %v202
  %v1457 = vunpack.c.l.b16 %v203
  %v1458 = vunpack.c.h.b16 %v203
  %v1459 = vunpack.c.l.b16 %v204
  %v1460 = vunpack.c.h.b16 %v204
  %v1461 = vunpack.c.l.b16 %v205
  %v1462 = vunpack.c.h.b16 %v205
  %v1463 = vunpack.c.l.b16 %v206
  %v1464 = vunpack.c.h.b16 %v206
  %v1465 = vunpack.c.l.b16 %v207
  %v1466 = vunpack.c.h.b16 %v207
  %v1467 = vunpack.c.l.b16 %v208
  %v1468 = vunpack.c.h.b16 %v208
  %v1469 = vunpack.c.l.b16 %v209
  %v1470 = vunpack.c.h.b16 %v209
  %v1471 = vunpack.c.l.b16 %v210
  %v1472 = vunpack.c.h.b16 %v210
  %v1473 = vunpack.c.l.b16 %v211
  %v1474 = vunpack.c.h.b16 %v211
  %v1475 = vunpack.c.l.b16 %v212
  %v1476 = vunpack.c.h.b16 %v212
  %v1477 = vunpack.c.l.b16 %v213
  %v1478 = vunpack.c.h.b16 %v213
  %v1479 = vunpack.c.l.b16 %v214
  %v1480 = vunpack.c.h.b16 %v214
  %v1481 = vunpack.c.l.b16 %v215
  %v1482 = vunpack.c.h.b16 %v215
  %v1483 = vunpack.c.l.b16 %v216
  %v1484 = vunpack.c.h.b16 %v216
  %v1485 = vunpack.c.l.b16 %v217
  %v1486 = vunpack.c.h.b16 %v217
  %v1487 = vunpack.c.l.b16 %v218
  %v1488 = vunpack.c.h.b16 %v218
  %v1489 = vunpack.c.l.b16 %v219
  %v1490 = vunpack.c.h.b16 %v219
  %v1491 = vunpack.c.l.b16 %v220
  %v1492 = vunpack.c.h.b16 %v220
  %v1493 = vunpack.c.l.b16 %v221
  %v1494 = vunpack.c.h.b16 %v221
  %v1495 = vunpack.c.l.b16 %v222
  %v1496 = vunpack.c.h.b16 %v222
  %v1497 = vunpack.c.l.b16 %v223
  %v1498 = vunpack.c.h.b16 %v223
  %v1499 = vunpack.c.l.b16 %v224
  %v1500 = vunpack.c.h.b16 %v224
  %v1501 = vunpack.c.l.b16 %v225
  %v1502 = vunpack.c.h.b16 %v225
  %v1503 = vunpack.c.l.b16 %v226
  %v1504 = vunpack.c.h.b16 %v226
  %v1505 = vunpack.c.l.b16 %v227
  %v1506 = vunpack.c.h.b16 %v227
  %v1507 = vunpack.c.l.b16 %v228
  %v1508 = vunpack.c.h.b16 %v228
  %v1509 = vunpack.c.l.b16 %v229
  %v1510 = vunpack.c.h.b16 %v229
  %v1511 = vunpack.c.l.b16 %v230
  %v1512 = vunpack.c.h.b16 %v230
  %v1513 = vunpack.c.l.b16 %v231
  %v1514 = vunpack.c.h.b16 %v231
  %v1515 = vunpack.c.l.b16 %v232
  %v1516 = vunpack.c.h.b16 %v232
  %v1517 = vunpack.c.l.b16 %v233
  %v1518 = vunpack.c.h.b16 %v233
  %v1519 = vunpack.c.l.b16 %v234
  %v1520 = vunpack.c.h.b16 %v234
  %v1521 = vunpack.c.l.b16 %v235
  %v1522 = vunpack.c.h.b16 %v235
  %v1523 = vunpack.c.l.b16 %v236
  %v1524 = vunpack.c.h.b16 %v236
  %v1525 = vunpack.c.l.b16 %v237
  %v1526 = vunpack.c.h.b16 %v237
  %v1527 = vunpack.c.l.b16 %v238
  %v1528 = vunpack.c.h.b16 %v238
  %v1529 = vunpack.c.l.b16 %v239
  %v1530 = vunpack.c.h.b16 %v239
  %v1531 = vunpack.c.l.b16 %v240
  %v1532 = vunpack.c.h.b16 %v240
  %v1533 = vunpack.c.l.b16 %v241
  %v1534 = vunpack.c.h.b16 %v241
  %v1535 = vunpack.c.l.b16 %v242
  %v1536 = vunpack.c.h.b16 %v242
  %v1537 = vunpack.c.l.b16 %v243
  %v1538 = vunpack.c.h.b16 %v243
  %v1539 = vunpack.c.l.b16 %v244
  %v1540 = vunpack.c.h.b16 %v244
  %v1541 = vunpack.c.l.b16 %v245
  %v1542 = vunpack.c.h.b16 %v245
  %v1543 = vunpack.c.l.b16 %v246
  %v1544 = vunpack.c.h.b16 %v246
  %v1545 = vunpack.c.l.b16 %v247
  %v1546 = vunpack.c.h.b16 %v247
  %v1547 = vunpack.c.l.b16 %v248
  %v1548 = vunpack.c.h.b16 %v248
  %v1549 = vunpack.c.l.b16 %v249
  %v1550 = vunpack.c.h.b16 %v249
  %v1551 = vunpack.c.l.b16 %v250
  %v1552 = vunpack.c.h.b16 %v250
  %v1553 = vunpack.c.l.b16 %v251
  %v1554 = vunpack.c.h.b16 %v251
  %v1555 = vunpack.c.l.b16 %v252
  %v1556 = vunpack.c.h.b16 %v252
  %v1557 = vunpack.c.l.b16 %v253
  %v1558 = vunpack.c.h.b16 %v253
  %v1559 = vunpack.c.l.b16 %v254
  %v1560 = vunpack.c.h.b16 %v254
  %v1561 = vunpack.c.l.b16 %v255
  %v1562 = vunpack.c.h.b16 %v255
  %v1563 = vunpack.c.l.b16 %v256
  %v1564 = vunpack.c.h.b16 %v256
  %v1565 = vunpack.c.l.b16 %v257
  %v1566 = vunpack.c.h.b16 %v257
  %v1567 = vunpack.c.l.b16 %v258
  %v1568 = vunpack.c.h.b16 %v258
  %v1569 = vunpack.c.l.b16 %v259
  %v1570 = vunpack.c.h.b16 %v259
  %v1571 = vunpack.c.l.b16 %v260
  %v1572 = vunpack.c.h.b16 %v260
  %v1573 = vunpack.c.l.b16 %v261
  %v1574 = vunpack.c.h.b16 %v261
  %v1575 = vunpack.c.l.b16 %v262
  %v1576 = vunpack.c.h.b16 %v262
  %v1577 = vunpack.c.l.b16 %v263
  %v1578 = vunpack.c.h.b16 %v263
  %v1579 = vunpack.c.l.b16 %v264
  %v1580 = vunpack.c.h.b16 %v264
  %v1581 = vunpack.c.l.b16 %v265
  %v1582 = vunpack.c.h.b16 %v265
  %v1583 = vunpack.c.l.b16 %v266
  %v1584 = vunpack.c.h.b16 %v266
  %v1585 = vunpack.c.l.b16 %v267
  %v1586 = vunpack.c.h.b16 %v267
  %v1587 = vunpack.c.l.b16 %v268
  %v1588 = vunpack.c.h.b16 %v268
  %v1589 = vunpack.c.l.b16 %v269
  %v1590 = vunpack.c.h.b16 %v269
  %v1591 = vunpack.c.l.b16 %v270
  %v1592 = vunpack.c.h.b16 %v270
  %v1593 = vunpack.c.l.b16 %v271
  %v1594 = vunpack.c.h.b16 %v271
  %v1595 = vunpack.c.l.b16 %v272
  %v1596 = vunpack.c.h.b16 %v272
  %v1597 = vunpack.c.l.b16 %v273
  %v1598 = vunpack.c.h.b16 %v273
  %v1599 = vunpack.c.l.b16 %v274
  %v1600 = vunpack.c.h.b16 %v274
  %v1601 = vunpack.c.l.b16 %v275
  %v1602 = vunpack.c.h.b16 %v275
  %v1603 = vunpack.c.l.b16 %v276
  %v1604 = vunpack.c.h.b16 %v276
  %v1605 = vunpack.c.l.b16 %v277
  %v1606 = vunpack.c.h.b16 %v277
  %v1607 = vunpack.c.l.b16 %v278
  %v1608 = vunpack.c.h.b16 %v278
  %v1609 = vunpack.c.l.b16 %v279
  %v1610 = vunpack.c.h.b16 %v279
  %v1611 = vunpack.c.l.b16 %v280
  %v1612 = vunpack.c.h.b16 %v280
  %v1613 = vunpack.c.l.b16 %v281
  %v1614 = vunpack.c.h.b16 %v281
  %v1615 = vunpack.c.l.b16 %v282
  %v1616 = vunpack.c.h.b16 %v282
  %v1617 = vunpack.c.l.b16 %v283
  %v1618 = vunpack.c.h.b16 %v283
  %v1619 = vunpack.c.l.b16 %v284
  %v1620 = vunpack.c.h.b16 %v284
  %v1621 = vunpack.c.l.b16 %v285
  %v1622 = vunpack.c.h.b16 %v285
  %v1623 = vunpack.c.l.b16 %v286
  %v1624 = vunpack.c.h.b16 %v286
  %v1625 = vunpack.c.l.b16 %v287
  %v1626 = vunpack.c.h.b16 %v287
  %v1627 = vunpack.c.l.b16 %v288
  %v1628 = vunpack.c.h.b16 %v288
  %v1629 = vunpack.c.l.b16 %v289
  %v1630 = vunpack.c.h.b16 %v289
  %v1631 = vunpack.c.l.b16 %v290
  %v1632 = vunpack.c.h.b16 %v290
  %v1633 = vunpack.c.l.b16 %v291
  %v1634 = vunpack.c.h.b16 %v291
  %v1635 = vunpack.c.l.b16 %v292
  %v1636 = vunpack.c.h.b16 %v292
  %v1637 = vunpack.c.l.b16 %v293
  %v1638 = vunpack.c.h.b16 %v293
  %v1639 = vunpack.c.l.b16 %v294
  %v1640 = vunpack.c.h.b16 %v294
  %v1641 = vunpack.c.l.b16 %v295
  %v1642 = vunpack.c.h.b16 %v295
  %v1643 = vunpack.c.l.b16 %v296
  %v1644 = vunpack.c.h.b16 %v296
  %v1645 = vunpack.c.l.b16 %v297
  %v1646 = vunpack.c.h.b16 %v297
  %v1647 = vunpack.c.l.b16 %v298
  %v1648 = vunpack.c.h.b16 %v298
  %v1649 = vunpack.c.l.b16 %v299
  %v1650 = vunpack.c.h.b16 %v299
  %v1651 = vunpack.c.l.b16 %v300
  %v1652 = vunpack.c.h.b16 %v300
  %v1653 = vunpack.c.l.b16 %v301
  %v1654 = vunpack.c.h.b16 %v301
  %v1655 = vunpack.c.l.b16 %v302
  %v1656 = vunpack.c.h.b16 %v302
  %v1657 = vunpack.c.l.b16 %v303
  %v1658 = vunpack.c.h.b16 %v303
  %v1659 = vunpack.c.l.b16 %v304
  %v1660 = vunpack.c.h.b16 %v304
  %v1661 = vunpack.c.l.b16 %v305
  %v1662 = vunpack.c.h.b16 %v305
  %v1663 = vunpack.c.l.b16 %v306
  %v1664 = vunpack.c.h.b16 %v306
  %v1665 = vunpack.c.l.b16 %v307
  %v1666 = vunpack.c.h.b16 %v307
  %v1667 = vunpack.c.l.b16 %v308
  %v1668 = vunpack.c.h.b16 %v308
  %v1669 = vunpack.c.l.b16 %v309
  %v1670 = vunpack.c.h.b16 %v309
  %v1671 = vunpack.c.l.b16 %v310
  %v1672 = vunpack.c.h.b16 %v310
  %v1673 = vunpack.c.l.b16 %v311
  %v1674 = vunpack.c.h.b16 %v311
  %v1675 = vunpack.c.l.b16 %v312
  %v1676 = vunpack.c.h.b16 %v312
  %v1677 = vunpack.c.l.b16 %v313
  %v1678 = vunpack.c.h.b16 %v313
  %v1679 = vunpack.c.l.b16 %v314
  %v1680 = vunpack.c.h.b16 %v314
  %v1681 = vunpack.c.l.b16 %v315
  %v1682 = vunpack.c.h.b16 %v315
  %v1683 = vunpack.c.l.b16 %v316
  %v1684 = vunpack.c.h.b16 %v316
  %v1685 = vunpack.c.l.b16 %v317
  %v1686 = vunpack.c.h.b16 %v317
  %v1687 = vunpack.c.l.b16 %v318
  %v1688 = vunpack.c.h.b16 %v318
  %v1689 = vunpack.c.l.b16 %v319
  %v1690 = vunpack.c.h.b16 %v319
  %v1691 = vunpack.c.l.b16 %v320
  %v1692 = vunpack.c.h.b16 %v320
  %v1693 = vunpack.c.l.b16 %v321
  %v1694 = vunpack.c.h.b16 %v321
  %v1695 = vunpack.c.l.b16 %v322
  %v1696 = vunpack.c.h.b16 %v322
  %v1697 = vunpack.c.l.b16 %v323
  %v1698 = vunpack.c.h.b16 %v323
  %v1699 = vunpack.c.l.b16 %v324
  %v1700 = vunpack.c.h.b16 %v324
  %v1701 = vunpack.c.l.b16 %v325
  %v1702 = vunpack.c.h.b16 %v325
  %v1703 = vunpack.c.l.b16 %v326
  %v1704 = vunpack.c.h.b16 %v326
  %v1705 = vunpack.c.l.b16 %v327
  %v1706 = vunpack.c.h.b16 %v327
  %v1707 = vunpack.c.l.b16 %v328
  %v1708 = vunpack.c.h.b16 %v328
  %v1709 = vunpack.c.l.b16 %v329
  %v1710 = vunpack.c.h.b16 %v329
  %v1711 = vunpack.c.l.b16 %v330
  %v1712 = vunpack.c.h.b16 %v330
  %v1713 = vunpack.c.l.b16 %v331
  %v1714 = vunpack.c.h.b16 %v331
  %v1715 = vunpack.c.l.b16 %v332
  %v1716 = vunpack.c.h.b16 %v332
  %v1717 = vunpack.c.l.b16 %v333
  %v1718 = vunpack.c.h.b16 %v333
  %v1719 = vunpack.c.l.b16 %v334
  %v1720 = vunpack.c.h.b16 %v334
  %v1721 = vunpack.c.l.b16 %v335
  %v1722 = vunpack.c.h.b16 %v335
  %v1723 = vunpack.c.l.b16 %v336
  %v1724 = vunpack.c.h.b16 %v336
  %v1725 = vunpack.c.l.b16 %v337
  %v1726 = vunpack.c.h.b16 %v337
  %v1727 = vunpack.c.l.b16 %v338
  %v1728 = vunpack.c.h.b16 %v338
  %v1729 = vunpack.c.l.b16 %v339
  %v1730 = vunpack.c.h.b16 %v339
  %v1731 = vunpack.c.l.b16 %v340
  %v1732 = vunpack.c.h.b16 %v340
  %v1733 = vunpack.c.l.b16 %v341
  %v1734 = vunpack.c.h.b16 %v341
  %v1735 = vunpack.c.l.b16 %v342
  %v1736 = vunpack.c.h.b16 %v342
  %v1737 = vunpack.c.l.b16 %v343
  %v1738 = vunpack.c.h.b16 %v343
  %v1739 = vunpack.c.l.b16 %v344
  %v1740 = vunpack.c.h.b16 %v344
  %v1741 = vunpack.c.l.b16 %v345
  %v1742 = vunpack.c.h.b16 %v345
  %v1743 = vunpack.c.l.b16 %v346
  %v1744 = vunpack.c.h.b16 %v346
  %v1745 = vunpack.c.l.b16 %v347
  %v1746 = vunpack.c.h.b16 %v347
  %v1747 = vunpack.c.l.b16 %v348
  %v1748 = vunpack.c.h.b16 %v348
  %v1749 = vunpack.c.l.b16 %v349
  %v1750 = vunpack.c.h.b16 %v349
  %v1751 = vunpack.c.l.b16 %v350
  %v1752 = vunpack.c.h.b16 %v350
  %v1753 = vunpack.c.l.b16 %v351
  %v1754 = vunpack.c.h.b16 %v351
  %v1755 = vunpack.c.l.b16 %v352
  %v1756 = vunpack.c.h.b16 %v352
  %v1757 = vunpack.c.l.b16 %v353
  %v1758 = vunpack.c.h.b16 %v353
  %v1759 = vunpack.c.l.b16 %v354
  %v1760 = vunpack.c.h.b16 %v354
  %v1761 = vunpack.c.l.b16 %v355
  %v1762 = vunpack.c.h.b16 %v355
  %v1763 = vunpack.c.l.b16 %v356
  %v1764 = vunpack.c.h.b16 %v356
  %v1765 = vunpack.c.l.b16 %v357
  %v1766 = vunpack.c.h.b16 %v357
  %v1767 = vunpack.c.l.b16 %v358
  %v1768 = vunpack.c.h.b16 %v358
  %v1769 = vunpack.c.l.b16 %v359
  %v1770 = vunpack.c.h.b16 %v359
  %v1771 = vunpack.c.l.b16 %v360
  %v1772 = vunpack.c.h.b16 %v360
  %v1773 = vunpack.c.l.b16 %v361
  %v1774 = vunpack.c.h.b16 %v361
  %v1775 = vunpack.c.l.b16 %v362
  %v1776 = vunpack.c.h.b16 %v362
  %v1777 = vunpack.c.l.b16 %v363
  %v1778 = vunpack.c.h.b16 %v363
  %v1779 = vunpack.c.l.b16 %v364
  %v1780 = vunpack.c.h.b16 %v364
  %v1781 = vunpack.c.l.b16 %v365
  %v1782 = vunpack.c.h.b16 %v365
  %v1783 = vunpack.c.l.b16 %v366
  %v1784 = vunpack.c.h.b16 %v366
  %v1785 = vunpack.c.l.b16 %v367
  %v1786 = vunpack.c.h.b16 %v367
  %v1787 = vunpack.c.l.b16 %v368
  %v1788 = vunpack.c.h.b16 %v368
  %v1789 = vunpack.c.l.b16 %v369
  %v1790 = vunpack.c.h.b16 %v369
  %v1791 = vunpack.c.l.b16 %v370
  %v1792 = vunpack.c.h.b16 %v370
  %v1793 = vunpack.c.l.b16 %v371
  %v1794 = vunpack.c.h.b16 %v371
  %v1795 = vunpack.c.l.b16 %v372
  %v1796 = vunpack.c.h.b16 %v372
  %v1797 = vunpack.c.l.b16 %v373
  %v1798 = vunpack.c.h.b16 %v373
  %v1799 = vunpack.c.l.b16 %v374
  %v1800 = vunpack.c.h.b16 %v374
  %v1801 = vunpack.c.l.b16 %v375
  %v1802 = vunpack.c.h.b16 %v375
  %v1803 = vunpack.c.l.b16 %v376
  %v1804 = vunpack.c.h.b16 %v376
  %v1805 = vunpack.c.l.b16 %v377
  %v1806 = vunpack.c.h.b16 %v377
  %v1807 = vunpack.c.l.b16 %v378
  %v1808 = vunpack.c.h.b16 %v378
  %v1809 = vunpack.c.l.b16 %v379
  %v1810 = vunpack.c.h.b16 %v379
  %v1811 = vunpack.c.l.b16 %v380
  %v1812 = vunpack.c.h.b16 %v380
  %v1813 = vunpack.c.l.b16 %v381
  %v1814 = vunpack.c.h.b16 %v381
  %v1815 = vunpack.c.l.b16 %v382
  %v1816 = vunpack.c.h.b16 %v382
  %v1817 = vunpack.c.l.b16 %v383
  %v1818 = vunpack.c.h.b16 %v383
  %v1819 = vunpack.c.l.b16 %v384
  %v1820 = vunpack.c.h.b16 %v384
  %v1821 = vunpack.c.l.b16 %v385
  %v1822 = vunpack.c.h.b16 %v385
  %v1823 = vunpack.c.l.b16 %v386
  %v1824 = vunpack.c.h.b16 %v386
  %v1825 = vunpack.c.l.b16 %v387
  %v1826 = vunpack.c.h.b16 %v387
  %v1827 = vunpack.c.l.b16 %v388
  %v1828 = vunpack.c.h.b16 %v388
  %v1829 = vunpack.c.l.b16 %v389
  %v1830 = vunpack.c.h.b16 %v389
  %v1831 = vunpack.c.l.b16 %v390
  %v1832 = vunpack.c.h.b16 %v390
  %v1833 = vunpack.c.l.b16 %v391
  %v1834 = vunpack.c.h.b16 %v391
  %v1835 = vunpack.c.l.b16 %v392
  %v1836 = vunpack.c.h.b16 %v392
  %v1837 = vunpack.c.l.b16 %v393
  %v1838 = vunpack.c.h.b16 %v393
  %v1839 = vunpack.c.l.b16 %v394
  %v1840 = vunpack.c.h.b16 %v394
  %v1841 = vunpack.c.l.b16 %v395
  %v1842 = vunpack.c.h.b16 %v395
  %v1843 = vunpack.c.l.b16 %v396
  %v1844 = vunpack.c.h.b16 %v396
  %v1845 = vunpack.c.l.b16 %v397
  %v1846 = vunpack.c.h.b16 %v397
  %v1847 = vunpack.c.l.b16 %v398
  %v1848 = vunpack.c.h.b16 %v398
  %v1849 = vunpack.c.l.b16 %v399
  %v1850 = vunpack.c.h.b16 %v399
  %v1851 = vunpack.c.l.b16 %v400
  %v1852 = vunpack.c.h.b16 %v400
  %v1853 = vunpack.c.l.b16 %v401
  %v1854 = vunpack.c.h.b16 %v401
  %v1855 = vunpack.c.l.b16 %v402
  %v1856 = vunpack.c.h.b16 %v402
  %v1857 = vunpack.c.l.b16 %v403
  %v1858 = vunpack.c.h.b16 %v403
  %v1859 = vunpack.c.l.b16 %v404
  %v1860 = vunpack.c.h.b16 %v404
  %v1861 = vunpack.c.l.b16 %v405
  %v1862 = vunpack.c.h.b16 %v405
  %v1863 = vunpack.c.l.b16 %v406
  %v1864 = vunpack.c.h.b16 %v406
  %v1865 = vunpack.c.l.b16 %v407
  %v1866 = vunpack.c.h.b16 %v407
  %v1867 = vunpack.c.l.b16 %v408
  %v1868 = vunpack.c.h.b16 %v408
  %v1869 = vunpack.c.l.b16 %v409
  %v1870 = vunpack.c.h.b16 %v409
  %v1871 = vunpack.c.l.b16 %v410
  %v1872 = vunpack.c.h.b16 %v410
  %v1873 = vunpack.c.l.b16 %v411
  %v1874 = vunpack.c.h.b16 %v411
  %v1875 = vunpack.c.l.b16 %v412
  %v1876 = vunpack.c.h.b16 %v412
  %v1877 = vunpack.c.l.b16 %v413
  %v1878 = vunpack.c.h.b16 %v413
  %v1879 = vunpack.c.l.b16 %v414
  %v1880 = vunpack.c.h.b16 %v414
  %v1881 = vunpack.c.l.b16 %v415
  %v1882 = vunpack.c.h.b16 %v415
  %v1883 = vunpack.c.l.b16 %v416
  %v1884 = vunpack.c.h.b16 %v416
  %v1885 = vunpack.c.l.b16 %v417
  %v1886 = vunpack.c.h.b16 %v417
  %v1887 = vunpack.c.l.b16 %v418
  %v1888 = vunpack.c.h.b16 %v418
  %v1889 = vunpack.c.l.b16 %v419
  %v1890 = vunpack.c.h.b16 %v419
  %v1891 = vunpack.c.l.b16 %v420
  %v1892 = vunpack.c.h.b16 %v420
  %v1893 = vunpack.c.l.b16 %v421
  %v1894 = vunpack.c.h.b16 %v421
  %v1895 = vunpack.c.l.b16 %v422
  %v1896 = vunpack.c.h.b16 %v422
  %v1897 = vunpack.c.l.b16 %v423
  %v1898 = vunpack.c.h.b16 %v423
  %v1899 = vunpack.c.l.b16 %v424
  %v1900 = vunpack.c.h.b16 %v424
  %v1901 = vunpack.c.l.b16 %v425
  %v1902 = vunpack.c.h.b16 %v425
  %v1903 = vunpack.c.l.b16 %v426
  %v1904 = vunpack.c.h.b16 %v426
  %v1905 = vunpack.c.l.b16 %v427
  %v1906 = vunpack.c.h.b16 %v427
  %v1907 = vunpack.c.l.b16 %v428
  %v1908 = vunpack.c.h.b16 %v428
  %v1909 = vunpack.c.l.b16 %v429
  %v1910 = vunpack.c.h.b16 %v429
  %v1911 = vunpack.c.l.b16 %v430
  %v1912 = vunpack.c.h.b16 %v430
  %v1913 = vunpack.c.l.b16 %v431
  %v1914 = vunpack.c.h.b16 %v431
  %v1915 = vunpack.c.l.b16 %v432
  %v1916 = vunpack.c.h.b16 %v432
  %v1917 = vunpack.c.l.b16 %v433
  %v1918 = vunpack.c.h.b16 %v433
  %v1919 = vunpack.c.l.b16 %v434
  %v1920 = vunpack.c.h.b16 %v434
  %v1921 = vunpack.c.l.b16 %v435
  %v1922 = vunpack.c.h.b16 %v435
  %v1923 = vunpack.c.l.b16 %v436
  %v1924 = vunpack.c.h.b16 %v436
  %v1925 = vunpack.c.l.b16 %v437
  %v1926 = vunpack.c.h.b16 %v437
  %v1927 = vunpack.c.l.b16 %v438
  %v1928 = vunpack.c.h.b16 %v438
  %v1929 = vunpack.c.l.b16 %v439
  %v1930 = vunpack.c.h.b16 %v439
  %v1931 = vunpack.c.l.b16 %v440
  %v1932 = vunpack.c.h.b16 %v440
  %v1933 = vunpack.c.l.b16 %v441
  %v1934 = vunpack.c.h.b16 %v441
  %v1935 = vunpack.c.l.b16 %v442
  %v1936 = vunpack.c.h.b16 %v442
  %v1937 = vunpack.c.l.b16 %v443
  %v1938 = vunpack.c.h.b16 %v443
  %v1939 = vunpack.c.l.b16 %v444
  %v1940 = vunpack.c.h.b16 %v444
  %v1941 = vunpack.c.l.b16 %v445
  %v1942 = vunpack.c.h.b16 %v445
  %v1943 = vunpack.c.l.b16 %v446
  %v1944 = vunpack.c.h.b16 %v446
  %v1945 = vunpack.c.l.b16 %v447
  %v1946 = vunpack.c.h.b16 %v447
  %v1947 = vunpack.c.l.b16 %v448
  %v1948 = vunpack.c.h.b16 %v448
  %v1949 = vunpack.c.l.b16 %v449
  %v1950 = vunpack.c.h.b16 %v449
  %v1951 = vunpack.c.l.b16 %v450
  %v1952 = vunpack.c.h.b16 %v450
  %v1953 = vunpack.c.l.b16 %v451
  %v1954 = vunpack.c.h.b16 %v451
  %v1955 = vunpack.c.l.b16 %v452
  %v1956 = vunpack.c.h.b16 %v452
  %v1957 = vunpack.c.l.b16 %v453
  %v1958 = vunpack.c.h.b16 %v453
  %v1959 = vunpack.c.l.b16 %v454
  %v1960 = vunpack.c.h.b16 %v454
  %v1961 = vunpack.c.l.b16 %v455
  %v1962 = vunpack.c.h.b16 %v455
  %v1963 = vunpack.c.l.b16 %v456
  %v1964 = vunpack.c.h.b16 %v456
  %v1965 = vunpack.c.l.b16 %v457
  %v1966 = vunpack.c.h.b16 %v457
  %v1967 = vunpack.c.l.b16 %v458
  %v1968 = vunpack.c.h.b16 %v458
  %v1969 = vunpack.c.l.b16 %v459
  %v1970 = vunpack.c.h.b16 %v459
  %v1971 = vunpack.c.l.b16 %v460
  %v1972 = vunpack.c.h.b16 %v460
  %v1973 = vunpack.c.l.b16 %v461
  %v1974 = vunpack.c.h.b16 %v461
  %v1975 = vunpack.c.l.b16 %v462
  %v1976 = vunpack.c.h.b16 %v462
  %v1977 = vunpack.c.l.b16 %v463
  %v1978 = vunpack.c.h.b16 %v463
  %v1979 = vunpack.c.l.b16 %v464
  %v1980 = vunpack.c.h.b16 %v464
  %v1981 = vunpack.c.l.b16 %v465
  %v1982 = vunpack.c.h.b16 %v465
  %v1983 = vunpack.c.l.b16 %v466
  %v1984 = vunpack.c.h.b16 %v466
  %v1985 = vunpack.c.l.b16 %v467
  %v1986 = vunpack.c.h.b16 %v467
  %v1987 = vunpack.c.l.b16 %v468
  %v1988 = vunpack.c.h.b16 %v468
  %v1989 = vunpack.c.l.b16 %v469
  %v1990 = vunpack.c.h.b16 %v469
  %v1991 = vunpack.c.l.b16 %v470
  %v1992 = vunpack.c.h.b16 %v470
  %v1993 = vunpack.c.l.b16 %v471
  %v1994 = vunpack.c.h.b16 %v471
  %v1995 = vunpack.c.l.b16 %v472
  %v1996 = vunpack.c.h.b16 %v472
  %v1997 = vunpack.c.l.b16 %v473
  %v1998 = vunpack.c.h.b16 %v473
  %v1999 = vunpack.c.l.b16 %v474
  %v2000 = vunpack.c.h.b16 %v474
  %v2001 = vunpack.c.l.b16 %v475
  %v2002 = vunpack.c.h.b16 %v475
  %v2003 = vunpack.c.l.b16 %v476
  %v2004 = vunpack.c.h.b16 %v476
  %v2005 = vunpack.c.l.b16 %v477
  %v2006 = vunpack.c.h.b16 %v477
  %v2007 = vunpack.c.l.b16 %v478
  %v2008 = vunpack.c.h.b16 %v478
  %v2009 = vunpack.c.l.b16 %v479
  %v2010 = vunpack.c.h.b16 %v479
  %v2011 = vunpack.c.l.b16 %v480
  %v2012 = vunpack.c.h.b16 %v480
  %v2013 = vunpack.c.l.b16 %v481
  %v2014 = vunpack.c.h.b16 %v481
  %v2015 = vunpack.c.l.b16 %v482
  %v2016 = vunpack.c.h.b16 %v482
  %v2017 = vunpack.c.l.b16 %v483
  %v2018 = vunpack.c.h.b16 %v483
  %v2019 = vunpack.c.l.b16 %v484
  %v2020 = vunpack.c.h.b16 %v484
  %v2021 = vunpack.c.l.b16 %v485
  %v2022 = vunpack.c.h.b16 %v485
  %v2023 = vunpack.c.l.b16 %v486
  %v2024 = vunpack.c.h.b16 %v486
  %v2025 = vunpack.c.l.b16 %v487
  %v2026 = vunpack.c.h.b16 %v487
  %v2027 = vunpack.c.l.b16 %v488
  %v2028 = vunpack.c.h.b16 %v488
  %v2029 = vunpack.c.l.b16 %v489
  %v2030 = vunpack.c.h.b16 %v489
  %v2031 = vunpack.c.l.b16 %v490
  %v2032 = vunpack.c.h.b16 %v490
  %v2033 = vunpack.c.l.b16 %v491
  %v2034 = vunpack.c.h.b16 %v491
  %v2035 = vunpack.c.l.b16 %v492
  %v2036 = vunpack.c.h.b16 %v492
  %v2037 = vunpack.c.l.b16 %v493
  %v2038 = vunpack.c.h.b16 %v493
  %v2039 = vunpack.c.l.b16 %v494
  %v2040 = vunpack.c.h.b16 %v494
  %v2041 = vunpack.c.l.b16 %v495
  %v2042 = vunpack.c.h.b16 %v495
  %v2043 = vunpack.c.l.b16 %v496
  %v2044 = vunpack.c.h.b16 %v496
  %v2045 = vunpack.c.l.b16 %v497
  %v2046 = vunpack.c.h.b16 %v497
  %v2047 = vunpack.c.l.b16 %v498
  %v2048 = vunpack.c.h.b16 %v498
  %v2049 = vunpack.c.l.b16 %v499
  %v2050 = vunpack.c.h.b16 %v499
  %v2051 = vunpack.c.l.b16 %v500
  %v2052 = vunpack.c.h.b16 %v500
  %v2053 = vunpack.c.l.b16 %v501
  %v2054 = vunpack.c.h.b16 %v501
  %v2055 = vunpack.c.l.b16 %v502
  %v2056 = vunpack.c.h.b16 %v502
  %v2057 = vunpack.c.l.b16 %v503
  %v2058 = vunpack.c.h.b16 %v503
  %v2059 = vunpack.c.l.b16 %v504
  %v2060 = vunpack.c.h.b16 %v504
  %v2061 = vunpack.c.l.b16 %v505
  %v2062 = vunpack.c.h.b16 %v505
  %v2063 = vunpack.c.l.b16 %v506
  %v2064 = vunpack.c.h.b16 %v506
  %v2065 = vunpack.c.l.b16 %v507
  %v2066 = vunpack.c.h.b16 %v507
  %v2067 = vunpack.c.l.b16 %v508
  %v2068 = vunpack.c.h.b16 %v508
  %v2069 = vunpack.c.l.b16 %v509
  %v2070 = vunpack.c.h.b16 %v509
  %v2071 = vunpack.c.l.b16 %v510
  %v2072 = vunpack.c.h.b16 %v510
  %v2073 = vunpack.c.l.b16 %v511
  %v2074 = vunpack.c.h.b16 %v511
  %v2075 = vunpack.c.l.b16 %v512
  %v2076 = vunpack.c.h.b16 %v512
  %v2077 = vunpack.c.l.b16 %v513
  %v2078 = vunpack.c.h.b16 %v513
  %v2079 = vunpack.c.l.b16 %v514
  %v2080 = vunpack.c.h.b16 %v514
  %v2081 = vunpack.c.l.b16 %v515
  %v2082 = vunpack.c.h.b16 %v515
  %v2083 = vunpack.c.l.b16 %v516
  %v2084 = vunpack.c.h.b16 %v516
  %v2085 = vunpack.c.l.b16 %v517
  %v2086 = vunpack.c.h.b16 %v517
  %v2087 = vunpack.c.l.b16 %v518
  %v2088 = vunpack.c.h.b16 %v518
  %v2089 = vunpack.c.l.b16 %v519
  %v2090 = vunpack.c.h.b16 %v519
  %v2091 = vunpack.c.l.b16 %v520
  %v2092 = vunpack.c.h.b16 %v520
  %v2093 = vunpack.c.l.b16 %v521
  %v2094 = vunpack.c.h.b16 %v521
  %v2095 = vunpack.c.l.b16 %v522
  %v2096 = vunpack.c.h.b16 %v522
  %v2097 = vunpack.c.l.b16 %v523
  %v2098 = vunpack.c.h.b16 %v523
  %v2099 = vunpack.c.l.b16 %v524
  %v2100 = vunpack.c.h.b16 %v524
  %v2101 = vunpack.c.l.b16 %v525
  %v2102 = vunpack.c.h.b16 %v525
  %v2103 = vunpack.c.l.b16 %v526
  %v2104 = vunpack.c.h.b16 %v526
  %v2105 = vunpack.c.l.b16 %v527
  %v2106 = vunpack.c.h.b16 %v527
  %v2107 = vunpack.c.l.b16 %v528
  %v2108 = vunpack.c.h.b16 %v528
  %v2109 = vunpack.c.l.b16 %v529
  %v2110 = vunpack.c.h.b16 %v529
  %v2111 = vunpack.c.l.b16 %v530
  %v2112 = vunpack.c.h.b16 %v530
  %v2113 = vunpack.c.l.b16 %v531
  %v2114 = vunpack.c.h.b16 %v531
  %v2115 = vunpack.c.l.b16 %v532
  %v2116 = vunpack.c.h.b16 %v532
  %v2117 = vunpack.c.l.b16 %v533
  %v2118 = vunpack.c.h.b16 %v533
  %v2119 = vunpack.c.l.b16 %v534
  %v2120 = vunpack.c.h.b16 %v534
  %v2121 = vunpack.c.l.b16 %v535
  %v2122 = vunpack.c.h.b16 %v535
  %v2123 = vunpack.c.l.b16 %v536
  %v2124 = vunpack.c.h.b16 %v536
  %v2125 = vunpack.c.l.b16 %v537
  %v2126 = vunpack.c.h.b16 %v537
  %v2127 = vunpack.c.l.b16 %v538
  %v2128 = vunpack.c.h.b16 %v538
  %v2129 = vunpack.c.l.b16 %v539
  %v2130 = vunpack.c.h.b16 %v539
  %v2131 = vunpack.c.l.b16 %v540
  %v2132 = vunpack.c.h.b16 %v540
  %v2133 = vunpack.c.l.b16 %v541
  %v2134 = vunpack.c.h.b16 %v541
  %v2135 = vunpack.c.l.b16 %v542
  %v2136 = vunpack.c.h.b16 %v542
  %v2137 = vunpack.c.l.b16 %v543
  %v2138 = vunpack.c.h.b16 %v543
  %v2139 = vunpack.c.l.b16 %v544
  %v2140 = vunpack.c.h.b16 %v544
  %v2141 = vunpack.c.l.b16 %v545
  %v2142 = vunpack.c.h.b16 %v545
  %v2143 = vunpack.c.l.b16 %v546
  %v2144 = vunpack.c.h.b16 %v546
  %v2145 = vunpack.c.l.b16 %v547
  %v2146 = vunpack.c.h.b16 %v547
  %v2147 = vunpack.c.l.b16 %v548
  %v2148 = vunpack.c.h.b16 %v548
  %v2149 = vunpack.c.l.b16 %v549
  %v2150 = vunpack.c.h.b16 %v549
  %v2151 = vunpack.c.l.b16 %v550
  %v2152 = vunpack.c.h.b16 %v550
  %v2153 = vunpack.c.l.b16 %v551
  %v2154 = vunpack.c.h.b16 %v551
  %v2155 = vunpack.c.l.b16 %v552
  %v2156 = vunpack.c.h.b16 %v552
  %v2157 = vunpack.c.l.b16 %v553
  %v2158 = vunpack.c.h.b16 %v553
  %v2159 = vunpack.c.l.b16 %v554
  %v2160 = vunpack.c.h.b16 %v554
  %v2161 = vunpack.c.l.b16 %v555
  %v2162 = vunpack.c.h.b16 %v555
  %v2163 = vunpack.c.l.b16 %v556
  %v2164 = vunpack.c.h.b16 %v556
  %v2165 = vunpack.c.l.b16 %v557
  %v2166 = vunpack.c.h.b16 %v557
  %v2167 = vunpack.c.l.b16 %v558
  %v2168 = vunpack.c.h.b16 %v558
  %v2169 = vunpack.c.l.b16 %v559
  %v2170 = vunpack.c.h.b16 %v559
  %v2171 = vunpack.c.l.b16 %v560
  %v2172 = vunpack.c.h.b16 %v560
  %v2173 = vunpack.c.l.b16 %v561
  %v2174 = vunpack.c.h.b16 %v561
  %v2175 = vunpack.c.l.b16 %v562
  %v2176 = vunpack.c.h.b16 %v562
  %v2177 = vunpack.c.l.b16 %v563
  %v2178 = vunpack.c.h.b16 %v563
  %v2179 = vunpack.c.l.b16 %v564
  %v2180 = vunpack.c.h.b16 %v564
  %v2181 = vunpack.c.l.b16 %v565
  %v2182 = vunpack.c.h.b16 %v565
  %v2183 = vunpack.c.l.b16 %v566
  %v2184 = vunpack.c.h.b16 %v566
  %v2185 = vunpack.c.l.b16 %v567
  %v2186 = vunpack.c.h.b16 %v567
  %v2187 = vunpack.c.l.b16 %v568
  %v2188 = vunpack.c.h.b16 %v568
  %v2189 = vunpack.c.l.b16 %v569
  %v2190 = vunpack.c.h.b16 %v569
  %v2191 = vunpack.c.l.b16 %v570
  %v2192 = vunpack.c.h.b16 %v570
  %v2193 = vunpack.c.l.b16 %v571
  %v2194 = vunpack.c.h.b16 %v571
  %v2195 = vunpack.c.l.b16 %v572
  %v2196 = vunpack.c.h.b16 %v572
  %v2197 = vunpack.c.l.b16 %v573
  %v2198 = vunpack.c.h.b16 %v573
  %v2199 = vunpack.c.l.b16 %v574
  %v2200 = vunpack.c.h.b16 %v574
  %v2201 = vunpack.c.l.b16 %v575
  %v2202 = vunpack.c.h.b16 %v575
  %v2203 = vunpack.c.l.b16 %v576
  %v2204 = vunpack.c.h.b16 %v576
  %v2205 = vunpack.c.l.b16 %v577
  %v2206 = vunpack.c.h.b16 %v577
  %v2207 = vunpack.c.l.b16 %v578
  %v2208 = vunpack.c.h.b16 %v578
  %v2209 = vunpack.c.l.b16 %v579
  %v2210 = vunpack.c.h.b16 %v579
  %v2211 = vunpack.c.l.b16 %v580
  %v2212 = vunpack.c.h.b16 %v580
  %v2213 = vunpack.c.l.b16 %v581
  %v2214 = vunpack.c.h.b16 %v581
  %v2215 = vunpack.c.l.b16 %v582
  %v2216 = vunpack.c.h.b16 %v582
  %v2217 = vunpack.c.l.b16 %v583
  %v2218 = vunpack.c.h.b16 %v583
  %v2219 = vunpack.c.l.b16 %v584
  %v2220 = vunpack.c.h.b16 %v584
  %v2221 = vunpack.c.l.b16 %v585
  %v2222 = vunpack.c.h.b16 %v585
  %v2223 = vunpack.c.l.b16 %v586
  %v2224 = vunpack.c.h.b16 %v586
  %v2225 = vunpack.c.l.b16 %v587
  %v2226 = vunpack.c.h.b16 %v587
  %v2227 = vunpack.c.l.b16 %v588
  %v2228 = vunpack.c.h.b16 %v588
  %v2229 = vunpack.c.l.b16 %v589
  %v2230 = vunpack.c.h.b16 %v589
  %v2231 = vunpack.c.l.b16 %v590
  %v2232 = vunpack.c.h.b16 %v590
  %v2233 = vunpack.c.l.b16 %v591
  %v2234 = vunpack.c.h.b16 %v591
  %v2235 = vunpack.c.l.b16 %v592
  %v2236 = vunpack.c.h.b16 %v592
  %v2237 = vunpack.c.l.b16 %v593
  %v2238 = vunpack.c.h.b16 %v593
  %v2239 = vunpack.c.l.b16 %v594
  %v2240 = vunpack.c.h.b16 %v594
  %v2241 = vunpack.c.l.b16 %v595
  %v2242 = vunpack.c.h.b16 %v595
  %v2243 = vunpack.c.l.b16 %v596
  %v2244 = vunpack.c.h.b16 %v596
  %v2245 = vunpack.c.l.b16 %v597
  %v2246 = vunpack.c.h.b16 %v597
  %v2247 = vunpack.c.l.b16 %v598
  %v2248 = vunpack.c.h.b16 %v598
  %v2249 = vunpack.c.l.b16 %v599
  %v2250 = vunpack.c.h.b16 %v599
  %v2251 = vunpack.c.l.b16 %v600
  %v2252 = vunpack.c.h.b16 %v600
  %v2253 = vunpack.c.l.b16 %v601
  %v2254 = vunpack.c.h.b16 %v601
  %v2255 = vunpack.c.l.b16 %v602
  %v2256 = vunpack.c.h.b16 %v602
  %v2257 = vunpack.c.l.b16 %v603
  %v2258 = vunpack.c.h.b16 %v603
  %v2259 = vunpack.c.l.b16 %v604
  %v2260 = vunpack.c.h.b16 %v604
  %v2261 = vunpack.c.l.b16 %v605
  %v2262 = vunpack.c.h.b16 %v605
  %v2263 = vunpack.c.l.b16 %v606
  %v2264 = vunpack.c.h.b16 %v606
  %v2265 = vunpack.c.l.b16 %v607
  %v2266 = vunpack.c.h.b16 %v607
  %v2267 = vunpack.c.l.b16 %v608
  %v2268 = vunpack.c.h.b16 %v608
  %v2269 = vunpack.c.l.b16 %v609
  %v2270 = vunpack.c.h.b16 %v609
  %v2271 = vunpack.c.l.b16 %v610
  %v2272 = vunpack.c.h.b16 %v610
  %v2273 = vunpack.c.l.b16 %v611
  %v2274 = vunpack.c.h.b16 %v611
  %v2275 = vunpack.c.l.b16 %v612
  %v2276 = vunpack.c.h.b16 %v612
  %v2277 = vunpack.c.l.b16 %v613
  %v2278 = vunpack.c.h.b16 %v613
  %v2279 = vunpack.c.l.b16 %v614
  %v2280 = vunpack.c.h.b16 %v614
  %v2281 = vunpack.c.l.b16 %v615
  %v2282 = vunpack.c.h.b16 %v615
  %v2283 = vunpack.c.l.b16 %v616
  %v2284 = vunpack.c.h.b16 %v616
  %v2285 = vunpack.c.l.b16 %v617
  %v2286 = vunpack.c.h.b16 %v617
  %v2287 = vunpack.c.l.b16 %v618
  %v2288 = vunpack.c.h.b16 %v618
  %v2289 = vunpack.c.l.b16 %v619
  %v2290 = vunpack.c.h.b16 %v619
  %v2291 = vunpack.c.l.b16 %v620
  %v2292 = vunpack.c.h.b16 %v620
  %v2293 = vunpack.c.l.b16 %v621
  %v2294 = vunpack.c.h.b16 %v621
  %v2295 = vunpack.c.l.b16 %v622
  %v2296 = vunpack.c.h.b16 %v622
  %v2297 = vunpack.c.l.b16 %v623
  %v2298 = vunpack.c.h.b16 %v623
  %v2299 = vunpack.c.l.b16 %v624
  %v2300 = vunpack.c.h.b16 %v624
  %v2301 = vunpack.c.l.b16 %v625
  %v2302 = vunpack.c.h.b16 %v625
  %v2303 = vunpack.c.l.b16 %v626
  %v2304 = vunpack.c.h.b16 %v626
  %v2305 = vunpack.c.l.b16 %v627
  %v2306 = vunpack.c.h.b16 %v627
  %v2307 = vunpack.c.l.b16 %v628
  %v2308 = vunpack.c.h.b16 %v628
  %v2309 = vunpack.c.l.b16 %v629
  %v2310 = vunpack.c.h.b16 %v629
  %v2311 = vunpack.c.l.b16 %v630
  %v2312 = vunpack.c.h.b16 %v630
  %v2313 = vunpack.c.l.b16 %v631
  %v2314 = vunpack.c.h.b16 %v631
  %v2315 = vunpack.c.l.b16 %v632
  %v2316 = vunpack.c.h.b16 %v632
  %v2317 = vunpack.c.l.b16 %v633
  %v2318 = vunpack.c.h.b16 %v633
  %v2319 = vunpack.c.l.b16 %v634
  %v2320 = vunpack.c.h.b16 %v634
  %v2321 = vunpack.c.l.b16 %v635
  %v2322 = vunpack.c.h.b16 %v635
  %v2323 = vunpack.c.l.b16 %v636
  %v2324 = vunpack.c.h.b16 %v636
  %v2325 = vunpack.c.l.b16 %v637
  %v2326 = vunpack.c.h.b16 %v637
  %v2327 = vunpack.c.l.b16 %v638
  %v2328 = vunpack.c.h.b16 %v638
  %v2329 = vunpack.c.l.b16 %v639
  %v2330 = vunpack.c.h.b16 %v639
  %v2331 = vunpack.c.l.b16 %v640
  %v2332 = vunpack.c.h.b16 %v640
  %v2333 = vunpack.c.l.b16 %v641
  %v2334 = vunpack.c.h.b16 %v641
  %v2335 = vunpack.c.l.b16 %v642
  %v2336 = vunpack.c.h.b16 %v642
  %v2337 = vunpack.c.l.b16 %v643
  %v2338 = vunpack.c.h.b16 %v643
  %v2339 = vunpack.c.l.b16 %v644
  %v2340 = vunpack.c.h.b16 %v644
  %v2341 = vunpack.c.l.b16 %v645
  %v2342 = vunpack.c.h.b16 %v645
  %v2343 = vunpack.c.l.b16 %v646
  %v2344 = vunpack.c.h.b16 %v646
  %v2345 = vunpack.c.l.b16 %v647
  %v2346 = vunpack.c.h.b16 %v647
  %v2347 = vunpack.c.l.b16 %v648
  %v2348 = vunpack.c.h.b16 %v648
  %v2349 = vunpack.c.l.b16 %v649
  %v2350 = vunpack.c.h.b16 %v649
  %v2351 = vunpack.c.l.b16 %v650
  %v2352 = vunpack.c.h.b16 %v650
  %v2353 = vunpack.c.l.b16 %v651
  %v2354 = vunpack.c.h.b16 %v651
  %v2355 = vunpack.c.l.b16 %v652
  %v2356 = vunpack.c.h.b16 %v652
  %v2357 = vunpack.c.l.b16 %v653
  %v2358 = vunpack.c.h.b16 %v653
  %v2359 = vunpack.c.l.b16 %v654
  %v2360 = vunpack.c.h.b16 %v654
  %v2361 = vunpack.c.l.b16 %v655
  %v2362 = vunpack.c.h.b16 %v655
  %v2363 = vunpack.c.l.b16 %v656
  %v2364 = vunpack.c.h.b16 %v656
  %v2365 = vunpack.c.l.b16 %v657
  %v2366 = vunpack.c.h.b16 %v657
  %v2367 = vunpack.c.l.b16 %v658
  %v2368 = vunpack.c.h.b16 %v658
  %v2369 = vunpack.c.l.b16 %v659
  %v2370 = vunpack.c.h.b16 %v659
  %v2371 = vunpack.c.l.b16 %v660
  %v2372 = vunpack.c.h.b16 %v660
  %v2373 = vunpack.c.l.b16 %v661
  %v2374 = vunpack.c.h.b16 %v661
  %v2375 = vunpack.c.l.b16 %v662
  %v2376 = vunpack.c.h.b16 %v662
  %v2377 = vunpack.c.l.b16 %v663
  %v2378 = vunpack.c.h.b16 %v663
  %v2379 = vunpack.c.l.b16 %v664
  %v2380 = vunpack.c.h.b16 %v664
  %v2381 = vunpack.c.l.b16 %v665
  %v2382 = vunpack.c.h.b16 %v665
  %v2383 = vunpack.c.l.b16 %v666
  %v2384 = vunpack.c.h.b16 %v666
  %v2385 = vunpack.c.l.b16 %v667
  %v2386 = vunpack.c.h.b16 %v667
  %v2387 = vunpack.c.l.b16 %v668
  %v2388 = vunpack.c.h.b16 %v668
  %v2389 = vunpack.c.l.b16 %v669
  %v2390 = vunpack.c.h.b16 %v669
  %v2391 = vunpack.c.l.b16 %v670
  %v2392 = vunpack.c.h.b16 %v670
  %v2393 = vunpack.c.l.b16 %v671
  %v2394 = vunpack.c.h.b16 %v671
  %v2395 = vunpack.c.l.b16 %v672
  %v2396 = vunpack.c.h.b16 %v672
  %v2397 = vunpack.c.l.b16 %v673
  %v2398 = vunpack.c.h.b16 %v673
  %v2399 = vunpack.c.l.b16 %v674
  %v2400 = vunpack.c.h.b16 %v674
  %v2401 = vunpack.c.l.b16 %v675
  %v2402 = vunpack.c.h.b16 %v675
  %v2403 = vunpack.c.l.b16 %v676
  %v2404 = vunpack.c.h.b16 %v676
  %v2405 = vpack.c.b16 %v1257, %v1253
  %v2406 = vpack.c.b16 %v1258, %v1254
  %v2407 = vpack.c.b16 %v1259, %v1255
  %v2408 = vpack.c.b16 %v1260, %v1256
  %v2409 = vpack.c.b16 %v1265, %v1261
  %v2410 = vpack.c.b16 %v1266, %v1262
  %v2411 = vpack.c.b16 %v1267, %v1263
  %v2412 = vpack.c.b16 %v1268, %v1264
  %v2413 = vpack.c.b16 %v1273, %v1269
  %v2414 = vpack.c.b16 %v1274, %v1270
  %v2415 = vpack.c.b16 %v1275, %v1271
  %v2416 = vpack.c.b16 %v1276, %v1272
  %v2417 = vpack.c.b16 %v1281, %v1277
  %v2418 = vpack.c.b16 %v1282, %v1278
  %v2419 = vpack.c.b16 %v1283, %v1279
  %v2420 = vpack.c.b16 %v1284, %v1280
  %v2421 = vpack.c.b16 %v1289, %v1285
  %v2422 = vpack.c.b16 %v1290, %v1286
  %v2423 = vpack.c.b16 %v1291, %v1287
  %v2424 = vpack.c.b16 %v1292, %v1288
  %v2425 = vpack.c.b16 %v1297, %v1293
  %v2426 = vpack.c.b16 %v1298, %v1294
  %v2427 = vpack.c.b16 %v1299, %v1295
  %v2428 = vpack.c.b16 %v1300, %v1296
  %v2429 = vpack.c.b16 %v1305, %v1301
  %v2430 = vpack.c.b16 %v1306, %v1302
  %v2431 = vpack.c.b16 %v1307, %v1303
  %v2432 = vpack.c.b16 %v1308, %v1304
  %v2433 = vpack.c.b16 %v1313, %v1309
  %v2434 = vpack.c.b16 %v1314, %v1310
  %v2435 = vpack.c.b16 %v1315, %v1311
  %v2436 = vpack.c.b16 %v1316, %v1312
  %v2437 = vpack.c.b16 %v1321, %v1317
  %v2438 = vpack.c.b16 %v1322, %v1318
  %v2439 = vpack.c.b16 %v1323, %v1319
  %v2440 = vpack.c.b16 %v1324, %v1320
  %v2441 = vpack.c.b16 %v1329, %v1325
  %v2442 = vpack.c.b16 %v1330, %v1326
  %v2443 = vpack.c.b16 %v1331, %v1327
  %v2444 = vpack.c.b16 %v1332, %v1328
  %v2445 = vpack.c.b16 %v1337, %v1333
  %v2446 = vpack.c.b16 %v1338, %v1334
  %v2447 = vpack.c.b16 %v1339, %v1335
  %v2448 = vpack.c.b16 %v1340, %v1336
  %v2449 = vpack.c.b16 %v1345, %v1341
  %v2450 = vpack.c.b16 %v1346, %v1342
  %v2451 = vpack.c.b16 %v1347, %v1343
  %v2452 = vpack.c.b16 %v1348, %v1344
  %v2453 = vpack.c.b16 %v1353, %v1349
  %v2454 = vpack.c.b16 %v1354, %v1350
  %v2455 = vpack.c.b16 %v1355, %v1351
  %v2456 = vpack.c.b16 %v1356, %v1352
  %v2457 = vpack.c.b16 %v1361, %v1357
  %v2458 = vpack.c.b16 %v1362, %v1358
  %v2459 = vpack.c.b16 %v1363, %v1359
  %v2460 = vpack.c.b16 %v1364, %v1360
  %v2461 = vpack.c.b16 %v1369, %v1365
  %v2462 = vpack.c.b16 %v1370, %v1366
  %v2463 = vpack.c.b16 %v1371, %v1367
  %v2464 = vpack.c.b16 %v1372, %v1368
  %v2465 = vpack.c.b16 %v1377, %v1373
  %v2466 = vpack.c.b16 %v1378, %v1374
  %v2467 = vpack.c.b16 %v1379, %v1375
  %v2468 = vpack.c.b16 %v1380, %v1376
  %v2469 = vpack.c.b16 %v1385, %v1381
  %v2470 = vpack.c.b16 %v1386, %v1382
  %v2471 = vpack.c.b16 %v1387, %v1383
  %v2472 = vpack.c.b16 %v1388, %v1384
  %v2473 = vpack.c.b16 %v1393, %v1389
  %v2474 = vpack.c.b16 %v1394, %v1390
  %v2475 = vpack.c.b16 %v1395, %v1391
  %v2476 = vpack.c.b16 %v1396, %v1392
  %v2477 = vpack.c.b16 %v1401, %v1397
  %v2478 = vpack.c.b16 %v1402, %v1398
  %v2479 = vpack.c.b16 %v1403, %v1399
  %v2480 = vpack.c.b16 %v1404, %v1400
  %v2481 = vpack.c.b16 %v1409, %v1405
  %v2482 = vpack.c.b16 %v1410, %v1406
  %v2483 = vpack.c.b16 %v1411, %v1407
  %v2484 = vpack.c.b16 %v1412, %v1408
  %v2485 = vpack.c.b16 %v1417, %v1413
  %v2486 = vpack.c.b16 %v1418, %v1414
  %v2487 = vpack.c.b16 %v1419, %v1415
  %v2488 = vpack.c.b16 %v1420, %v1416
  %v2489 = vpack.c.b16 %v1425, %v1421
  %v2490 = vpack.c.b16 %v1426, %v1422
  %v2491 = vpack.c.b16 %v1427, %v1423
  %v2492 = vpack.c.b16 %v1428, %v1424
  %v2493 = vpack.c.b16 %v1433, %v1429
  %v2494 = vpack.c.b16 %v1434, %v1430
  %v2495 = vpack.c.b16 %v1435, %v1431
  %v2496 = vpack.c.b16 %v1436, %v1432
  %v2497 = vpack.c.b16 %v1441, %v1437
  %v2498 = vpack.c.b16 %v1442, %v1438
  %v2499 = vpack.c.b16 %v1443, %v1439
  %v2500 = vpack.c.b16 %v1444, %v1440
  %v2501 = vpack.c.b16 %v1449, %v1445
  %v2502 = vpack.c.b16 %v1450, %v1446
  %v2503 = vpack.c.b16 %v1451, %v1447
  %v2504 = vpack.c.b16 %v1452, %v1448
  %v2505 = vpack.c.b16 %v1457, %v1453
  %v2506 = vpack.c.b16 %v1458, %v1454
  %v2507 = vpack.c.b16 %v1459, %v1455
  %v2508 = vpack.c.b16 %v1460, %v1456
  %v2509 = vpack.c.b16 %v1465, %v1461
  %v2510 = vpack.c.b16 %v1466, %v1462
  %v2511 = vpack.c.b16 %v1467, %v1463
  %v2512 = vpack.c.b16 %v1468, %v1464
  %v2513 = vpack.c.b16 %v1473, %v1469
  %v2514 = vpack.c.b16 %v1474, %v1470
  %v2515 = vpack.c.b16 %v1475, %v1471
  %v2516 = vpack.c.b16 %v1476, %v1472
  %v2517 = vpack.c.b16 %v1481, %v1477
  %v2518 = vpack.c.b16 %v1482, %v1478
  %v2519 = vpack.c.b16 %v1483, %v1479
  %v2520 = vpack.c.b16 %v1484, %v1480
  %v2521 = vpack.c.b16 %v1489, %v1485
  %v2522 = vpack.c.b16 %v1490, %v1486
  %v2523 = vpack.c.b16 %v1491, %v1487
  %v2524 = vpack.c.b16 %v1492, %v1488
  %v2525 = vpack.c.b16 %v1497, %v1493
  %v2526 = vpack.c.b16 %v1498, %v1494
  %v2527 = vpack.c.b16 %v1499, %v1495
  %v2528 = vpack.c.b16 %v1500, %v1496
  %v2529 = vpack.c.b16 %v1505, %v1501
  %v2530 = vpack.c.b16 %v1506, %v1502
  %v2531 = vpack.c.b16 %v1507, %v1503
  %v2532 = vpack.c.b16 %v1508, %v1504
  %v2533 = vpack.c.b16 %v1513, %v1509
  %v2534 = vpack.c.b16 %v1514, %v1510
  %v2535 = vpack.c.b16 %v1515, %v1511
  %v2536 = vpack.c.b16 %v1516, %v1512
  %v2537 = vpack.c.b16 %v1521, %v1517
  %v2538 = vpack.c.b16 %v1522, %v1518
  %v2539 = vpack.c.b16 %v1523, %v1519
  %v2540 = vpack.c.b16 %v1524, %v1520
  %v2541 = vpack.c.b16 %v1529, %v1525
  %v2542 = vpack.c.b16 %v1530, %v1526
  %v2543 = vpack.c.b16 %v1531, %v1527
  %v2544 = vpack.c.b16 %v1532, %v1528
  %v2545 = vpack.c.b16 %v1537, %v1533
  %v2546 = vpack.c.b16 %v1538, %v1534
  %v2547 = vpack.c.b16 %v1539, %v1535
  %v2548 = vpack.c.b16 %v1540, %v1536
  %v2549 = vpack.c.b16 %v1545, %v1541
  %v2550 = vpack.c.b16 %v1546, %v1542
  %v2551 = vpack.c.b16 %v1547, %v1543
  %v2552 = vpack.c.b16 %v1548, %v1544
  %v2553 = vpack.c.b16 %v1553, %v1549
  %v2554 = vpack.c.b16 %v1554, %v1550
  %v2555 = vpack.c.b16 %v1555, %v1551
  %v2556 = vpack.c.b16 %v1556, %v1552
  %v2557 = vpack.c.b16 %v1561, %v1557
  %v2558 = vpack.c.b16 %v1562, %v1558
  %v2559 = vpack.c.b16 %v1563, %v1559
  %v2560 = vpack.c.b16 %v1564, %v1560
  %v2561 = vpack.c.b16 %v1569, %v1565
  %v2562 = vpack.c.b16 %v1570, %v1566
  %v2563 = vpack.c.b16 %v1571, %v1567
  %v2564 = vpack.c.b16 %v1572, %v1568
  %v2565 = vpack.c.b16 %v1577, %v1573
  %v2566 = vpack.c.b16 %v1578, %v1574
  %v2567 = vpack.c.b16 %v1579, %v1575
  %v2568 = vpack.c.b16 %v1580, %v1576
  %v2569 = vpack.c.b16 %v1585, %v1581
  %v2570 = vpack.c.b16 %v1586, %v1582
  %v2571 = vpack.c.b16 %v1587, %v1583
  %v2572 = vpack.c.b16 %v1588, %v1584
  %v2573 = vpack.c.b16 %v1593, %v1589
  %v2574 = vpack.c.b16 %v1594, %v1590
  %v2575 = vpack.c.b16 %v1595, %v1591
  %v2576 = vpack.c.b16 %v1596, %v1592
  %v2577 = vpack.c.b16 %v1601, %v1597
  %v2578 = vpack.c.b16 %v1602, %v1598
  %v2579 = vpack.c.b16 %v1603, %v1599
  %v2580 = vpack.c.b16 %v1604, %v1600
  %v2581 = vpack.c.b16 %v1609, %v1605
  %v2582 = vpack.c.b16 %v1610, %v1606
  %v2583 = vpack.c.b16 %v1611, %v1607
  %v2584 = vpack.c.b16 %v1612, %v1608
  %v2585 = vpack.c.b16 %v1617, %v1613
  %v2586 = vpack.c.b16 %v1618, %v1614
  %v2587 = vpack.c.b16 %v1619, %v1615
  %v2588 = vpack.c.b16 %v1620, %v1616
  %v2589 = vpack.c.b16 %v1625, %v1621
  %v2590 = vpack.c.b16 %v1626, %v1622
  %v2591 = vpack.c.b16 %v1627, %v1623
  %v2592 = vpack.c.b16 %v1628, %v1624
  %v2593 = vpack.c.b16 %v1633, %v1629
  %v2594 = vpack.c.b16 %v1634, %v1630
  %v2595 = vpack.c.b16 %v1635, %v1631
  %v2596 = vpack.c.b16 %v1636, %v1632
  %v2597 = vpack.c.b16 %v1641, %v1637
  %v2598 = vpack.c.b16 %v1642, %v1638
  %v2599 = vpack.c.b16 %v1643, %v1639
  %v2600 = vpack.c.b16 %v1644, %v1640
  %v2601 = vpack.c.b16 %v1649, %v1645
  %v2602 = vpack.c.b16 %v1650, %v1646
  %v2603 = vpack.c.b16 %v1651, %v1647
  %v2604 = vpack.c.b16 %v1652, %v1648
  %v2605 = vpack.c.b16 %v1657, %v1653
  %v2606 = vpack.c.b16 %v1658, %v1654
  %v2607 = vpack.c.b16 %v1659, %v1655
  %v2608 = vpack.c.b16 %v1660, %v1656
  %v2609 = vpack.c.b16 %v1665, %v1661
  %v2610 = vpack.c.b16 %v1666, %v1662
  %v2611 = vpack.c.b16 %v1667, %v1663
  %v2612 = vpack.c.b16 %v1668, %v1664
  %v2613 = vpack.c.b16 %v1673, %v1669
  %v2614 = vpack.c.b16 %v1674, %v1670
  %v2615 = vpack.c.b16 %v1675, %v1671
  %v2616 = vpack.c.b16 %v1676, %v1672
  %v2617 = vpack.c.b16 %v1681, %v1677
  %v2618 = vpack.c.b16 %v1682, %v1678
  %v2619 = vpack.c.b16 %v1683, %v1679
  %v2620 = vpack.c.b16 %v1684, %v1680
  %v2621 = vpack.c.b16 %v1689, %v1685
  %v2622 = vpack.c.b16 %v1690, %v1686
  %v2623 = vpack.c.b16 %v1691, %v1687
  %v2624 = vpack.c.b16 %v1692, %v1688
  %v2625 = vpack.c.b16 %v1697, %v1693
  %v2626 = vpack.c.b16 %v1698, %v1694
  %v2627 = vpack.c.b16 %v1699, %v1695
  %v2628 = vpack.c.b16 %v1700, %v1696
  %v2629 = vpack.c.b16 %v1705, %v1701
  %v2630 = vpack.c.b16 %v1706, %v1702
  %v2631 = vpack.c.b16 %v1707, %v1703
  %v2632 = vpack.c.b16 %v1708, %v1704
  %v2633 = vpack.c.b16 %v1713, %v1709
  %v2634 = vpack.c.b16 %v1714, %v1710
  %v2635 = vpack.c.b16 %v1715, %v1711
  %v2636 = vpack.c.b16 %v1716, %v1712
  %v2637 = vpack.c.b16 %v1721, %v1717
  %v2638 = vpack.c.b16 %v1722, %v1718
  %v2639 = vpack.c.b16 %v1723, %v1719
  %v2640 = vpack.c.b16 %v1724, %v1720
  %v2641 = vpack.c.b16 %v1729, %v1725
  %v2642 = vpack.c.b16 %v1730, %v1726
  %v2643 = vpack.c.b16 %v1731, %v1727
  %v2644 = vpack.c.b16 %v1732, %v1728
  %v2645 = vpack.c.b16 %v1737, %v1733
  %v2646 = vpack.c.b16 %v1738, %v1734
  %v2647 = vpack.c.b16 %v1739, %v1735
  %v2648 = vpack.c.b16 %v1740, %v1736
  %v2649 = vpack.c.b16 %v1745, %v1741
  %v2650 = vpack.c.b16 %v1746, %v1742
  %v2651 = vpack.c.b16 %v1747, %v1743
  %v2652 = vpack.c.b16 %v1748, %v1744
  %v2653 = vpack.c.b16 %v1753, %v1749
  %v2654 = vpack.c.b16 %v1754, %v1750
  %v2655 = vpack.c.b16 %v1755, %v1751
  %v2656 = vpack.c.b16 %v1756, %v1752
  %v2657 = vpack.c.b16 %v1761, %v1757
  %v2658 = vpack.c.b16 %v1762, %v1758
  %v2659 = vpack.c.b16 %v1763, %v1759
  %v2660 = vpack.c.b16 %v1764, %v1760
  %v2661 = vpack.c.b16 %v1769, %v1765
  %v2662 = vpack.c.b16 %v1770, %v1766
  %v2663 = vpack.c.b16 %v1771, %v1767
  %v2664 = vpack.c.b16 %v1772, %v1768
  %v2665 = vpack.c.b16 %v1777, %v1773
  %v2666 = vpack.c.b16 %v1778, %v1774
  %v2667 = vpack.c.b16 %v1779, %v1775
  %v2668 = vpack.c.b16 %v1780, %v1776
  %v2669 = vpack.c.b16 %v1785, %v1781
  %v2670 = vpack.c.b16 %v1786, %v1782
  %v2671 = vpack.c.b16 %v1787, %v1783
  %v2672 = vpack.c.b16 %v1788, %v1784
  %v2673 = vpack.c.b16 %v1793, %v1789
  %v2674 = vpack.c.b16 %v1794, %v1790
  %v2675 = vpack.c.b16 %v1795, %v1791
  %v2676 = vpack.c.b16 %v1796, %v1792
  %v2677 = vpack.c.b16 %v1801, %v1797
  %v2678 = vpack.c.b16 %v1802, %v1798
  %v2679 = vpack.c.b16 %v1803, %v1799
  %v2680 = vpack.c.b16 %v1804, %v1800
  %v2681 = vpack.c.b16 %v1809, %v1805
  %v2682 = vpack.c.b16 %v1810, %v1806
  %v2683 = vpack.c.b16 %v1811, %v1807
  %v2684 = vpack.c.b16 %v1812, %v1808
  %v2685 = vpack.c.b16 %v1817, %v1813
  %v2686 = vpack.c.b16 %v1818, %v1814
  %v2687 = vpack.c.b16 %v1819, %v1815
  %v2688 = vpack.c.b16 %v1820, %v1816
  %v2689 = vpack.c.b16 %v1825, %v1821
  %v2690 = vpack.c.b16 %v1826, %v1822
  %v2691 = vpack.c.b16 %v1827, %v1823
  %v2692 = vpack.c.b16 %v1828, %v1824
  %v2693 = vpack.c.b16 %v1833, %v1829
  %v2694 = vpack.c.b16 %v1834, %v1830
  %v2695 = vpack.c.b16 %v1835, %v1831
  %v2696 = vpack.c.b16 %v1836, %v1832
  %v2697 = vpack.c.b16 %v1841, %v1837
  %v2698 = vpack.c.b16 %v1842, %v1838
  %v2699 = vpack.c.b16 %v1843, %v1839
  %v2700 = vpack.c.b16 %v1844, %v1840
  %v2701 = vpack.c.b16 %v1849, %v1845
  %v2702 = vpack.c.b16 %v1850, %v1846
  %v2703 = vpack.c.b16 %v1851, %v1847
  %v2704 = vpack.c.b16 %v1852, %v1848
  %v2705 = vpack.c.b16 %v1857, %v1853
  %v2706 = vpack.c.b16 %v1858, %v1854
  %v2707 = vpack.c.b16 %v1859, %v1855
  %v2708 = vpack.c.b16 %v1860, %v1856
  %v2709 = vpack.c.b16 %v1865, %v1861
  %v2710 = vpack.c.b16 %v1866, %v1862
  %v2711 = vpack.c.b16 %v1867, %v1863
  %v2712 = vpack.c.b16 %v1868, %v1864
  %v2713 = vpack.c.b16 %v1873, %v1869
  %v2714 = vpack.c.b16 %v1874, %v1870
  %v2715 = vpack.c.b16 %v1875, %v1871
  %v2716 = vpack.c.b16 %v1876, %v1872
  %v2717 = vpack.c.b16 %v1881, %v1877
  %v2718 = vpack.c.b16 %v1882, %v1878
  %v2719 = vpack.c.b16 %v1883, %v1879
  %v2720 = vpack.c.b16 %v1884, %v1880
  %v2721 = vpack.c.b16 %v1889, %v1885
  %v2722 = vpack.c.b16 %v1890, %v1886
  %v2723 = vpack.c.b16 %v1891, %v1887
  %v2724 = vpack.c.b16 %v1892, %v1888
  %v2725 = vpack.c.b16 %v1897, %v1893
  %v2726 = vpack.c.b16 %v1898, %v1894
  %v2727 = vpack.c.b16 %v1899, %v1895
  %v2728 = vpack.c.b16 %v1900, %v1896
  %v2729 = vpack.c.b16 %v1905, %v1901
  %v2730 = vpack.c.b16 %v1906, %v1902
  %v2731 = vpack.c.b16 %v1907, %v1903
  %v2732 = vpack.c.b16 %v1908, %v1904
  %v2733 = vpack.c.b16 %v1913, %v1909
  %v2734 = vpack.c.b16 %v1914, %v1910
  %v2735 = vpack.c.b16 %v1915, %v1911
  %v2736 = vpack.c.b16 %v1916, %v1912
  %v2737 = vpack.c.b16 %v1921, %v1917
  %v2738 = vpack.c.b16 %v1922, %v1918
  %v2739 = vpack.c.b16 %v1923, %v1919
  %v2740 = vpack.c.b16 %v1924, %v1920
  %v2741 = vpack.c.b16 %v1929, %v1925
  %v2742 = vpack.c.b16 %v1930, %v1926
  %v2743 = vpack.c.b16 %v1931, %v1927
  %v2744 = vpack.c.b16 %v1932, %v1928
  %v2745 = vpack.c.b16 %v1937, %v1933
  %v2746 = vpack.c.b16 %v1938, %v1934
  %v2747 = vpack.c.b16 %v1939, %v1935
  %v2748 = vpack.c.b16 %v1940, %v1936
  %v2749 = vpack.c.b16 %v1945, %v1941
  %v2750 = vpack.c.b16 %v1946, %v1942
  %v2751 = vpack.c.b16 %v1947, %v1943
  %v2752 = vpack.c.b16 %v1948, %v1944
  %v2753 = vpack.c.b16 %v1953, %v1949
  %v2754 = vpack.c.b16 %v1954, %v1950
  %v2755 = vpack.c.b16 %v1955, %v1951
  %v2756 = vpack.c.b16 %v1956, %v1952
  %v2757 = vpack.c.b16 %v1961, %v1957
  %v2758 = vpack.c.b16 %v1962, %v1958
  %v2759 = vpack.c.b16 %v1963, %v1959
  %v2760 = vpack.c.b16 %v1964, %v1960
  %v2761 = vpack.c.b16 %v1969, %v1965
  %v2762 = vpack.c.b16 %v1970, %v1966
  %v2763 = vpack.c.b16 %v1971, %v1967
  %v2764 = vpack.c.b16 %v1972, %v1968
  %v2765 = vpack.c.b16 %v1977, %v1973
  %v2766 = vpack.c.b16 %v1978, %v1974
  %v2767 = vpack.c.b16 %v1979, %v1975
  %v2768 = vpack.c.b16 %v1980, %v1976
  %v2769 = vpack.c.b16 %v1985, %v1981
  %v2770 = vpack.c.b16 %v1986, %v1982
  %v2771 = vpack.c.b16 %v1987, %v1983
  %v2772 = vpack.c.b16 %v1988, %v1984
  %v2773 = vpack.c.b16 %v1993, %v1989
  %v2774 = vpack.c.b16 %v1994, %v1990
  %v2775 = vpack.c.b16 %v1995, %v1991
  %v2776 = vpack.c.b16 %v1996, %v1992
  %v2777 = vpack.c.b16 %v2001, %v1997
  %v2778 = vpack.c.b16 %v2002, %v1998
  %v2779 = vpack.c.b16 %v2003, %v1999
  %v2780 = vpack.c.b16 %v2004, %v2000
  %v2781 = vpack.c.b16 %v2009, %v2005
  %v2782 = vpack.c.b16 %v2010, %v2006
  %v2783 = vpack.c.b16 %v2011, %v2007
  %v2784 = vpack.c.b16 %v2012, %v2008
  %v2785 = vpack.c.b16 %v2017, %v2013
  %v2786 = vpack.c.b16 %v2018, %v2014
  %v2787 = vpack.c.b16 %v2019, %v2015
  %v2788 = vpack.c.b16 %v2020, %v2016
  %v2789 = vpack.c.b16 %v2025, %v2021
  %v2790 = vpack.c.b16 %v2026, %v2022
  %v2791 = vpack.c.b16 %v2027, %v2023
  %v2792 = vpack.c.b16 %v2028, %v2024
  %v2793 = vpack.c.b16 %v2033, %v2029
  %v2794 = vpack.c.b16 %v2034, %v2030
  %v2795 = vpack.c.b16 %v2035, %v2031
  %v2796 = vpack.c.b16 %v2036, %v2032
  %v2797 = vpack.c.b16 %v2041, %v2037
  %v2798 = vpack.c.b16 %v2042, %v2038
  %v2799 = vpack.c.b16 %v2043, %v2039
  %v2800 = vpack.c.b16 %v2044, %v2040
  %v2801 = vpack.c.b16 %v2049, %v2045
  %v2802 = vpack.c.b16 %v2050, %v2046
  %v2803 = vpack.c.b16 %v2051, %v2047
  %v2804 = vpack.c.b16 %v2052, %v2048
  %v2805 = vpack.c.b16 %v2057, %v2053
  %v2806 = vpack.c.b16 %v2058, %v2054
  %v2807 = vpack.c.b16 %v2059, %v2055
  %v2808 = vpack.c.b16 %v2060, %v2056
  %v2809 = vpack.c.b16 %v2065, %v2061
  %v2810 = vpack.c.b16 %v2066, %v2062
  %v2811 = vpack.c.b16 %v2067, %v2063
  %v2812 = vpack.c.b16 %v2068, %v2064
  %v2813 = vpack.c.b16 %v2073, %v2069
  %v2814 = vpack.c.b16 %v2074, %v2070
  %v2815 = vpack.c.b16 %v2075, %v2071
  %v2816 = vpack.c.b16 %v2076, %v2072
  %v2817 = vpack.c.b16 %v2081, %v2077
  %v2818 = vpack.c.b16 %v2082, %v2078
  %v2819 = vpack.c.b16 %v2083, %v2079
  %v2820 = vpack.c.b16 %v2084, %v2080
  %v2821 = vpack.c.b16 %v2089, %v2085
  %v2822 = vpack.c.b16 %v2090, %v2086
  %v2823 = vpack.c.b16 %v2091, %v2087
  %v2824 = vpack.c.b16 %v2092, %v2088
  %v2825 = vpack.c.b16 %v2097, %v2093
  %v2826 = vpack.c.b16 %v2098, %v2094
  %v2827 = vpack.c.b16 %v2099, %v2095
  %v2828 = vpack.c.b16 %v2100, %v2096
  %v2829 = vpack.c.b16 %v2105, %v2101
  %v2830 = vpack.c.b16 %v2106, %v2102
  %v2831 = vpack.c.b16 %v2107, %v2103
  %v2832 = vpack.c.b16 %v2108, %v2104
  %v2833 = vpack.c.b16 %v2113, %v2109
  %v2834 = vpack.c.b16 %v2114, %v2110
  %v2835 = vpack.c.b16 %v2115, %v2111
  %v2836 = vpack.c.b16 %v2116, %v2112
  %v2837 = vpack.c.b16 %v2121, %v2117
  %v2838 = vpack.c.b16 %v2122, %v2118
  %v2839 = vpack.c.b16 %v2123, %v2119
  %v2840 = vpack.c.b16 %v2124, %v2120
  %v2841 = vpack.c.b16 %v2129, %v2125
  %v2842 = vpack.c.b16 %v2130, %v2126
  %v2843 = vpack.c.b16 %v2131, %v2127
  %v2844 = vpack.c.b16 %v2132, %v2128
  %v2845 = vpack.c.b16 %v2137, %v2133
  %v2846 = vpack.c.b16 %v2138, %v2134
  %v2847 = vpack.c.b16 %v2139, %v2135
  %v2848 = vpack.c.b16 %v2140, %v2136
  %v2849 = vpack.c.b16 %v2145, %v2141
  %v2850 = vpack.c.b16 %v2146, %v2142
  %v2851 = vpack.c.b16 %v2147, %v2143
  %v2852 = vpack.c.b16 %v2148, %v2144
  %v2853 = vpack.c.b16 %v2153, %v2149
  %v2854 = vpack.c.b16 %v2154, %v2150
  %v2855 = vpack.c.b16 %v2155, %v2151
  %v2856 = vpack.c.b16 %v2156, %v2152
  %v2857 = vpack.c.b16 %v2161, %v2157
  %v2858 = vpack.c.b16 %v2162, %v2158
  %v2859 = vpack.c.b16 %v2163, %v2159
  %v2860 = vpack.c.b16 %v2164, %v2160
  %v2861 = vpack.c.b16 %v2169, %v2165
  %v2862 = vpack.c.b16 %v2170, %v2166
  %v2863 = vpack.c.b16 %v2171, %v2167
  %v2864 = vpack.c.b16 %v2172, %v2168
  %v2865 = vpack.c.b16 %v2177, %v2173
  %v2866 = vpack.c.b16 %v2178, %v2174
  %v2867 = vpack.c.b16 %v2179, %v2175
  %v2868 = vpack.c.b16 %v2180, %v2176
  %v2869 = vpack.c.b16 %v2185, %v2181
  %v2870 = vpack.c.b16 %v2186, %v2182
  %v2871 = vpack.c.b16 %v2187, %v2183
  %v2872 = vpack.c.b16 %v2188, %v2184
  %v2873 = vpack.c.b16 %v2193, %v2189
  %v2874 = vpack.c.b16 %v2194, %v2190
  %v2875 = vpack.c.b16 %v2195, %v2191
  %v2876 = vpack.c.b16 %v2196, %v2192
  %v2877 = vpack.c.b16 %v2201, %v2197
  %v2878 = vpack.c.b16 %v2202, %v2198
  %v2879 = vpack.c.b16 %v2203, %v2199
  %v2880 = vpack.c.b16 %v2204, %v2200
  %v2881 = vpack.c.b16 %v2209, %v2205
  %v2882 = vpack.c.b16 %v2210, %v2206
  %v2883 = vpack.c.b16 %v2211, %v2207
  %v2884 = vpack.c.b16 %v2212, %v2208
  %v2885 = vpack.c.b16 %v2217, %v2213
  %v2886 = vpack.c.b16 %v2218, %v2214
  %v2887 = vpack.c.b16 %v2219, %v2215
  %v2888 = vpack.c.b16 %v2220, %v2216
  %v2889 = vpack.c.b16 %v2225, %v2221
  %v2890 = vpack.c.b16 %v2226, %v2222
  %v2891 = vpack.c.b16 %v2227, %v2223
  %v2892 = vpack.c.b16 %v2228, %v2224
  %v2893 = vpack.c.b16 %v2233, %v2229
  %v2894 = vpack.c.b16 %v2234, %v2230
  %v2895 = vpack.c.b16 %v2235, %v2231
  %v2896 = vpack.c.b16 %v2236, %v2232
  %v2897 = vpack.c.b16 %v2241, %v2237
  %v2898 = vpack.c.b16 %v2242, %v2238
  %v2899 = vpack.c.b16 %v2243, %v2239
  %v2900 = vpack.c.b16 %v2244, %v2240
  %v2901 = vpack.c.b16 %v2249, %v2245
  %v2902 = vpack.c.b16 %v2250, %v2246
  %v2903 = vpack.c.b16 %v2251, %v2247
  %v2904 = vpack.c.b16 %v2252, %v2248
  %v2905 = vpack.c.b16 %v2257, %v2253
  %v2906 = vpack.c.b16 %v2258, %v2254
  %v2907 = vpack.c.b16 %v2259, %v2255
  %v2908 = vpack.c.b16 %v2260, %v2256
  %v2909 = vpack.c.b16 %v2265, %v2261
  %v2910 = vpack.c.b16 %v2266, %v2262
  %v2911 = vpack.c.b16 %v2267, %v2263
  %v2912 = vpack.c.b16 %v2268, %v2264
  %v2913 = vpack.c.b16 %v2273, %v2269
  %v2914 = vpack.c.b16 %v2274, %v2270
  %v2915 = vpack.c.b16 %v2275, %v2271
  %v2916 = vpack.c.b16 %v2276, %v2272
  %v2917 = vpack.c.b16 %v2281, %v2277
  %v2918 = vpack.c.b16 %v2282, %v2278
  %v2919 = vpack.c.b16 %v2283, %v2279
  %v2920 = vpack.c.b16 %v2284, %v2280
  %v2921 = vpack.c.b16 %v2289, %v2285
  %v2922 = vpack.c.b16 %v2290, %v2286
  %v2923 = vpack.c.b16 %v2291, %v2287
  %v2924 = vpack.c.b16 %v2292, %v2288
  %v2925 = vpack.c.b16 %v2297, %v2293
  %v2926 = vpack.c.b16 %v2298, %v2294
  %v2927 = vpack.c.b16 %v2299, %v2295
  %v2928 = vpack.c.b16 %v2300, %v2296
  %v2929 = vpack.c.b16 %v2305, %v2301
  %v2930 = vpack.c.b16 %v2306, %v2302
  %v2931 = vpack.c.b16 %v2307, %v2303
  %v2932 = vpack.c.b16 %v2308, %v2304
  %v2933 = vpack.c.b16 %v2313, %v2309
  %v2934 = vpack.c.b16 %v2314, %v2310
  %v2935 = vpack.c.b16 %v2315, %v2311
  %v2936 = vpack.c.b16 %v2316, %v2312
  %v2937 = vpack.c.b16 %v2321, %v2317
  %v2938 = vpack.c.b16 %v2322, %v2318
  %v2939 = vpack.c.b16 %v2323, %v2319
  %v2940 = vpack.c.b16 %v2324, %v2320
  %v2941 = vpack.c.b16 %v2329, %v2325
  %v2942 = vpack.c.b16 %v2330, %v2326
  %v2943 = vpack.c.b16 %v2331, %v2327
  %v2944 = vpack.c.b16 %v2332, %v2328
  %v2945 = vpack.c.b16 %v2337, %v2333
  %v2946 = vpack.c.b16 %v2338, %v2334
  %v2947 = vpack.c.b16 %v2339, %v2335
  %v2948 = vpack.c.b16 %v2340, %v2336
  %v2949 = vpack.c.b16 %v2345, %v2341
  %v2950 = vpack.c.b16 %v2346, %v2342
  %v2951 = vpack.c.b16 %v2347, %v2343
  %v2952 = vpack.c.b16 %v2348, %v2344
  %v2953 = vpack.c.b16 %v2353, %v2349
  %v2954 = vpack.c.b16 %v2354, %v2350
  %v2955 = vpack.c.b16 %v2355, %v2351
  %v2956 = vpack.c.b16 %v2356, %v2352
  %v2957 = vpack.c.b16 %v2361, %v2357
  %v2958 = vpack.c.b16 %v2362, %v2358
  %v2959 = vpack.c.b16 %v2363, %v2359
  %v2960 = vpack.c.b16 %v2364, %v2360
  %v2961 = vpack.c.b16 %v2369, %v2365
  %v2962 = vpack.c.b16 %v2370, %v2366
  %v2963 = vpack.c.b16 %v2371, %v2367
  %v2964 = vpack.c.b16 %v2372, %v2368
  %v2965 = vpack.c.b16 %v2377, %v2373
  %v2966 = vpack.c.b16 %v2378, %v2374
  %v2967 = vpack.c.b16 %v2379, %v2375
  %v2968 = vpack.c.b16 %v2380, %v2376
  %v2969 = vpack.c.b16 %v2385, %v2381
  %v2970 = vpack.c.b16 %v2386, %v2382
  %v2971 = vpack.c.b16 %v2387, %v2383
  %v2972 = vpack.c.b16 %v2388, %v2384
  %v2973 = vpack.c.b16 %v2393, %v2389
  %v2974 = vpack.c.b16 %v2394, %v2390
  %v2975 = vpack.c.b16 %v2395, %v2391
  %v2976 = vpack.c.b16 %v2396, %v2392
  %v2977 = vpack.c.b16 %v2401, %v2397
  %v2978 = vpack.c.b16 %v2402, %v2398
  %v2979 = vpack.c.b16 %v2403, %v2399
  %v2980 = vpack.c.b16 %v2404, %v2400
  %3557 = vmatprep.subr.bf16.mxu0 %v2434
  %3558 = vmatpush1.bf16.msra.mxu0 %v2433
  %3559 = vmatprep.subr.bf16.mxu0 %v2430
  %3560 = vmatpush1.bf16.msra.mxu0 %v2429
  %3561 = vmatprep.subr.bf16.mxu0 %v2426
  %3562 = vmatpush1.bf16.msra.mxu0 %v2425
  %3563 = vmatprep.subr.bf16.mxu0 %v2422
  %3564 = vmatpush1.bf16.msra.mxu0 %v2421
  %3565 = vmatprep.subr.bf16.mxu0 %v2418
  %3566 = vmatpush1.bf16.msra.mxu0 %v2417
  %3567 = vmatprep.subr.bf16.mxu0 %v2414
  %3568 = vmatpush1.bf16.msra.mxu0 %v2413
  %3569 = vmatprep.subr.bf16.mxu0 %v2410
  %3570 = vmatpush1.bf16.msra.mxu0 %v2409
  %3571 = vmatprep.subr.bf16.mxu0 %v2406
  %3572 = vmatpush1.bf16.msra.mxu0 %v2405
  %3573 = vmatprep.subr.bf16.mxu0 %v2466
  %3574 = vmatpush2.bf16.msra.mxu0 %v2465
  %3575 = vmatprep.subr.bf16.mxu0 %v2462
  %3576 = vmatpush2.bf16.msra.mxu0 %v2461
  %3577 = vmatprep.subr.bf16.mxu0 %v2458
  %3578 = vmatpush2.bf16.msra.mxu0 %v2457
  %3579 = vmatprep.subr.bf16.mxu0 %v2454
  %3580 = vmatpush2.bf16.msra.mxu0 %v2453
  %3581 = vmatprep.subr.bf16.mxu0 %v2450
  %3582 = vmatpush2.bf16.msra.mxu0 %v2449
  %3583 = vmatprep.subr.bf16.mxu0 %v2446
  %3584 = vmatpush2.bf16.msra.mxu0 %v2445
  %3585 = vmatprep.subr.bf16.mxu0 %v2442
  %3586 = vmatpush2.bf16.msra.mxu0 %v2441
  %3587 = vmatprep.subr.bf16.mxu0 %v2438
  %3588 = vmatpush2.bf16.msra.mxu0 %v2437
  %3589 = vmatprep.mubr.bf16.mxu0 %v48
  %3590 = vmatmul.mubr.bf16.gmra.mxu0 %v47
  %v3591 = vpop.f32.mrf.mxu0
  %v3592 = vadd.f32 0.0, %v3591
  %v3593 = vpop.f32.mrf.mxu0
  %v3594 = vadd.f32 0.0, %v3593
  %v3595 = vpop.f32.mrf.mxu0
  %v3596 = vpop.f32.mrf.mxu0
  %3597 = vdwg.mxu0
  %3598 = vmatprep.subr.bf16.mxu0 %v2498
  %3599 = vmatpush1.bf16.msra.mxu0 %v2497
  %3600 = vmatprep.subr.bf16.mxu0 %v2494
  %3601 = vmatpush1.bf16.msra.mxu0 %v2493
  %3602 = vmatprep.subr.bf16.mxu0 %v2490
  %3603 = vmatpush1.bf16.msra.mxu0 %v2489
  %3604 = vmatprep.subr.bf16.mxu0 %v2486
  %3605 = vmatpush1.bf16.msra.mxu0 %v2485
  %3606 = vmatprep.subr.bf16.mxu0 %v2482
  %3607 = vmatpush1.bf16.msra.mxu0 %v2481
  %3608 = vmatprep.subr.bf16.mxu0 %v2478
  %3609 = vmatpush1.bf16.msra.mxu0 %v2477
  %3610 = vmatprep.subr.bf16.mxu0 %v2474
  %3611 = vmatpush1.bf16.msra.mxu0 %v2473
  %3612 = vmatprep.subr.bf16.mxu0 %v2470
  %3613 = vmatpush1.bf16.msra.mxu0 %v2469
  %3614 = vmatprep.subr.bf16.mxu0 %v2530
  %3615 = vmatpush2.bf16.msra.mxu0 %v2529
  %3616 = vmatprep.subr.bf16.mxu0 %v2526
  %3617 = vmatpush2.bf16.msra.mxu0 %v2525
  %3618 = vmatprep.subr.bf16.mxu0 %v2522
  %3619 = vmatpush2.bf16.msra.mxu0 %v2521
  %3620 = vmatprep.subr.bf16.mxu0 %v2518
  %3621 = vmatpush2.bf16.msra.mxu0 %v2517
  %3622 = vmatprep.subr.bf16.mxu0 %v2514
  %3623 = vmatpush2.bf16.msra.mxu0 %v2513
  %3624 = vmatprep.subr.bf16.mxu0 %v2510
  %3625 = vmatpush2.bf16.msra.mxu0 %v2509
  %3626 = vmatprep.subr.bf16.mxu0 %v2506
  %3627 = vmatpush2.bf16.msra.mxu0 %v2505
  %3628 = vmatprep.subr.bf16.mxu0 %v2502
  %3629 = vmatpush2.bf16.msra.mxu0 %v2501
  %3630 = vmatprep.mubr.bf16.mxu0 %v50
  %3631 = vmatmul.mubr.bf16.gmra.mxu0 %v49
  %v3632 = vpop.f32.mrf.mxu0
  %v3633 = vadd.f32 %v3592, %v3632
  %v3634 = vpop.f32.mrf.mxu0
  %v3635 = vadd.f32 %v3594, %v3634
  %v3636 = vpop.f32.mrf.mxu0
  %v3637 = vpop.f32.mrf.mxu0
  %3638 = vdwg.mxu0
  %3639 = vmatprep.subr.bf16.mxu0 %v2562
  %3640 = vmatpush1.bf16.msra.mxu0 %v2561
  %3641 = vmatprep.subr.bf16.mxu0 %v2558
  %3642 = vmatpush1.bf16.msra.mxu0 %v2557
  %3643 = vmatprep.subr.bf16.mxu0 %v2554
  %3644 = vmatpush1.bf16.msra.mxu0 %v2553
  %3645 = vmatprep.subr.bf16.mxu0 %v2550
  %3646 = vmatpush1.bf16.msra.mxu0 %v2549
  %3647 = vmatprep.subr.bf16.mxu0 %v2546
  %3648 = vmatpush1.bf16.msra.mxu0 %v2545
  %3649 = vmatprep.subr.bf16.mxu0 %v2542
  %3650 = vmatpush1.bf16.msra.mxu0 %v2541
  %3651 = vmatprep.subr.bf16.mxu0 %v2538
  %3652 = vmatpush1.bf16.msra.mxu0 %v2537
  %3653 = vmatprep.subr.bf16.mxu0 %v2534
  %3654 = vmatpush1.bf16.msra.mxu0 %v2533
  %3655 = vmatprep.subr.bf16.mxu0 %v2594
  %3656 = vmatpush2.bf16.msra.mxu0 %v2593
  %3657 = vmatprep.subr.bf16.mxu0 %v2590
  %3658 = vmatpush2.bf16.msra.mxu0 %v2589
  %3659 = vmatprep.subr.bf16.mxu0 %v2586
  %3660 = vmatpush2.bf16.msra.mxu0 %v2585
  %3661 = vmatprep.subr.bf16.mxu0 %v2582
  %3662 = vmatpush2.bf16.msra.mxu0 %v2581
  %3663 = vmatprep.subr.bf16.mxu0 %v2578
  %3664 = vmatpush2.bf16.msra.mxu0 %v2577
  %3665 = vmatprep.subr.bf16.mxu0 %v2574
  %3666 = vmatpush2.bf16.msra.mxu0 %v2573
  %3667 = vmatprep.subr.bf16.mxu0 %v2570
  %3668 = vmatpush2.bf16.msra.mxu0 %v2569
  %3669 = vmatprep.subr.bf16.mxu0 %v2566
  %3670 = vmatpush2.bf16.msra.mxu0 %v2565
  %3671 = vmatprep.mubr.bf16.mxu0 %v52
  %3672 = vmatmul.mubr.bf16.gmra.mxu0 %v51
  %v3673 = vpop.f32.mrf.mxu0
  %v3674 = vadd.f32 %v3633, %v3673
  %v3675 = vpop.f32.mrf.mxu0
  %v3676 = vadd.f32 %v3635, %v3675
  %v3677 = vpop.f32.mrf.mxu0
  %v3678 = vpop.f32.mrf.mxu0
  %3679 = vdwg.mxu0
  %3680 = vmatprep.subr.bf16.mxu0 %v2626
  %3681 = vmatpush1.bf16.msra.mxu0 %v2625
  %3682 = vmatprep.subr.bf16.mxu0 %v2622
  %3683 = vmatpush1.bf16.msra.mxu0 %v2621
  %3684 = vmatprep.subr.bf16.mxu0 %v2618
  %3685 = vmatpush1.bf16.msra.mxu0 %v2617
  %3686 = vmatprep.subr.bf16.mxu0 %v2614
  %3687 = vmatpush1.bf16.msra.mxu0 %v2613
  %3688 = vmatprep.subr.bf16.mxu0 %v2610
  %3689 = vmatpush1.bf16.msra.mxu0 %v2609
  %3690 = vmatprep.subr.bf16.mxu0 %v2606
  %3691 = vmatpush1.bf16.msra.mxu0 %v2605
  %3692 = vmatprep.subr.bf16.mxu0 %v2602
  %3693 = vmatpush1.bf16.msra.mxu0 %v2601
  %3694 = vmatprep.subr.bf16.mxu0 %v2598
  %3695 = vmatpush1.bf16.msra.mxu0 %v2597
  %3696 = vmatprep.subr.bf16.mxu0 %v2658
  %3697 = vmatpush2.bf16.msra.mxu0 %v2657
  %3698 = vmatprep.subr.bf16.mxu0 %v2654
  %3699 = vmatpush2.bf16.msra.mxu0 %v2653
  %3700 = vmatprep.subr.bf16.mxu0 %v2650
  %3701 = vmatpush2.bf16.msra.mxu0 %v2649
  %3702 = vmatprep.subr.bf16.mxu0 %v2646
  %3703 = vmatpush2.bf16.msra.mxu0 %v2645
  %3704 = vmatprep.subr.bf16.mxu0 %v2642
  %3705 = vmatpush2.bf16.msra.mxu0 %v2641
  %3706 = vmatprep.subr.bf16.mxu0 %v2638
  %3707 = vmatpush2.bf16.msra.mxu0 %v2637
  %3708 = vmatprep.subr.bf16.mxu0 %v2634
  %3709 = vmatpush2.bf16.msra.mxu0 %v2633
  %3710 = vmatprep.subr.bf16.mxu0 %v2630
  %3711 = vmatpush2.bf16.msra.mxu0 %v2629
  %3712 = vmatprep.mubr.bf16.mxu0 %v54
  %3713 = vmatmul.mubr.bf16.gmra.mxu0 %v53
  %v3714 = vpop.f32.mrf.mxu0
  %v3715 = vadd.f32 %v3674, %v3714
  %v3716 = vpop.f32.mrf.mxu0
  %v3717 = vadd.f32 %v3676, %v3716
  %v3718 = vpop.f32.mrf.mxu0
  %v3719 = vpop.f32.mrf.mxu0
  %3720 = vdwg.mxu0
  %3721 = vmatprep.subr.bf16.mxu0 %v2690
  %3722 = vmatpush1.bf16.msra.mxu0 %v2689
  %3723 = vmatprep.subr.bf16.mxu0 %v2686
  %3724 = vmatpush1.bf16.msra.mxu0 %v2685
  %3725 = vmatprep.subr.bf16.mxu0 %v2682
  %3726 = vmatpush1.bf16.msra.mxu0 %v2681
  %3727 = vmatprep.subr.bf16.mxu0 %v2678
  %3728 = vmatpush1.bf16.msra.mxu0 %v2677
  %3729 = vmatprep.subr.bf16.mxu0 %v2674
  %3730 = vmatpush1.bf16.msra.mxu0 %v2673
  %3731 = vmatprep.subr.bf16.mxu0 %v2670
  %3732 = vmatpush1.bf16.msra.mxu0 %v2669
  %3733 = vmatprep.subr.bf16.mxu0 %v2666
  %3734 = vmatpush1.bf16.msra.mxu0 %v2665
  %3735 = vmatprep.subr.bf16.mxu0 %v2662
  %3736 = vmatpush1.bf16.msra.mxu0 %v2661
  %3737 = vmatprep.subr.bf16.mxu0 %v2722
  %3738 = vmatpush2.bf16.msra.mxu0 %v2721
  %3739 = vmatprep.subr.bf16.mxu0 %v2718
  %3740 = vmatpush2.bf16.msra.mxu0 %v2717
  %3741 = vmatprep.subr.bf16.mxu0 %v2714
  %3742 = vmatpush2.bf16.msra.mxu0 %v2713
  %3743 = vmatprep.subr.bf16.mxu0 %v2710
  %3744 = vmatpush2.bf16.msra.mxu0 %v2709
  %3745 = vmatprep.subr.bf16.mxu0 %v2706
  %3746 = vmatpush2.bf16.msra.mxu0 %v2705
  %3747 = vmatprep.subr.bf16.mxu0 %v2702
  %3748 = vmatpush2.bf16.msra.mxu0 %v2701
  %3749 = vmatprep.subr.bf16.mxu0 %v2698
  %3750 = vmatpush2.bf16.msra.mxu0 %v2697
  %3751 = vmatprep.subr.bf16.mxu0 %v2694
  %3752 = vmatpush2.bf16.msra.mxu0 %v2693
  %3753 = vmatprep.mubr.bf16.mxu0 %v56
  %3754 = vmatmul.mubr.bf16.gmra.mxu0 %v55
  %v3755 = vpop.f32.mrf.mxu0
  %v3756 = vadd.f32 %v3715, %v3755
  %v3757 = vpop.f32.mrf.mxu0
  %v3758 = vadd.f32 %v3717, %v3757
  %v3759 = vpop.f32.mrf.mxu0
  %v3760 = vpop.f32.mrf.mxu0
  %3761 = vdwg.mxu0
  %3762 = vmatprep.subr.bf16.mxu0 %v2754
  %3763 = vmatpush1.bf16.msra.mxu0 %v2753
  %3764 = vmatprep.subr.bf16.mxu0 %v2750
  %3765 = vmatpush1.bf16.msra.mxu0 %v2749
  %3766 = vmatprep.subr.bf16.mxu0 %v2746
  %3767 = vmatpush1.bf16.msra.mxu0 %v2745
  %3768 = vmatprep.subr.bf16.mxu0 %v2742
  %3769 = vmatpush1.bf16.msra.mxu0 %v2741
  %3770 = vmatprep.subr.bf16.mxu0 %v2738
  %3771 = vmatpush1.bf16.msra.mxu0 %v2737
  %3772 = vmatprep.subr.bf16.mxu0 %v2734
  %3773 = vmatpush1.bf16.msra.mxu0 %v2733
  %3774 = vmatprep.subr.bf16.mxu0 %v2730
  %3775 = vmatpush1.bf16.msra.mxu0 %v2729
  %3776 = vmatprep.subr.bf16.mxu0 %v2726
  %3777 = vmatpush1.bf16.msra.mxu0 %v2725
  %3778 = vmatprep.subr.bf16.mxu0 %v2786
  %3779 = vmatpush2.bf16.msra.mxu0 %v2785
  %3780 = vmatprep.subr.bf16.mxu0 %v2782
  %3781 = vmatpush2.bf16.msra.mxu0 %v2781
  %3782 = vmatprep.subr.bf16.mxu0 %v2778
  %3783 = vmatpush2.bf16.msra.mxu0 %v2777
  %3784 = vmatprep.subr.bf16.mxu0 %v2774
  %3785 = vmatpush2.bf16.msra.mxu0 %v2773
  %3786 = vmatprep.subr.bf16.mxu0 %v2770
  %3787 = vmatpush2.bf16.msra.mxu0 %v2769
  %3788 = vmatprep.subr.bf16.mxu0 %v2766
  %3789 = vmatpush2.bf16.msra.mxu0 %v2765
  %3790 = vmatprep.subr.bf16.mxu0 %v2762
  %3791 = vmatpush2.bf16.msra.mxu0 %v2761
  %3792 = vmatprep.subr.bf16.mxu0 %v2758
  %3793 = vmatpush2.bf16.msra.mxu0 %v2757
  %3794 = vmatprep.mubr.bf16.mxu0 %v58
  %3795 = vmatmul.mubr.bf16.gmra.mxu0 %v57
  %v3796 = vpop.f32.mrf.mxu0
  %v3797 = vadd.f32 %v3756, %v3796
  %v3798 = vpop.f32.mrf.mxu0
  %v3799 = vadd.f32 %v3758, %v3798
  %v3800 = vpop.f32.mrf.mxu0
  %v3801 = vpop.f32.mrf.mxu0
  %3802 = vdwg.mxu0
  %3803 = vmatprep.subr.bf16.mxu0 %v2818
  %3804 = vmatpush1.bf16.msra.mxu0 %v2817
  %3805 = vmatprep.subr.bf16.mxu0 %v2814
  %3806 = vmatpush1.bf16.msra.mxu0 %v2813
  %3807 = vmatprep.subr.bf16.mxu0 %v2810
  %3808 = vmatpush1.bf16.msra.mxu0 %v2809
  %3809 = vmatprep.subr.bf16.mxu0 %v2806
  %3810 = vmatpush1.bf16.msra.mxu0 %v2805
  %3811 = vmatprep.subr.bf16.mxu0 %v2802
  %3812 = vmatpush1.bf16.msra.mxu0 %v2801
  %3813 = vmatprep.subr.bf16.mxu0 %v2798
  %3814 = vmatpush1.bf16.msra.mxu0 %v2797
  %3815 = vmatprep.subr.bf16.mxu0 %v2794
  %3816 = vmatpush1.bf16.msra.mxu0 %v2793
  %3817 = vmatprep.subr.bf16.mxu0 %v2790
  %3818 = vmatpush1.bf16.msra.mxu0 %v2789
  %3819 = vmatprep.subr.bf16.mxu0 %v2850
  %3820 = vmatpush2.bf16.msra.mxu0 %v2849
  %3821 = vmatprep.subr.bf16.mxu0 %v2846
  %3822 = vmatpush2.bf16.msra.mxu0 %v2845
  %3823 = vmatprep.subr.bf16.mxu0 %v2842
  %3824 = vmatpush2.bf16.msra.mxu0 %v2841
  %3825 = vmatprep.subr.bf16.mxu0 %v2838
  %3826 = vmatpush2.bf16.msra.mxu0 %v2837
  %3827 = vmatprep.subr.bf16.mxu0 %v2834
  %3828 = vmatpush2.bf16.msra.mxu0 %v2833
  %3829 = vmatprep.subr.bf16.mxu0 %v2830
  %3830 = vmatpush2.bf16.msra.mxu0 %v2829
  %3831 = vmatprep.subr.bf16.mxu0 %v2826
  %3832 = vmatpush2.bf16.msra.mxu0 %v2825
  %3833 = vmatprep.subr.bf16.mxu0 %v2822
  %3834 = vmatpush2.bf16.msra.mxu0 %v2821
  %3835 = vmatprep.mubr.bf16.mxu0 %v60
  %3836 = vmatmul.mubr.bf16.gmra.mxu0 %v59
  %v3837 = vpop.f32.mrf.mxu0
  %v3838 = vadd.f32 %v3797, %v3837
  %v3839 = vpop.f32.mrf.mxu0
  %v3840 = vadd.f32 %v3799, %v3839
  %v3841 = vpop.f32.mrf.mxu0
  %v3842 = vpop.f32.mrf.mxu0
  %3843 = vdwg.mxu0
  %3844 = vmatprep.subr.bf16.mxu0 %v2882
  %3845 = vmatpush1.bf16.msra.mxu0 %v2881
  %3846 = vmatprep.subr.bf16.mxu0 %v2878
  %3847 = vmatpush1.bf16.msra.mxu0 %v2877
  %3848 = vmatprep.subr.bf16.mxu0 %v2874
  %3849 = vmatpush1.bf16.msra.mxu0 %v2873
  %3850 = vmatprep.subr.bf16.mxu0 %v2870
  %3851 = vmatpush1.bf16.msra.mxu0 %v2869
  %3852 = vmatprep.subr.bf16.mxu0 %v2866
  %3853 = vmatpush1.bf16.msra.mxu0 %v2865
  %3854 = vmatprep.subr.bf16.mxu0 %v2862
  %3855 = vmatpush1.bf16.msra.mxu0 %v2861
  %3856 = vmatprep.subr.bf16.mxu0 %v2858
  %3857 = vmatpush1.bf16.msra.mxu0 %v2857
  %3858 = vmatprep.subr.bf16.mxu0 %v2854
  %3859 = vmatpush1.bf16.msra.mxu0 %v2853
  %3860 = vmatprep.subr.bf16.mxu0 %v2914
  %3861 = vmatpush2.bf16.msra.mxu0 %v2913
  %3862 = vmatprep.subr.bf16.mxu0 %v2910
  %3863 = vmatpush2.bf16.msra.mxu0 %v2909
  %3864 = vmatprep.subr.bf16.mxu0 %v2906
  %3865 = vmatpush2.bf16.msra.mxu0 %v2905
  %3866 = vmatprep.subr.bf16.mxu0 %v2902
  %3867 = vmatpush2.bf16.msra.mxu0 %v2901
  %3868 = vmatprep.subr.bf16.mxu0 %v2898
  %3869 = vmatpush2.bf16.msra.mxu0 %v2897
  %3870 = vmatprep.subr.bf16.mxu0 %v2894
  %3871 = vmatpush2.bf16.msra.mxu0 %v2893
  %3872 = vmatprep.subr.bf16.mxu0 %v2890
  %3873 = vmatpush2.bf16.msra.mxu0 %v2889
  %3874 = vmatprep.subr.bf16.mxu0 %v2886
  %3875 = vmatpush2.bf16.msra.mxu0 %v2885
  %3876 = vmatprep.mubr.bf16.mxu0 %v62
  %3877 = vmatmul.mubr.bf16.gmra.mxu0 %v61
  %v3878 = vpop.f32.mrf.mxu0
  %v3879 = vadd.f32 %v3838, %v3878
  %v3880 = vpop.f32.mrf.mxu0
  %v3881 = vadd.f32 %v3840, %v3880
  %v3882 = vpop.f32.mrf.mxu0
  %v3883 = vpop.f32.mrf.mxu0
  %3884 = vdwg.mxu0
  %3885 = vmatprep.subr.bf16.mxu0 %v2946
  %3886 = vmatpush1.bf16.msra.mxu0 %v2945
  %3887 = vmatprep.subr.bf16.mxu0 %v2942
  %3888 = vmatpush1.bf16.msra.mxu0 %v2941
  %3889 = vmatprep.subr.bf16.mxu0 %v2938
  %3890 = vmatpush1.bf16.msra.mxu0 %v2937
  %3891 = vmatprep.subr.bf16.mxu0 %v2934
  %3892 = vmatpush1.bf16.msra.mxu0 %v2933
  %3893 = vmatprep.subr.bf16.mxu0 %v2930
  %3894 = vmatpush1.bf16.msra.mxu0 %v2929
  %3895 = vmatprep.subr.bf16.mxu0 %v2926
  %3896 = vmatpush1.bf16.msra.mxu0 %v2925
  %3897 = vmatprep.subr.bf16.mxu0 %v2922
  %3898 = vmatpush1.bf16.msra.mxu0 %v2921
  %3899 = vmatprep.subr.bf16.mxu0 %v2918
  %3900 = vmatpush1.bf16.msra.mxu0 %v2917
  %3901 = vmatprep.subr.bf16.mxu0 %v2978
  %3902 = vmatpush2.bf16.msra.mxu0 %v2977
  %3903 = vmatprep.subr.bf16.mxu0 %v2974
  %3904 = vmatpush2.bf16.msra.mxu0 %v2973
  %3905 = vmatprep.subr.bf16.mxu0 %v2970
  %3906 = vmatpush2.bf16.msra.mxu0 %v2969
  %3907 = vmatprep.subr.bf16.mxu0 %v2966
  %3908 = vmatpush2.bf16.msra.mxu0 %v2965
  %3909 = vmatprep.subr.bf16.mxu0 %v2962
  %3910 = vmatpush2.bf16.msra.mxu0 %v2961
  %3911 = vmatprep.subr.bf16.mxu0 %v2958
  %3912 = vmatpush2.bf16.msra.mxu0 %v2957
  %3913 = vmatprep.subr.bf16.mxu0 %v2954
  %3914 = vmatpush2.bf16.msra.mxu0 %v2953
  %3915 = vmatprep.subr.bf16.mxu0 %v2950
  %3916 = vmatpush2.bf16.msra.mxu0 %v2949
  %3917 = vmatprep.mubr.bf16.mxu0 %v64
  %3918 = vmatmul.mubr.bf16.gmra.mxu0 %v63
  %v3919 = vpop.f32.mrf.mxu0
  %v3920 = vadd.f32 %v3879, %v3919
  %v3921 = vpop.f32.mrf.mxu0
  %v3922 = vadd.f32 %v3881, %v3921
  %v3923 = vpop.f32.mrf.mxu0
  %v3924 = vpop.f32.mrf.mxu0
  %3925 = vdwg.mxu0
  %3926 = vmatprep.subr.bf16.mxu0 %v2436
  %3927 = vmatpush1.bf16.msra.mxu0 %v2435
  %3928 = vmatprep.subr.bf16.mxu0 %v2432
  %3929 = vmatpush1.bf16.msra.mxu0 %v2431
  %3930 = vmatprep.subr.bf16.mxu0 %v2428
  %3931 = vmatpush1.bf16.msra.mxu0 %v2427
  %3932 = vmatprep.subr.bf16.mxu0 %v2424
  %3933 = vmatpush1.bf16.msra.mxu0 %v2423
  %3934 = vmatprep.subr.bf16.mxu0 %v2420
  %3935 = vmatpush1.bf16.msra.mxu0 %v2419
  %3936 = vmatprep.subr.bf16.mxu0 %v2416
  %3937 = vmatpush1.bf16.msra.mxu0 %v2415
  %3938 = vmatprep.subr.bf16.mxu0 %v2412
  %3939 = vmatpush1.bf16.msra.mxu0 %v2411
  %3940 = vmatprep.subr.bf16.mxu0 %v2408
  %3941 = vmatpush1.bf16.msra.mxu0 %v2407
  %3942 = vmatprep.subr.bf16.mxu0 %v2468
  %3943 = vmatpush2.bf16.msra.mxu0 %v2467
  %3944 = vmatprep.subr.bf16.mxu0 %v2464
  %3945 = vmatpush2.bf16.msra.mxu0 %v2463
  %3946 = vmatprep.subr.bf16.mxu0 %v2460
  %3947 = vmatpush2.bf16.msra.mxu0 %v2459
  %3948 = vmatprep.subr.bf16.mxu0 %v2456
  %3949 = vmatpush2.bf16.msra.mxu0 %v2455
  %3950 = vmatprep.subr.bf16.mxu0 %v2452
  %3951 = vmatpush2.bf16.msra.mxu0 %v2451
  %3952 = vmatprep.subr.bf16.mxu0 %v2448
  %3953 = vmatpush2.bf16.msra.mxu0 %v2447
  %3954 = vmatprep.subr.bf16.mxu0 %v2444
  %3955 = vmatpush2.bf16.msra.mxu0 %v2443
  %3956 = vmatprep.subr.bf16.mxu0 %v2440
  %3957 = vmatpush2.bf16.msra.mxu0 %v2439
  %3958 = vmatprep.mubr.bf16.mxu0 %v48
  %3959 = vmatmul.mubr.bf16.gmra.mxu0 %v47
  %v3960 = vpop.f32.mrf.mxu0
  %v3961 = vadd.f32 0.0, %v3960
  %v3962 = vpop.f32.mrf.mxu0
  %v3963 = vadd.f32 0.0, %v3962
  %v3964 = vpop.f32.mrf.mxu0
  %v3965 = vpop.f32.mrf.mxu0
  %3966 = vdwg.mxu0
  %3967 = vmatprep.subr.bf16.mxu0 %v2500
  %3968 = vmatpush1.bf16.msra.mxu0 %v2499
  %3969 = vmatprep.subr.bf16.mxu0 %v2496
  %3970 = vmatpush1.bf16.msra.mxu0 %v2495
  %3971 = vmatprep.subr.bf16.mxu0 %v2492
  %3972 = vmatpush1.bf16.msra.mxu0 %v2491
  %3973 = vmatprep.subr.bf16.mxu0 %v2488
  %3974 = vmatpush1.bf16.msra.mxu0 %v2487
  %3975 = vmatprep.subr.bf16.mxu0 %v2484
  %3976 = vmatpush1.bf16.msra.mxu0 %v2483
  %3977 = vmatprep.subr.bf16.mxu0 %v2480
  %3978 = vmatpush1.bf16.msra.mxu0 %v2479
  %3979 = vmatprep.subr.bf16.mxu0 %v2476
  %3980 = vmatpush1.bf16.msra.mxu0 %v2475
  %3981 = vmatprep.subr.bf16.mxu0 %v2472
  %3982 = vmatpush1.bf16.msra.mxu0 %v2471
  %3983 = vmatprep.subr.bf16.mxu0 %v2532
  %3984 = vmatpush2.bf16.msra.mxu0 %v2531
  %3985 = vmatprep.subr.bf16.mxu0 %v2528
  %3986 = vmatpush2.bf16.msra.mxu0 %v2527
  %3987 = vmatprep.subr.bf16.mxu0 %v2524
  %3988 = vmatpush2.bf16.msra.mxu0 %v2523
  %3989 = vmatprep.subr.bf16.mxu0 %v2520
  %3990 = vmatpush2.bf16.msra.mxu0 %v2519
  %3991 = vmatprep.subr.bf16.mxu0 %v2516
  %3992 = vmatpush2.bf16.msra.mxu0 %v2515
  %3993 = vmatprep.subr.bf16.mxu0 %v2512
  %3994 = vmatpush2.bf16.msra.mxu0 %v2511
  %3995 = vmatprep.subr.bf16.mxu0 %v2508
  %3996 = vmatpush2.bf16.msra.mxu0 %v2507
  %3997 = vmatprep.subr.bf16.mxu0 %v2504
  %3998 = vmatpush2.bf16.msra.mxu0 %v2503
  %3999 = vmatprep.mubr.bf16.mxu0 %v50
  %4000 = vmatmul.mubr.bf16.gmra.mxu0 %v49
  %v4001 = vpop.f32.mrf.mxu0
  %v4002 = vadd.f32 %v3961, %v4001
  %v4003 = vpop.f32.mrf.mxu0
  %v4004 = vadd.f32 %v3963, %v4003
  %v4005 = vpop.f32.mrf.mxu0
  %v4006 = vpop.f32.mrf.mxu0
  %4007 = vdwg.mxu0
  %4008 = vmatprep.subr.bf16.mxu0 %v2564
  %4009 = vmatpush1.bf16.msra.mxu0 %v2563
  %4010 = vmatprep.subr.bf16.mxu0 %v2560
  %4011 = vmatpush1.bf16.msra.mxu0 %v2559
  %4012 = vmatprep.subr.bf16.mxu0 %v2556
  %4013 = vmatpush1.bf16.msra.mxu0 %v2555
  %4014 = vmatprep.subr.bf16.mxu0 %v2552
  %4015 = vmatpush1.bf16.msra.mxu0 %v2551
  %4016 = vmatprep.subr.bf16.mxu0 %v2548
  %4017 = vmatpush1.bf16.msra.mxu0 %v2547
  %4018 = vmatprep.subr.bf16.mxu0 %v2544
  %4019 = vmatpush1.bf16.msra.mxu0 %v2543
  %4020 = vmatprep.subr.bf16.mxu0 %v2540
  %4021 = vmatpush1.bf16.msra.mxu0 %v2539
  %4022 = vmatprep.subr.bf16.mxu0 %v2536
  %4023 = vmatpush1.bf16.msra.mxu0 %v2535
  %4024 = vmatprep.subr.bf16.mxu0 %v2596
  %4025 = vmatpush2.bf16.msra.mxu0 %v2595
  %4026 = vmatprep.subr.bf16.mxu0 %v2592
  %4027 = vmatpush2.bf16.msra.mxu0 %v2591
  %4028 = vmatprep.subr.bf16.mxu0 %v2588
  %4029 = vmatpush2.bf16.msra.mxu0 %v2587
  %4030 = vmatprep.subr.bf16.mxu0 %v2584
  %4031 = vmatpush2.bf16.msra.mxu0 %v2583
  %4032 = vmatprep.subr.bf16.mxu0 %v2580
  %4033 = vmatpush2.bf16.msra.mxu0 %v2579
  %4034 = vmatprep.subr.bf16.mxu0 %v2576
  %4035 = vmatpush2.bf16.msra.mxu0 %v2575
  %4036 = vmatprep.subr.bf16.mxu0 %v2572
  %4037 = vmatpush2.bf16.msra.mxu0 %v2571
  %4038 = vmatprep.subr.bf16.mxu0 %v2568
  %4039 = vmatpush2.bf16.msra.mxu0 %v2567
  %4040 = vmatprep.mubr.bf16.mxu0 %v52
  %4041 = vmatmul.mubr.bf16.gmra.mxu0 %v51
  %v4042 = vpop.f32.mrf.mxu0
  %v4043 = vadd.f32 %v4002, %v4042
  %v4044 = vpop.f32.mrf.mxu0
  %v4045 = vadd.f32 %v4004, %v4044
  %v4046 = vpop.f32.mrf.mxu0
  %v4047 = vpop.f32.mrf.mxu0
  %4048 = vdwg.mxu0
  %4049 = vmatprep.subr.bf16.mxu0 %v2628
  %4050 = vmatpush1.bf16.msra.mxu0 %v2627
  %4051 = vmatprep.subr.bf16.mxu0 %v2624
  %4052 = vmatpush1.bf16.msra.mxu0 %v2623
  %4053 = vmatprep.subr.bf16.mxu0 %v2620
  %4054 = vmatpush1.bf16.msra.mxu0 %v2619
  %4055 = vmatprep.subr.bf16.mxu0 %v2616
  %4056 = vmatpush1.bf16.msra.mxu0 %v2615
  %4057 = vmatprep.subr.bf16.mxu0 %v2612
  %4058 = vmatpush1.bf16.msra.mxu0 %v2611
  %4059 = vmatprep.subr.bf16.mxu0 %v2608
  %4060 = vmatpush1.bf16.msra.mxu0 %v2607
  %4061 = vmatprep.subr.bf16.mxu0 %v2604
  %4062 = vmatpush1.bf16.msra.mxu0 %v2603
  %4063 = vmatprep.subr.bf16.mxu0 %v2600
  %4064 = vmatpush1.bf16.msra.mxu0 %v2599
  %4065 = vmatprep.subr.bf16.mxu0 %v2660
  %4066 = vmatpush2.bf16.msra.mxu0 %v2659
  %4067 = vmatprep.subr.bf16.mxu0 %v2656
  %4068 = vmatpush2.bf16.msra.mxu0 %v2655
  %4069 = vmatprep.subr.bf16.mxu0 %v2652
  %4070 = vmatpush2.bf16.msra.mxu0 %v2651
  %4071 = vmatprep.subr.bf16.mxu0 %v2648
  %4072 = vmatpush2.bf16.msra.mxu0 %v2647
  %4073 = vmatprep.subr.bf16.mxu0 %v2644
  %4074 = vmatpush2.bf16.msra.mxu0 %v2643
  %4075 = vmatprep.subr.bf16.mxu0 %v2640
  %4076 = vmatpush2.bf16.msra.mxu0 %v2639
  %4077 = vmatprep.subr.bf16.mxu0 %v2636
  %4078 = vmatpush2.bf16.msra.mxu0 %v2635
  %4079 = vmatprep.subr.bf16.mxu0 %v2632
  %4080 = vmatpush2.bf16.msra.mxu0 %v2631
  %4081 = vmatprep.mubr.bf16.mxu0 %v54
  %4082 = vmatmul.mubr.bf16.gmra.mxu0 %v53
  %v4083 = vpop.f32.mrf.mxu0
  %v4084 = vadd.f32 %v4043, %v4083
  %v4085 = vpop.f32.mrf.mxu0
  %v4086 = vadd.f32 %v4045, %v4085
  %v4087 = vpop.f32.mrf.mxu0
  %v4088 = vpop.f32.mrf.mxu0
  %4089 = vdwg.mxu0
  %4090 = vmatprep.subr.bf16.mxu0 %v2692
  %4091 = vmatpush1.bf16.msra.mxu0 %v2691
  %4092 = vmatprep.subr.bf16.mxu0 %v2688
  %4093 = vmatpush1.bf16.msra.mxu0 %v2687
  %4094 = vmatprep.subr.bf16.mxu0 %v2684
  %4095 = vmatpush1.bf16.msra.mxu0 %v2683
  %4096 = vmatprep.subr.bf16.mxu0 %v2680
  %4097 = vmatpush1.bf16.msra.mxu0 %v2679
  %4098 = vmatprep.subr.bf16.mxu0 %v2676
  %4099 = vmatpush1.bf16.msra.mxu0 %v2675
  %4100 = vmatprep.subr.bf16.mxu0 %v2672
  %4101 = vmatpush1.bf16.msra.mxu0 %v2671
  %4102 = vmatprep.subr.bf16.mxu0 %v2668
  %4103 = vmatpush1.bf16.msra.mxu0 %v2667
  %4104 = vmatprep.subr.bf16.mxu0 %v2664
  %4105 = vmatpush1.bf16.msra.mxu0 %v2663
  %4106 = vmatprep.subr.bf16.mxu0 %v2724
  %4107 = vmatpush2.bf16.msra.mxu0 %v2723
  %4108 = vmatprep.subr.bf16.mxu0 %v2720
  %4109 = vmatpush2.bf16.msra.mxu0 %v2719
  %4110 = vmatprep.subr.bf16.mxu0 %v2716
  %4111 = vmatpush2.bf16.msra.mxu0 %v2715
  %4112 = vmatprep.subr.bf16.mxu0 %v2712
  %4113 = vmatpush2.bf16.msra.mxu0 %v2711
  %4114 = vmatprep.subr.bf16.mxu0 %v2708
  %4115 = vmatpush2.bf16.msra.mxu0 %v2707
  %4116 = vmatprep.subr.bf16.mxu0 %v2704
  %4117 = vmatpush2.bf16.msra.mxu0 %v2703
  %4118 = vmatprep.subr.bf16.mxu0 %v2700
  %4119 = vmatpush2.bf16.msra.mxu0 %v2699
  %4120 = vmatprep.subr.bf16.mxu0 %v2696
  %4121 = vmatpush2.bf16.msra.mxu0 %v2695
  %4122 = vmatprep.mubr.bf16.mxu0 %v56
  %4123 = vmatmul.mubr.bf16.gmra.mxu0 %v55
  %v4124 = vpop.f32.mrf.mxu0
  %v4125 = vadd.f32 %v4084, %v4124
  %v4126 = vpop.f32.mrf.mxu0
  %v4127 = vadd.f32 %v4086, %v4126
  %v4128 = vpop.f32.mrf.mxu0
  %v4129 = vpop.f32.mrf.mxu0
  %4130 = vdwg.mxu0
  %4131 = vmatprep.subr.bf16.mxu0 %v2756
  %4132 = vmatpush1.bf16.msra.mxu0 %v2755
  %4133 = vmatprep.subr.bf16.mxu0 %v2752
  %4134 = vmatpush1.bf16.msra.mxu0 %v2751
  %4135 = vmatprep.subr.bf16.mxu0 %v2748
  %4136 = vmatpush1.bf16.msra.mxu0 %v2747
  %4137 = vmatprep.subr.bf16.mxu0 %v2744
  %4138 = vmatpush1.bf16.msra.mxu0 %v2743
  %4139 = vmatprep.subr.bf16.mxu0 %v2740
  %4140 = vmatpush1.bf16.msra.mxu0 %v2739
  %4141 = vmatprep.subr.bf16.mxu0 %v2736
  %4142 = vmatpush1.bf16.msra.mxu0 %v2735
  %4143 = vmatprep.subr.bf16.mxu0 %v2732
  %4144 = vmatpush1.bf16.msra.mxu0 %v2731
  %4145 = vmatprep.subr.bf16.mxu0 %v2728
  %4146 = vmatpush1.bf16.msra.mxu0 %v2727
  %4147 = vmatprep.subr.bf16.mxu0 %v2788
  %4148 = vmatpush2.bf16.msra.mxu0 %v2787
  %4149 = vmatprep.subr.bf16.mxu0 %v2784
  %4150 = vmatpush2.bf16.msra.mxu0 %v2783
  %4151 = vmatprep.subr.bf16.mxu0 %v2780
  %4152 = vmatpush2.bf16.msra.mxu0 %v2779
  %4153 = vmatprep.subr.bf16.mxu0 %v2776
  %4154 = vmatpush2.bf16.msra.mxu0 %v2775
  %4155 = vmatprep.subr.bf16.mxu0 %v2772
  %4156 = vmatpush2.bf16.msra.mxu0 %v2771
  %4157 = vmatprep.subr.bf16.mxu0 %v2768
  %4158 = vmatpush2.bf16.msra.mxu0 %v2767
  %4159 = vmatprep.subr.bf16.mxu0 %v2764
  %4160 = vmatpush2.bf16.msra.mxu0 %v2763
  %4161 = vmatprep.subr.bf16.mxu0 %v2760
  %4162 = vmatpush2.bf16.msra.mxu0 %v2759
  %4163 = vmatprep.mubr.bf16.mxu0 %v58
  %4164 = vmatmul.mubr.bf16.gmra.mxu0 %v57
  %v4165 = vpop.f32.mrf.mxu0
  %v4166 = vadd.f32 %v4125, %v4165
  %v4167 = vpop.f32.mrf.mxu0
  %v4168 = vadd.f32 %v4127, %v4167
  %v4169 = vpop.f32.mrf.mxu0
  %v4170 = vpop.f32.mrf.mxu0
  %4171 = vdwg.mxu0
  %4172 = vmatprep.subr.bf16.mxu0 %v2820
  %4173 = vmatpush1.bf16.msra.mxu0 %v2819
  %4174 = vmatprep.subr.bf16.mxu0 %v2816
  %4175 = vmatpush1.bf16.msra.mxu0 %v2815
  %4176 = vmatprep.subr.bf16.mxu0 %v2812
  %4177 = vmatpush1.bf16.msra.mxu0 %v2811
  %4178 = vmatprep.subr.bf16.mxu0 %v2808
  %4179 = vmatpush1.bf16.msra.mxu0 %v2807
  %4180 = vmatprep.subr.bf16.mxu0 %v2804
  %4181 = vmatpush1.bf16.msra.mxu0 %v2803
  %4182 = vmatprep.subr.bf16.mxu0 %v2800
  %4183 = vmatpush1.bf16.msra.mxu0 %v2799
  %4184 = vmatprep.subr.bf16.mxu0 %v2796
  %4185 = vmatpush1.bf16.msra.mxu0 %v2795
  %4186 = vmatprep.subr.bf16.mxu0 %v2792
  %4187 = vmatpush1.bf16.msra.mxu0 %v2791
  %4188 = vmatprep.subr.bf16.mxu0 %v2852
  %4189 = vmatpush2.bf16.msra.mxu0 %v2851
  %4190 = vmatprep.subr.bf16.mxu0 %v2848
  %4191 = vmatpush2.bf16.msra.mxu0 %v2847
  %4192 = vmatprep.subr.bf16.mxu0 %v2844
  %4193 = vmatpush2.bf16.msra.mxu0 %v2843
  %4194 = vmatprep.subr.bf16.mxu0 %v2840
  %4195 = vmatpush2.bf16.msra.mxu0 %v2839
  %4196 = vmatprep.subr.bf16.mxu0 %v2836
  %4197 = vmatpush2.bf16.msra.mxu0 %v2835
  %4198 = vmatprep.subr.bf16.mxu0 %v2832
  %4199 = vmatpush2.bf16.msra.mxu0 %v2831
  %4200 = vmatprep.subr.bf16.mxu0 %v2828
  %4201 = vmatpush2.bf16.msra.mxu0 %v2827
  %4202 = vmatprep.subr.bf16.mxu0 %v2824
  %4203 = vmatpush2.bf16.msra.mxu0 %v2823
  %4204 = vmatprep.mubr.bf16.mxu0 %v60
  %4205 = vmatmul.mubr.bf16.gmra.mxu0 %v59
  %v4206 = vpop.f32.mrf.mxu0
  %v4207 = vadd.f32 %v4166, %v4206
  %v4208 = vpop.f32.mrf.mxu0
  %v4209 = vadd.f32 %v4168, %v4208
  %v4210 = vpop.f32.mrf.mxu0
  %v4211 = vpop.f32.mrf.mxu0
  %4212 = vdwg.mxu0
  %4213 = vmatprep.subr.bf16.mxu0 %v2884
  %4214 = vmatpush1.bf16.msra.mxu0 %v2883
  %4215 = vmatprep.subr.bf16.mxu0 %v2880
  %4216 = vmatpush1.bf16.msra.mxu0 %v2879
  %4217 = vmatprep.subr.bf16.mxu0 %v2876
  %4218 = vmatpush1.bf16.msra.mxu0 %v2875
  %4219 = vmatprep.subr.bf16.mxu0 %v2872
  %4220 = vmatpush1.bf16.msra.mxu0 %v2871
  %4221 = vmatprep.subr.bf16.mxu0 %v2868
  %4222 = vmatpush1.bf16.msra.mxu0 %v2867
  %4223 = vmatprep.subr.bf16.mxu0 %v2864
  %4224 = vmatpush1.bf16.msra.mxu0 %v2863
  %4225 = vmatprep.subr.bf16.mxu0 %v2860
  %4226 = vmatpush1.bf16.msra.mxu0 %v2859
  %4227 = vmatprep.subr.bf16.mxu0 %v2856
  %4228 = vmatpush1.bf16.msra.mxu0 %v2855
  %4229 = vmatprep.subr.bf16.mxu0 %v2916
  %4230 = vmatpush2.bf16.msra.mxu0 %v2915
  %4231 = vmatprep.subr.bf16.mxu0 %v2912
  %4232 = vmatpush2.bf16.msra.mxu0 %v2911
  %4233 = vmatprep.subr.bf16.mxu0 %v2908
  %4234 = vmatpush2.bf16.msra.mxu0 %v2907
  %4235 = vmatprep.subr.bf16.mxu0 %v2904
  %4236 = vmatpush2.bf16.msra.mxu0 %v2903
  %4237 = vmatprep.subr.bf16.mxu0 %v2900
  %4238 = vmatpush2.bf16.msra.mxu0 %v2899
  %4239 = vmatprep.subr.bf16.mxu0 %v2896
  %4240 = vmatpush2.bf16.msra.mxu0 %v2895
  %4241 = vmatprep.subr.bf16.mxu0 %v2892
  %4242 = vmatpush2.bf16.msra.mxu0 %v2891
  %4243 = vmatprep.subr.bf16.mxu0 %v2888
  %4244 = vmatpush2.bf16.msra.mxu0 %v2887
  %4245 = vmatprep.mubr.bf16.mxu0 %v62
  %4246 = vmatmul.mubr.bf16.gmra.mxu0 %v61
  %v4247 = vpop.f32.mrf.mxu0
  %v4248 = vadd.f32 %v4207, %v4247
  %v4249 = vpop.f32.mrf.mxu0
  %v4250 = vadd.f32 %v4209, %v4249
  %v4251 = vpop.f32.mrf.mxu0
  %v4252 = vpop.f32.mrf.mxu0
  %4253 = vdwg.mxu0
  %4254 = vmatprep.subr.bf16.mxu0 %v2948
  %4255 = vmatpush1.bf16.msra.mxu0 %v2947
  %4256 = vmatprep.subr.bf16.mxu0 %v2944
  %4257 = vmatpush1.bf16.msra.mxu0 %v2943
  %4258 = vmatprep.subr.bf16.mxu0 %v2940
  %4259 = vmatpush1.bf16.msra.mxu0 %v2939
  %4260 = vmatprep.subr.bf16.mxu0 %v2936
  %4261 = vmatpush1.bf16.msra.mxu0 %v2935
  %4262 = vmatprep.subr.bf16.mxu0 %v2932
  %4263 = vmatpush1.bf16.msra.mxu0 %v2931
  %4264 = vmatprep.subr.bf16.mxu0 %v2928
  %4265 = vmatpush1.bf16.msra.mxu0 %v2927
  %4266 = vmatprep.subr.bf16.mxu0 %v2924
  %4267 = vmatpush1.bf16.msra.mxu0 %v2923
  %4268 = vmatprep.subr.bf16.mxu0 %v2920
  %4269 = vmatpush1.bf16.msra.mxu0 %v2919
  %4270 = vmatprep.subr.bf16.mxu0 %v2980
  %4271 = vmatpush2.bf16.msra.mxu0 %v2979
  %4272 = vmatprep.subr.bf16.mxu0 %v2976
  %4273 = vmatpush2.bf16.msra.mxu0 %v2975
  %4274 = vmatprep.subr.bf16.mxu0 %v2972
  %4275 = vmatpush2.bf16.msra.mxu0 %v2971
  %4276 = vmatprep.subr.bf16.mxu0 %v2968
  %4277 = vmatpush2.bf16.msra.mxu0 %v2967
  %4278 = vmatprep.subr.bf16.mxu0 %v2964
  %4279 = vmatpush2.bf16.msra.mxu0 %v2963
  %4280 = vmatprep.subr.bf16.mxu0 %v2960
  %4281 = vmatpush2.bf16.msra.mxu0 %v2959
  %4282 = vmatprep.subr.bf16.mxu0 %v2956
  %4283 = vmatpush2.bf16.msra.mxu0 %v2955
  %4284 = vmatprep.subr.bf16.mxu0 %v2952
  %4285 = vmatpush2.bf16.msra.mxu0 %v2951
  %4286 = vmatprep.mubr.bf16.mxu0 %v64
  %4287 = vmatmul.mubr.bf16.gmra.mxu0 %v63
  %v4288 = vpop.f32.mrf.mxu0
  %v4289 = vadd.f32 %v4248, %v4288
  %v4290 = vpop.f32.mrf.mxu0
  %v4291 = vadd.f32 %v4250, %v4290
  %v4292 = vpop.f32.mrf.mxu0
  %v4293 = vpop.f32.mrf.mxu0
  %4294 = vdwg.mxu0
  %4295 = vmatprep.subr.bf16.mxu0 %v2434
  %4296 = vmatpush1.bf16.msra.mxu0 %v2433
  %4297 = vmatprep.subr.bf16.mxu0 %v2430
  %4298 = vmatpush1.bf16.msra.mxu0 %v2429
  %4299 = vmatprep.subr.bf16.mxu0 %v2426
  %4300 = vmatpush1.bf16.msra.mxu0 %v2425
  %4301 = vmatprep.subr.bf16.mxu0 %v2422
  %4302 = vmatpush1.bf16.msra.mxu0 %v2421
  %4303 = vmatprep.subr.bf16.mxu0 %v2418
  %4304 = vmatpush1.bf16.msra.mxu0 %v2417
  %4305 = vmatprep.subr.bf16.mxu0 %v2414
  %4306 = vmatpush1.bf16.msra.mxu0 %v2413
  %4307 = vmatprep.subr.bf16.mxu0 %v2410
  %4308 = vmatpush1.bf16.msra.mxu0 %v2409
  %4309 = vmatprep.subr.bf16.mxu0 %v2406
  %4310 = vmatpush1.bf16.msra.mxu0 %v2405
  %4311 = vmatprep.subr.bf16.mxu0 %v2466
  %4312 = vmatpush2.bf16.msra.mxu0 %v2465
  %4313 = vmatprep.subr.bf16.mxu0 %v2462
  %4314 = vmatpush2.bf16.msra.mxu0 %v2461
  %4315 = vmatprep.subr.bf16.mxu0 %v2458
  %4316 = vmatpush2.bf16.msra.mxu0 %v2457
  %4317 = vmatprep.subr.bf16.mxu0 %v2454
  %4318 = vmatpush2.bf16.msra.mxu0 %v2453
  %4319 = vmatprep.subr.bf16.mxu0 %v2450
  %4320 = vmatpush2.bf16.msra.mxu0 %v2449
  %4321 = vmatprep.subr.bf16.mxu0 %v2446
  %4322 = vmatpush2.bf16.msra.mxu0 %v2445
  %4323 = vmatprep.subr.bf16.mxu0 %v2442
  %4324 = vmatpush2.bf16.msra.mxu0 %v2441
  %4325 = vmatprep.subr.bf16.mxu0 %v2438
  %4326 = vmatpush2.bf16.msra.mxu0 %v2437
  %4327 = vmatprep.mubr.bf16.mxu0 %v84
  %4328 = vmatmul.mubr.bf16.gmra.mxu0 %v83
  %v4329 = vpop.f32.mrf.mxu0
  %v4330 = vadd.f32 0.0, %v4329
  %v4331 = vpop.f32.mrf.mxu0
  %v4332 = vadd.f32 0.0, %v4331
  %v4333 = vpop.f32.mrf.mxu0
  %v4334 = vpop.f32.mrf.mxu0
  %4335 = vdwg.mxu0
  %4336 = vmatprep.subr.bf16.mxu0 %v2498
  %4337 = vmatpush1.bf16.msra.mxu0 %v2497
  %4338 = vmatprep.subr.bf16.mxu0 %v2494
  %4339 = vmatpush1.bf16.msra.mxu0 %v2493
  %4340 = vmatprep.subr.bf16.mxu0 %v2490
  %4341 = vmatpush1.bf16.msra.mxu0 %v2489
  %4342 = vmatprep.subr.bf16.mxu0 %v2486
  %4343 = vmatpush1.bf16.msra.mxu0 %v2485
  %4344 = vmatprep.subr.bf16.mxu0 %v2482
  %4345 = vmatpush1.bf16.msra.mxu0 %v2481
  %4346 = vmatprep.subr.bf16.mxu0 %v2478
  %4347 = vmatpush1.bf16.msra.mxu0 %v2477
  %4348 = vmatprep.subr.bf16.mxu0 %v2474
  %4349 = vmatpush1.bf16.msra.mxu0 %v2473
  %4350 = vmatprep.subr.bf16.mxu0 %v2470
  %4351 = vmatpush1.bf16.msra.mxu0 %v2469
  %4352 = vmatprep.subr.bf16.mxu0 %v2530
  %4353 = vmatpush2.bf16.msra.mxu0 %v2529
  %4354 = vmatprep.subr.bf16.mxu0 %v2526
  %4355 = vmatpush2.bf16.msra.mxu0 %v2525
  %4356 = vmatprep.subr.bf16.mxu0 %v2522
  %4357 = vmatpush2.bf16.msra.mxu0 %v2521
  %4358 = vmatprep.subr.bf16.mxu0 %v2518
  %4359 = vmatpush2.bf16.msra.mxu0 %v2517
  %4360 = vmatprep.subr.bf16.mxu0 %v2514
  %4361 = vmatpush2.bf16.msra.mxu0 %v2513
  %4362 = vmatprep.subr.bf16.mxu0 %v2510
  %4363 = vmatpush2.bf16.msra.mxu0 %v2509
  %4364 = vmatprep.subr.bf16.mxu0 %v2506
  %4365 = vmatpush2.bf16.msra.mxu0 %v2505
  %4366 = vmatprep.subr.bf16.mxu0 %v2502
  %4367 = vmatpush2.bf16.msra.mxu0 %v2501
  %4368 = vmatprep.mubr.bf16.mxu0 %v86
  %4369 = vmatmul.mubr.bf16.gmra.mxu0 %v85
  %v4370 = vpop.f32.mrf.mxu0
  %v4371 = vadd.f32 %v4330, %v4370
  %v4372 = vpop.f32.mrf.mxu0
  %v4373 = vadd.f32 %v4332, %v4372
  %v4374 = vpop.f32.mrf.mxu0
  %v4375 = vpop.f32.mrf.mxu0
  %4376 = vdwg.mxu0
  %4377 = vmatprep.subr.bf16.mxu0 %v2562
  %4378 = vmatpush1.bf16.msra.mxu0 %v2561
  %4379 = vmatprep.subr.bf16.mxu0 %v2558
  %4380 = vmatpush1.bf16.msra.mxu0 %v2557
  %4381 = vmatprep.subr.bf16.mxu0 %v2554
  %4382 = vmatpush1.bf16.msra.mxu0 %v2553
  %4383 = vmatprep.subr.bf16.mxu0 %v2550
  %4384 = vmatpush1.bf16.msra.mxu0 %v2549
  %4385 = vmatprep.subr.bf16.mxu0 %v2546
  %4386 = vmatpush1.bf16.msra.mxu0 %v2545
  %4387 = vmatprep.subr.bf16.mxu0 %v2542
  %4388 = vmatpush1.bf16.msra.mxu0 %v2541
  %4389 = vmatprep.subr.bf16.mxu0 %v2538
  %4390 = vmatpush1.bf16.msra.mxu0 %v2537
  %4391 = vmatprep.subr.bf16.mxu0 %v2534
  %4392 = vmatpush1.bf16.msra.mxu0 %v2533
  %4393 = vmatprep.subr.bf16.mxu0 %v2594
  %4394 = vmatpush2.bf16.msra.mxu0 %v2593
  %4395 = vmatprep.subr.bf16.mxu0 %v2590
  %4396 = vmatpush2.bf16.msra.mxu0 %v2589
  %4397 = vmatprep.subr.bf16.mxu0 %v2586
  %4398 = vmatpush2.bf16.msra.mxu0 %v2585
  %4399 = vmatprep.subr.bf16.mxu0 %v2582
  %4400 = vmatpush2.bf16.msra.mxu0 %v2581
  %4401 = vmatprep.subr.bf16.mxu0 %v2578
  %4402 = vmatpush2.bf16.msra.mxu0 %v2577
  %4403 = vmatprep.subr.bf16.mxu0 %v2574
  %4404 = vmatpush2.bf16.msra.mxu0 %v2573
  %4405 = vmatprep.subr.bf16.mxu0 %v2570
  %4406 = vmatpush2.bf16.msra.mxu0 %v2569
  %4407 = vmatprep.subr.bf16.mxu0 %v2566
  %4408 = vmatpush2.bf16.msra.mxu0 %v2565
  %4409 = vmatprep.mubr.bf16.mxu0 %v88
  %4410 = vmatmul.mubr.bf16.gmra.mxu0 %v87
  %v4411 = vpop.f32.mrf.mxu0
  %v4412 = vadd.f32 %v4371, %v4411
  %v4413 = vpop.f32.mrf.mxu0
  %v4414 = vadd.f32 %v4373, %v4413
  %v4415 = vpop.f32.mrf.mxu0
  %v4416 = vpop.f32.mrf.mxu0
  %4417 = vdwg.mxu0
  %4418 = vmatprep.subr.bf16.mxu0 %v2626
  %4419 = vmatpush1.bf16.msra.mxu0 %v2625
  %4420 = vmatprep.subr.bf16.mxu0 %v2622
  %4421 = vmatpush1.bf16.msra.mxu0 %v2621
  %4422 = vmatprep.subr.bf16.mxu0 %v2618
  %4423 = vmatpush1.bf16.msra.mxu0 %v2617
  %4424 = vmatprep.subr.bf16.mxu0 %v2614
  %4425 = vmatpush1.bf16.msra.mxu0 %v2613
  %4426 = vmatprep.subr.bf16.mxu0 %v2610
  %4427 = vmatpush1.bf16.msra.mxu0 %v2609
  %4428 = vmatprep.subr.bf16.mxu0 %v2606
  %4429 = vmatpush1.bf16.msra.mxu0 %v2605
  %4430 = vmatprep.subr.bf16.mxu0 %v2602
  %4431 = vmatpush1.bf16.msra.mxu0 %v2601
  %4432 = vmatprep.subr.bf16.mxu0 %v2598
  %4433 = vmatpush1.bf16.msra.mxu0 %v2597
  %4434 = vmatprep.subr.bf16.mxu0 %v2658
  %4435 = vmatpush2.bf16.msra.mxu0 %v2657
  %4436 = vmatprep.subr.bf16.mxu0 %v2654
  %4437 = vmatpush2.bf16.msra.mxu0 %v2653
  %4438 = vmatprep.subr.bf16.mxu0 %v2650
  %4439 = vmatpush2.bf16.msra.mxu0 %v2649
  %4440 = vmatprep.subr.bf16.mxu0 %v2646
  %4441 = vmatpush2.bf16.msra.mxu0 %v2645
  %4442 = vmatprep.subr.bf16.mxu0 %v2642
  %4443 = vmatpush2.bf16.msra.mxu0 %v2641
  %4444 = vmatprep.subr.bf16.mxu0 %v2638
  %4445 = vmatpush2.bf16.msra.mxu0 %v2637
  %4446 = vmatprep.subr.bf16.mxu0 %v2634
  %4447 = vmatpush2.bf16.msra.mxu0 %v2633
  %4448 = vmatprep.subr.bf16.mxu0 %v2630
  %4449 = vmatpush2.bf16.msra.mxu0 %v2629
  %4450 = vmatprep.mubr.bf16.mxu0 %v90
  %4451 = vmatmul.mubr.bf16.gmra.mxu0 %v89
  %v4452 = vpop.f32.mrf.mxu0
  %v4453 = vadd.f32 %v4412, %v4452
  %v4454 = vpop.f32.mrf.mxu0
  %v4455 = vadd.f32 %v4414, %v4454
  %v4456 = vpop.f32.mrf.mxu0
  %v4457 = vpop.f32.mrf.mxu0
  %4458 = vdwg.mxu0
  %4459 = vmatprep.subr.bf16.mxu0 %v2690
  %4460 = vmatpush1.bf16.msra.mxu0 %v2689
  %4461 = vmatprep.subr.bf16.mxu0 %v2686
  %4462 = vmatpush1.bf16.msra.mxu0 %v2685
  %4463 = vmatprep.subr.bf16.mxu0 %v2682
  %4464 = vmatpush1.bf16.msra.mxu0 %v2681
  %4465 = vmatprep.subr.bf16.mxu0 %v2678
  %4466 = vmatpush1.bf16.msra.mxu0 %v2677
  %4467 = vmatprep.subr.bf16.mxu0 %v2674
  %4468 = vmatpush1.bf16.msra.mxu0 %v2673
  %4469 = vmatprep.subr.bf16.mxu0 %v2670
  %4470 = vmatpush1.bf16.msra.mxu0 %v2669
  %4471 = vmatprep.subr.bf16.mxu0 %v2666
  %4472 = vmatpush1.bf16.msra.mxu0 %v2665
  %4473 = vmatprep.subr.bf16.mxu0 %v2662
  %4474 = vmatpush1.bf16.msra.mxu0 %v2661
  %4475 = vmatprep.subr.bf16.mxu0 %v2722
  %4476 = vmatpush2.bf16.msra.mxu0 %v2721
  %4477 = vmatprep.subr.bf16.mxu0 %v2718
  %4478 = vmatpush2.bf16.msra.mxu0 %v2717
  %4479 = vmatprep.subr.bf16.mxu0 %v2714
  %4480 = vmatpush2.bf16.msra.mxu0 %v2713
  %4481 = vmatprep.subr.bf16.mxu0 %v2710
  %4482 = vmatpush2.bf16.msra.mxu0 %v2709
  %4483 = vmatprep.subr.bf16.mxu0 %v2706
  %4484 = vmatpush2.bf16.msra.mxu0 %v2705
  %4485 = vmatprep.subr.bf16.mxu0 %v2702
  %4486 = vmatpush2.bf16.msra.mxu0 %v2701
  %4487 = vmatprep.subr.bf16.mxu0 %v2698
  %4488 = vmatpush2.bf16.msra.mxu0 %v2697
  %4489 = vmatprep.subr.bf16.mxu0 %v2694
  %4490 = vmatpush2.bf16.msra.mxu0 %v2693
  %4491 = vmatprep.mubr.bf16.mxu0 %v92
  %4492 = vmatmul.mubr.bf16.gmra.mxu0 %v91
  %v4493 = vpop.f32.mrf.mxu0
  %v4494 = vadd.f32 %v4453, %v4493
  %v4495 = vpop.f32.mrf.mxu0
  %v4496 = vadd.f32 %v4455, %v4495
  %v4497 = vpop.f32.mrf.mxu0
  %v4498 = vpop.f32.mrf.mxu0
  %4499 = vdwg.mxu0
  %4500 = vmatprep.subr.bf16.mxu0 %v2754
  %4501 = vmatpush1.bf16.msra.mxu0 %v2753
  %4502 = vmatprep.subr.bf16.mxu0 %v2750
  %4503 = vmatpush1.bf16.msra.mxu0 %v2749
  %4504 = vmatprep.subr.bf16.mxu0 %v2746
  %4505 = vmatpush1.bf16.msra.mxu0 %v2745
  %4506 = vmatprep.subr.bf16.mxu0 %v2742
  %4507 = vmatpush1.bf16.msra.mxu0 %v2741
  %4508 = vmatprep.subr.bf16.mxu0 %v2738
  %4509 = vmatpush1.bf16.msra.mxu0 %v2737
  %4510 = vmatprep.subr.bf16.mxu0 %v2734
  %4511 = vmatpush1.bf16.msra.mxu0 %v2733
  %4512 = vmatprep.subr.bf16.mxu0 %v2730
  %4513 = vmatpush1.bf16.msra.mxu0 %v2729
  %4514 = vmatprep.subr.bf16.mxu0 %v2726
  %4515 = vmatpush1.bf16.msra.mxu0 %v2725
  %4516 = vmatprep.subr.bf16.mxu0 %v2786
  %4517 = vmatpush2.bf16.msra.mxu0 %v2785
  %4518 = vmatprep.subr.bf16.mxu0 %v2782
  %4519 = vmatpush2.bf16.msra.mxu0 %v2781
  %4520 = vmatprep.subr.bf16.mxu0 %v2778
  %4521 = vmatpush2.bf16.msra.mxu0 %v2777
  %4522 = vmatprep.subr.bf16.mxu0 %v2774
  %4523 = vmatpush2.bf16.msra.mxu0 %v2773
  %4524 = vmatprep.subr.bf16.mxu0 %v2770
  %4525 = vmatpush2.bf16.msra.mxu0 %v2769
  %4526 = vmatprep.subr.bf16.mxu0 %v2766
  %4527 = vmatpush2.bf16.msra.mxu0 %v2765
  %4528 = vmatprep.subr.bf16.mxu0 %v2762
  %4529 = vmatpush2.bf16.msra.mxu0 %v2761
  %4530 = vmatprep.subr.bf16.mxu0 %v2758
  %4531 = vmatpush2.bf16.msra.mxu0 %v2757
  %4532 = vmatprep.mubr.bf16.mxu0 %v94
  %4533 = vmatmul.mubr.bf16.gmra.mxu0 %v93
  %v4534 = vpop.f32.mrf.mxu0
  %v4535 = vadd.f32 %v4494, %v4534
  %v4536 = vpop.f32.mrf.mxu0
  %v4537 = vadd.f32 %v4496, %v4536
  %v4538 = vpop.f32.mrf.mxu0
  %v4539 = vpop.f32.mrf.mxu0
  %4540 = vdwg.mxu0
  %4541 = vmatprep.subr.bf16.mxu0 %v2818
  %4542 = vmatpush1.bf16.msra.mxu0 %v2817
  %4543 = vmatprep.subr.bf16.mxu0 %v2814
  %4544 = vmatpush1.bf16.msra.mxu0 %v2813
  %4545 = vmatprep.subr.bf16.mxu0 %v2810
  %4546 = vmatpush1.bf16.msra.mxu0 %v2809
  %4547 = vmatprep.subr.bf16.mxu0 %v2806
  %4548 = vmatpush1.bf16.msra.mxu0 %v2805
  %4549 = vmatprep.subr.bf16.mxu0 %v2802
  %4550 = vmatpush1.bf16.msra.mxu0 %v2801
  %4551 = vmatprep.subr.bf16.mxu0 %v2798
  %4552 = vmatpush1.bf16.msra.mxu0 %v2797
  %4553 = vmatprep.subr.bf16.mxu0 %v2794
  %4554 = vmatpush1.bf16.msra.mxu0 %v2793
  %4555 = vmatprep.subr.bf16.mxu0 %v2790
  %4556 = vmatpush1.bf16.msra.mxu0 %v2789
  %4557 = vmatprep.subr.bf16.mxu0 %v2850
  %4558 = vmatpush2.bf16.msra.mxu0 %v2849
  %4559 = vmatprep.subr.bf16.mxu0 %v2846
  %4560 = vmatpush2.bf16.msra.mxu0 %v2845
  %4561 = vmatprep.subr.bf16.mxu0 %v2842
  %4562 = vmatpush2.bf16.msra.mxu0 %v2841
  %4563 = vmatprep.subr.bf16.mxu0 %v2838
  %4564 = vmatpush2.bf16.msra.mxu0 %v2837
  %4565 = vmatprep.subr.bf16.mxu0 %v2834
  %4566 = vmatpush2.bf16.msra.mxu0 %v2833
  %4567 = vmatprep.subr.bf16.mxu0 %v2830
  %4568 = vmatpush2.bf16.msra.mxu0 %v2829
  %4569 = vmatprep.subr.bf16.mxu0 %v2826
  %4570 = vmatpush2.bf16.msra.mxu0 %v2825
  %4571 = vmatprep.subr.bf16.mxu0 %v2822
  %4572 = vmatpush2.bf16.msra.mxu0 %v2821
  %4573 = vmatprep.mubr.bf16.mxu0 %v96
  %4574 = vmatmul.mubr.bf16.gmra.mxu0 %v95
  %v4575 = vpop.f32.mrf.mxu0
  %v4576 = vadd.f32 %v4535, %v4575
  %v4577 = vpop.f32.mrf.mxu0
  %v4578 = vadd.f32 %v4537, %v4577
  %v4579 = vpop.f32.mrf.mxu0
  %v4580 = vpop.f32.mrf.mxu0
  %4581 = vdwg.mxu0
  %4582 = vmatprep.subr.bf16.mxu0 %v2882
  %4583 = vmatpush1.bf16.msra.mxu0 %v2881
  %4584 = vmatprep.subr.bf16.mxu0 %v2878
  %4585 = vmatpush1.bf16.msra.mxu0 %v2877
  %4586 = vmatprep.subr.bf16.mxu0 %v2874
  %4587 = vmatpush1.bf16.msra.mxu0 %v2873
  %4588 = vmatprep.subr.bf16.mxu0 %v2870
  %4589 = vmatpush1.bf16.msra.mxu0 %v2869
  %4590 = vmatprep.subr.bf16.mxu0 %v2866
  %4591 = vmatpush1.bf16.msra.mxu0 %v2865
  %4592 = vmatprep.subr.bf16.mxu0 %v2862
  %4593 = vmatpush1.bf16.msra.mxu0 %v2861
  %4594 = vmatprep.subr.bf16.mxu0 %v2858
  %4595 = vmatpush1.bf16.msra.mxu0 %v2857
  %4596 = vmatprep.subr.bf16.mxu0 %v2854
  %4597 = vmatpush1.bf16.msra.mxu0 %v2853
  %4598 = vmatprep.subr.bf16.mxu0 %v2914
  %4599 = vmatpush2.bf16.msra.mxu0 %v2913
  %4600 = vmatprep.subr.bf16.mxu0 %v2910
  %4601 = vmatpush2.bf16.msra.mxu0 %v2909
  %4602 = vmatprep.subr.bf16.mxu0 %v2906
  %4603 = vmatpush2.bf16.msra.mxu0 %v2905
  %4604 = vmatprep.subr.bf16.mxu0 %v2902
  %4605 = vmatpush2.bf16.msra.mxu0 %v2901
  %4606 = vmatprep.subr.bf16.mxu0 %v2898
  %4607 = vmatpush2.bf16.msra.mxu0 %v2897
  %4608 = vmatprep.subr.bf16.mxu0 %v2894
  %4609 = vmatpush2.bf16.msra.mxu0 %v2893
  %4610 = vmatprep.subr.bf16.mxu0 %v2890
  %4611 = vmatpush2.bf16.msra.mxu0 %v2889
  %4612 = vmatprep.subr.bf16.mxu0 %v2886
  %4613 = vmatpush2.bf16.msra.mxu0 %v2885
  %4614 = vmatprep.mubr.bf16.mxu0 %v98
  %4615 = vmatmul.mubr.bf16.gmra.mxu0 %v97
  %v4616 = vpop.f32.mrf.mxu0
  %v4617 = vadd.f32 %v4576, %v4616
  %v4618 = vpop.f32.mrf.mxu0
  %v4619 = vadd.f32 %v4578, %v4618
  %v4620 = vpop.f32.mrf.mxu0
  %v4621 = vpop.f32.mrf.mxu0
  %4622 = vdwg.mxu0
  %4623 = vmatprep.subr.bf16.mxu0 %v2946
  %4624 = vmatpush1.bf16.msra.mxu0 %v2945
  %4625 = vmatprep.subr.bf16.mxu0 %v2942
  %4626 = vmatpush1.bf16.msra.mxu0 %v2941
  %4627 = vmatprep.subr.bf16.mxu0 %v2938
  %4628 = vmatpush1.bf16.msra.mxu0 %v2937
  %4629 = vmatprep.subr.bf16.mxu0 %v2934
  %4630 = vmatpush1.bf16.msra.mxu0 %v2933
  %4631 = vmatprep.subr.bf16.mxu0 %v2930
  %4632 = vmatpush1.bf16.msra.mxu0 %v2929
  %4633 = vmatprep.subr.bf16.mxu0 %v2926
  %4634 = vmatpush1.bf16.msra.mxu0 %v2925
  %4635 = vmatprep.subr.bf16.mxu0 %v2922
  %4636 = vmatpush1.bf16.msra.mxu0 %v2921
  %4637 = vmatprep.subr.bf16.mxu0 %v2918
  %4638 = vmatpush1.bf16.msra.mxu0 %v2917
  %4639 = vmatprep.subr.bf16.mxu0 %v2978
  %4640 = vmatpush2.bf16.msra.mxu0 %v2977
  %4641 = vmatprep.subr.bf16.mxu0 %v2974
  %4642 = vmatpush2.bf16.msra.mxu0 %v2973
  %4643 = vmatprep.subr.bf16.mxu0 %v2970
  %4644 = vmatpush2.bf16.msra.mxu0 %v2969
  %4645 = vmatprep.subr.bf16.mxu0 %v2966
  %4646 = vmatpush2.bf16.msra.mxu0 %v2965
  %4647 = vmatprep.subr.bf16.mxu0 %v2962
  %4648 = vmatpush2.bf16.msra.mxu0 %v2961
  %4649 = vmatprep.subr.bf16.mxu0 %v2958
  %4650 = vmatpush2.bf16.msra.mxu0 %v2957
  %4651 = vmatprep.subr.bf16.mxu0 %v2954
  %4652 = vmatpush2.bf16.msra.mxu0 %v2953
  %4653 = vmatprep.subr.bf16.mxu0 %v2950
  %4654 = vmatpush2.bf16.msra.mxu0 %v2949
  %4655 = vmatprep.mubr.bf16.mxu0 %v100
  %4656 = vmatmul.mubr.bf16.gmra.mxu0 %v99
  %v4657 = vpop.f32.mrf.mxu0
  %v4658 = vadd.f32 %v4617, %v4657
  %v4659 = vpop.f32.mrf.mxu0
  %v4660 = vadd.f32 %v4619, %v4659
  %v4661 = vpop.f32.mrf.mxu0
  %v4662 = vpop.f32.mrf.mxu0
  %4663 = vdwg.mxu0
  %4664 = vmatprep.subr.bf16.mxu0 %v2436
  %4665 = vmatpush1.bf16.msra.mxu0 %v2435
  %4666 = vmatprep.subr.bf16.mxu0 %v2432
  %4667 = vmatpush1.bf16.msra.mxu0 %v2431
  %4668 = vmatprep.subr.bf16.mxu0 %v2428
  %4669 = vmatpush1.bf16.msra.mxu0 %v2427
  %4670 = vmatprep.subr.bf16.mxu0 %v2424
  %4671 = vmatpush1.bf16.msra.mxu0 %v2423
  %4672 = vmatprep.subr.bf16.mxu0 %v2420
  %4673 = vmatpush1.bf16.msra.mxu0 %v2419
  %4674 = vmatprep.subr.bf16.mxu0 %v2416
  %4675 = vmatpush1.bf16.msra.mxu0 %v2415
  %4676 = vmatprep.subr.bf16.mxu0 %v2412
  %4677 = vmatpush1.bf16.msra.mxu0 %v2411
  %4678 = vmatprep.subr.bf16.mxu0 %v2408
  %4679 = vmatpush1.bf16.msra.mxu0 %v2407
  %4680 = vmatprep.subr.bf16.mxu0 %v2468
  %4681 = vmatpush2.bf16.msra.mxu0 %v2467
  %4682 = vmatprep.subr.bf16.mxu0 %v2464
  %4683 = vmatpush2.bf16.msra.mxu0 %v2463
  %4684 = vmatprep.subr.bf16.mxu0 %v2460
  %4685 = vmatpush2.bf16.msra.mxu0 %v2459
  %4686 = vmatprep.subr.bf16.mxu0 %v2456
  %4687 = vmatpush2.bf16.msra.mxu0 %v2455
  %4688 = vmatprep.subr.bf16.mxu0 %v2452
  %4689 = vmatpush2.bf16.msra.mxu0 %v2451
  %4690 = vmatprep.subr.bf16.mxu0 %v2448
  %4691 = vmatpush2.bf16.msra.mxu0 %v2447
  %4692 = vmatprep.subr.bf16.mxu0 %v2444
  %4693 = vmatpush2.bf16.msra.mxu0 %v2443
  %4694 = vmatprep.subr.bf16.mxu0 %v2440
  %4695 = vmatpush2.bf16.msra.mxu0 %v2439
  %4696 = vmatprep.mubr.bf16.mxu0 %v84
  %4697 = vmatmul.mubr.bf16.gmra.mxu0 %v83
  %v4698 = vpop.f32.mrf.mxu0
  %v4699 = vadd.f32 0.0, %v4698
  %v4700 = vpop.f32.mrf.mxu0
  %v4701 = vadd.f32 0.0, %v4700
  %v4702 = vpop.f32.mrf.mxu0
  %v4703 = vpop.f32.mrf.mxu0
  %4704 = vdwg.mxu0
  %4705 = vmatprep.subr.bf16.mxu0 %v2500
  %4706 = vmatpush1.bf16.msra.mxu0 %v2499
  %4707 = vmatprep.subr.bf16.mxu0 %v2496
  %4708 = vmatpush1.bf16.msra.mxu0 %v2495
  %4709 = vmatprep.subr.bf16.mxu0 %v2492
  %4710 = vmatpush1.bf16.msra.mxu0 %v2491
  %4711 = vmatprep.subr.bf16.mxu0 %v2488
  %4712 = vmatpush1.bf16.msra.mxu0 %v2487
  %4713 = vmatprep.subr.bf16.mxu0 %v2484
  %4714 = vmatpush1.bf16.msra.mxu0 %v2483
  %4715 = vmatprep.subr.bf16.mxu0 %v2480
  %4716 = vmatpush1.bf16.msra.mxu0 %v2479
  %4717 = vmatprep.subr.bf16.mxu0 %v2476
  %4718 = vmatpush1.bf16.msra.mxu0 %v2475
  %4719 = vmatprep.subr.bf16.mxu0 %v2472
  %4720 = vmatpush1.bf16.msra.mxu0 %v2471
  %4721 = vmatprep.subr.bf16.mxu0 %v2532
  %4722 = vmatpush2.bf16.msra.mxu0 %v2531
  %4723 = vmatprep.subr.bf16.mxu0 %v2528
  %4724 = vmatpush2.bf16.msra.mxu0 %v2527
  %4725 = vmatprep.subr.bf16.mxu0 %v2524
  %4726 = vmatpush2.bf16.msra.mxu0 %v2523
  %4727 = vmatprep.subr.bf16.mxu0 %v2520
  %4728 = vmatpush2.bf16.msra.mxu0 %v2519
  %4729 = vmatprep.subr.bf16.mxu0 %v2516
  %4730 = vmatpush2.bf16.msra.mxu0 %v2515
  %4731 = vmatprep.subr.bf16.mxu0 %v2512
  %4732 = vmatpush2.bf16.msra.mxu0 %v2511
  %4733 = vmatprep.subr.bf16.mxu0 %v2508
  %4734 = vmatpush2.bf16.msra.mxu0 %v2507
  %4735 = vmatprep.subr.bf16.mxu0 %v2504
  %4736 = vmatpush2.bf16.msra.mxu0 %v2503
  %4737 = vmatprep.mubr.bf16.mxu0 %v86
  %4738 = vmatmul.mubr.bf16.gmra.mxu0 %v85
  %v4739 = vpop.f32.mrf.mxu0
  %v4740 = vadd.f32 %v4699, %v4739
  %v4741 = vpop.f32.mrf.mxu0
  %v4742 = vadd.f32 %v4701, %v4741
  %v4743 = vpop.f32.mrf.mxu0
  %v4744 = vpop.f32.mrf.mxu0
  %4745 = vdwg.mxu0
  %4746 = vmatprep.subr.bf16.mxu0 %v2564
  %4747 = vmatpush1.bf16.msra.mxu0 %v2563
  %4748 = vmatprep.subr.bf16.mxu0 %v2560
  %4749 = vmatpush1.bf16.msra.mxu0 %v2559
  %4750 = vmatprep.subr.bf16.mxu0 %v2556
  %4751 = vmatpush1.bf16.msra.mxu0 %v2555
  %4752 = vmatprep.subr.bf16.mxu0 %v2552
  %4753 = vmatpush1.bf16.msra.mxu0 %v2551
  %4754 = vmatprep.subr.bf16.mxu0 %v2548
  %4755 = vmatpush1.bf16.msra.mxu0 %v2547
  %4756 = vmatprep.subr.bf16.mxu0 %v2544
  %4757 = vmatpush1.bf16.msra.mxu0 %v2543
  %4758 = vmatprep.subr.bf16.mxu0 %v2540
  %4759 = vmatpush1.bf16.msra.mxu0 %v2539
  %4760 = vmatprep.subr.bf16.mxu0 %v2536
  %4761 = vmatpush1.bf16.msra.mxu0 %v2535
  %4762 = vmatprep.subr.bf16.mxu0 %v2596
  %4763 = vmatpush2.bf16.msra.mxu0 %v2595
  %4764 = vmatprep.subr.bf16.mxu0 %v2592
  %4765 = vmatpush2.bf16.msra.mxu0 %v2591
  %4766 = vmatprep.subr.bf16.mxu0 %v2588
  %4767 = vmatpush2.bf16.msra.mxu0 %v2587
  %4768 = vmatprep.subr.bf16.mxu0 %v2584
  %4769 = vmatpush2.bf16.msra.mxu0 %v2583
  %4770 = vmatprep.subr.bf16.mxu0 %v2580
  %4771 = vmatpush2.bf16.msra.mxu0 %v2579
  %4772 = vmatprep.subr.bf16.mxu0 %v2576
  %4773 = vmatpush2.bf16.msra.mxu0 %v2575
  %4774 = vmatprep.subr.bf16.mxu0 %v2572
  %4775 = vmatpush2.bf16.msra.mxu0 %v2571
  %4776 = vmatprep.subr.bf16.mxu0 %v2568
  %4777 = vmatpush2.bf16.msra.mxu0 %v2567
  %4778 = vmatprep.mubr.bf16.mxu0 %v88
  %4779 = vmatmul.mubr.bf16.gmra.mxu0 %v87
  %v4780 = vpop.f32.mrf.mxu0
  %v4781 = vadd.f32 %v4740, %v4780
  %v4782 = vpop.f32.mrf.mxu0
  %v4783 = vadd.f32 %v4742, %v4782
  %v4784 = vpop.f32.mrf.mxu0
  %v4785 = vpop.f32.mrf.mxu0
  %4786 = vdwg.mxu0
  %4787 = vmatprep.subr.bf16.mxu0 %v2628
  %4788 = vmatpush1.bf16.msra.mxu0 %v2627
  %4789 = vmatprep.subr.bf16.mxu0 %v2624
  %4790 = vmatpush1.bf16.msra.mxu0 %v2623
  %4791 = vmatprep.subr.bf16.mxu0 %v2620
  %4792 = vmatpush1.bf16.msra.mxu0 %v2619
  %4793 = vmatprep.subr.bf16.mxu0 %v2616
  %4794 = vmatpush1.bf16.msra.mxu0 %v2615
  %4795 = vmatprep.subr.bf16.mxu0 %v2612
  %4796 = vmatpush1.bf16.msra.mxu0 %v2611
  %4797 = vmatprep.subr.bf16.mxu0 %v2608
  %4798 = vmatpush1.bf16.msra.mxu0 %v2607
  %4799 = vmatprep.subr.bf16.mxu0 %v2604
  %4800 = vmatpush1.bf16.msra.mxu0 %v2603
  %4801 = vmatprep.subr.bf16.mxu0 %v2600
  %4802 = vmatpush1.bf16.msra.mxu0 %v2599
  %4803 = vmatprep.subr.bf16.mxu0 %v2660
  %4804 = vmatpush2.bf16.msra.mxu0 %v2659
  %4805 = vmatprep.subr.bf16.mxu0 %v2656
  %4806 = vmatpush2.bf16.msra.mxu0 %v2655
  %4807 = vmatprep.subr.bf16.mxu0 %v2652
  %4808 = vmatpush2.bf16.msra.mxu0 %v2651
  %4809 = vmatprep.subr.bf16.mxu0 %v2648
  %4810 = vmatpush2.bf16.msra.mxu0 %v2647
  %4811 = vmatprep.subr.bf16.mxu0 %v2644
  %4812 = vmatpush2.bf16.msra.mxu0 %v2643
  %4813 = vmatprep.subr.bf16.mxu0 %v2640
  %4814 = vmatpush2.bf16.msra.mxu0 %v2639
  %4815 = vmatprep.subr.bf16.mxu0 %v2636
  %4816 = vmatpush2.bf16.msra.mxu0 %v2635
  %4817 = vmatprep.subr.bf16.mxu0 %v2632
  %4818 = vmatpush2.bf16.msra.mxu0 %v2631
  %4819 = vmatprep.mubr.bf16.mxu0 %v90
  %4820 = vmatmul.mubr.bf16.gmra.mxu0 %v89
  %v4821 = vpop.f32.mrf.mxu0
  %v4822 = vadd.f32 %v4781, %v4821
  %v4823 = vpop.f32.mrf.mxu0
  %v4824 = vadd.f32 %v4783, %v4823
  %v4825 = vpop.f32.mrf.mxu0
  %v4826 = vpop.f32.mrf.mxu0
  %4827 = vdwg.mxu0
  %4828 = vmatprep.subr.bf16.mxu0 %v2692
  %4829 = vmatpush1.bf16.msra.mxu0 %v2691
  %4830 = vmatprep.subr.bf16.mxu0 %v2688
  %4831 = vmatpush1.bf16.msra.mxu0 %v2687
  %4832 = vmatprep.subr.bf16.mxu0 %v2684
  %4833 = vmatpush1.bf16.msra.mxu0 %v2683
  %4834 = vmatprep.subr.bf16.mxu0 %v2680
  %4835 = vmatpush1.bf16.msra.mxu0 %v2679
  %4836 = vmatprep.subr.bf16.mxu0 %v2676
  %4837 = vmatpush1.bf16.msra.mxu0 %v2675
  %4838 = vmatprep.subr.bf16.mxu0 %v2672
  %4839 = vmatpush1.bf16.msra.mxu0 %v2671
  %4840 = vmatprep.subr.bf16.mxu0 %v2668
  %4841 = vmatpush1.bf16.msra.mxu0 %v2667
  %4842 = vmatprep.subr.bf16.mxu0 %v2664
  %4843 = vmatpush1.bf16.msra.mxu0 %v2663
  %4844 = vmatprep.subr.bf16.mxu0 %v2724
  %4845 = vmatpush2.bf16.msra.mxu0 %v2723
  %4846 = vmatprep.subr.bf16.mxu0 %v2720
  %4847 = vmatpush2.bf16.msra.mxu0 %v2719
  %4848 = vmatprep.subr.bf16.mxu0 %v2716
  %4849 = vmatpush2.bf16.msra.mxu0 %v2715
  %4850 = vmatprep.subr.bf16.mxu0 %v2712
  %4851 = vmatpush2.bf16.msra.mxu0 %v2711
  %4852 = vmatprep.subr.bf16.mxu0 %v2708
  %4853 = vmatpush2.bf16.msra.mxu0 %v2707
  %4854 = vmatprep.subr.bf16.mxu0 %v2704
  %4855 = vmatpush2.bf16.msra.mxu0 %v2703
  %4856 = vmatprep.subr.bf16.mxu0 %v2700
  %4857 = vmatpush2.bf16.msra.mxu0 %v2699
  %4858 = vmatprep.subr.bf16.mxu0 %v2696
  %4859 = vmatpush2.bf16.msra.mxu0 %v2695
  %4860 = vmatprep.mubr.bf16.mxu0 %v92
  %4861 = vmatmul.mubr.bf16.gmra.mxu0 %v91
  %v4862 = vpop.f32.mrf.mxu0
  %v4863 = vadd.f32 %v4822, %v4862
  %v4864 = vpop.f32.mrf.mxu0
  %v4865 = vadd.f32 %v4824, %v4864
  %v4866 = vpop.f32.mrf.mxu0
  %v4867 = vpop.f32.mrf.mxu0
  %4868 = vdwg.mxu0
  %4869 = vmatprep.subr.bf16.mxu0 %v2756
  %4870 = vmatpush1.bf16.msra.mxu0 %v2755
  %4871 = vmatprep.subr.bf16.mxu0 %v2752
  %4872 = vmatpush1.bf16.msra.mxu0 %v2751
  %4873 = vmatprep.subr.bf16.mxu0 %v2748
  %4874 = vmatpush1.bf16.msra.mxu0 %v2747
  %4875 = vmatprep.subr.bf16.mxu0 %v2744
  %4876 = vmatpush1.bf16.msra.mxu0 %v2743
  %4877 = vmatprep.subr.bf16.mxu0 %v2740
  %4878 = vmatpush1.bf16.msra.mxu0 %v2739
  %4879 = vmatprep.subr.bf16.mxu0 %v2736
  %4880 = vmatpush1.bf16.msra.mxu0 %v2735
  %4881 = vmatprep.subr.bf16.mxu0 %v2732
  %4882 = vmatpush1.bf16.msra.mxu0 %v2731
  %4883 = vmatprep.subr.bf16.mxu0 %v2728
  %4884 = vmatpush1.bf16.msra.mxu0 %v2727
  %4885 = vmatprep.subr.bf16.mxu0 %v2788
  %4886 = vmatpush2.bf16.msra.mxu0 %v2787
  %4887 = vmatprep.subr.bf16.mxu0 %v2784
  %4888 = vmatpush2.bf16.msra.mxu0 %v2783
  %4889 = vmatprep.subr.bf16.mxu0 %v2780
  %4890 = vmatpush2.bf16.msra.mxu0 %v2779
  %4891 = vmatprep.subr.bf16.mxu0 %v2776
  %4892 = vmatpush2.bf16.msra.mxu0 %v2775
  %4893 = vmatprep.subr.bf16.mxu0 %v2772
  %4894 = vmatpush2.bf16.msra.mxu0 %v2771
  %4895 = vmatprep.subr.bf16.mxu0 %v2768
  %4896 = vmatpush2.bf16.msra.mxu0 %v2767
  %4897 = vmatprep.subr.bf16.mxu0 %v2764
  %4898 = vmatpush2.bf16.msra.mxu0 %v2763
  %4899 = vmatprep.subr.bf16.mxu0 %v2760
  %4900 = vmatpush2.bf16.msra.mxu0 %v2759
  %4901 = vmatprep.mubr.bf16.mxu0 %v94
  %4902 = vmatmul.mubr.bf16.gmra.mxu0 %v93
  %v4903 = vpop.f32.mrf.mxu0
  %v4904 = vadd.f32 %v4863, %v4903
  %v4905 = vpop.f32.mrf.mxu0
  %v4906 = vadd.f32 %v4865, %v4905
  %v4907 = vpop.f32.mrf.mxu0
  %v4908 = vpop.f32.mrf.mxu0
  %4909 = vdwg.mxu0
  %4910 = vmatprep.subr.bf16.mxu0 %v2820
  %4911 = vmatpush1.bf16.msra.mxu0 %v2819
  %4912 = vmatprep.subr.bf16.mxu0 %v2816
  %4913 = vmatpush1.bf16.msra.mxu0 %v2815
  %4914 = vmatprep.subr.bf16.mxu0 %v2812
  %4915 = vmatpush1.bf16.msra.mxu0 %v2811
  %4916 = vmatprep.subr.bf16.mxu0 %v2808
  %4917 = vmatpush1.bf16.msra.mxu0 %v2807
  %4918 = vmatprep.subr.bf16.mxu0 %v2804
  %4919 = vmatpush1.bf16.msra.mxu0 %v2803
  %4920 = vmatprep.subr.bf16.mxu0 %v2800
  %4921 = vmatpush1.bf16.msra.mxu0 %v2799
  %4922 = vmatprep.subr.bf16.mxu0 %v2796
  %4923 = vmatpush1.bf16.msra.mxu0 %v2795
  %4924 = vmatprep.subr.bf16.mxu0 %v2792
  %4925 = vmatpush1.bf16.msra.mxu0 %v2791
  %4926 = vmatprep.subr.bf16.mxu0 %v2852
  %4927 = vmatpush2.bf16.msra.mxu0 %v2851
  %4928 = vmatprep.subr.bf16.mxu0 %v2848
  %4929 = vmatpush2.bf16.msra.mxu0 %v2847
  %4930 = vmatprep.subr.bf16.mxu0 %v2844
  %4931 = vmatpush2.bf16.msra.mxu0 %v2843
  %4932 = vmatprep.subr.bf16.mxu0 %v2840
  %4933 = vmatpush2.bf16.msra.mxu0 %v2839
  %4934 = vmatprep.subr.bf16.mxu0 %v2836
  %4935 = vmatpush2.bf16.msra.mxu0 %v2835
  %4936 = vmatprep.subr.bf16.mxu0 %v2832
  %4937 = vmatpush2.bf16.msra.mxu0 %v2831
  %4938 = vmatprep.subr.bf16.mxu0 %v2828
  %4939 = vmatpush2.bf16.msra.mxu0 %v2827
  %4940 = vmatprep.subr.bf16.mxu0 %v2824
  %4941 = vmatpush2.bf16.msra.mxu0 %v2823
  %4942 = vmatprep.mubr.bf16.mxu0 %v96
  %4943 = vmatmul.mubr.bf16.gmra.mxu0 %v95
  %v4944 = vpop.f32.mrf.mxu0
  %v4945 = vadd.f32 %v4904, %v4944
  %v4946 = vpop.f32.mrf.mxu0
  %v4947 = vadd.f32 %v4906, %v4946
  %v4948 = vpop.f32.mrf.mxu0
  %v4949 = vpop.f32.mrf.mxu0
  %4950 = vdwg.mxu0
  %4951 = vmatprep.subr.bf16.mxu0 %v2884
  %4952 = vmatpush1.bf16.msra.mxu0 %v2883
  %4953 = vmatprep.subr.bf16.mxu0 %v2880
  %4954 = vmatpush1.bf16.msra.mxu0 %v2879
  %4955 = vmatprep.subr.bf16.mxu0 %v2876
  %4956 = vmatpush1.bf16.msra.mxu0 %v2875
  %4957 = vmatprep.subr.bf16.mxu0 %v2872
  %4958 = vmatpush1.bf16.msra.mxu0 %v2871
  %4959 = vmatprep.subr.bf16.mxu0 %v2868
  %4960 = vmatpush1.bf16.msra.mxu0 %v2867
  %4961 = vmatprep.subr.bf16.mxu0 %v2864
  %4962 = vmatpush1.bf16.msra.mxu0 %v2863
  %4963 = vmatprep.subr.bf16.mxu0 %v2860
  %4964 = vmatpush1.bf16.msra.mxu0 %v2859
  %4965 = vmatprep.subr.bf16.mxu0 %v2856
  %4966 = vmatpush1.bf16.msra.mxu0 %v2855
  %4967 = vmatprep.subr.bf16.mxu0 %v2916
  %4968 = vmatpush2.bf16.msra.mxu0 %v2915
  %4969 = vmatprep.subr.bf16.mxu0 %v2912
  %4970 = vmatpush2.bf16.msra.mxu0 %v2911
  %4971 = vmatprep.subr.bf16.mxu0 %v2908
  %4972 = vmatpush2.bf16.msra.mxu0 %v2907
  %4973 = vmatprep.subr.bf16.mxu0 %v2904
  %4974 = vmatpush2.bf16.msra.mxu0 %v2903
  %4975 = vmatprep.subr.bf16.mxu0 %v2900
  %4976 = vmatpush2.bf16.msra.mxu0 %v2899
  %4977 = vmatprep.subr.bf16.mxu0 %v2896
  %4978 = vmatpush2.bf16.msra.mxu0 %v2895
  %4979 = vmatprep.subr.bf16.mxu0 %v2892
  %4980 = vmatpush2.bf16.msra.mxu0 %v2891
  %4981 = vmatprep.subr.bf16.mxu0 %v2888
  %4982 = vmatpush2.bf16.msra.mxu0 %v2887
  %4983 = vmatprep.mubr.bf16.mxu0 %v98
  %4984 = vmatmul.mubr.bf16.gmra.mxu0 %v97
  %v4985 = vpop.f32.mrf.mxu0
  %v4986 = vadd.f32 %v4945, %v4985
  %v4987 = vpop.f32.mrf.mxu0
  %v4988 = vadd.f32 %v4947, %v4987
  %v4989 = vpop.f32.mrf.mxu0
  %v4990 = vpop.f32.mrf.mxu0
  %4991 = vdwg.mxu0
  %4992 = vmatprep.subr.bf16.mxu0 %v2948
  %4993 = vmatpush1.bf16.msra.mxu0 %v2947
  %4994 = vmatprep.subr.bf16.mxu0 %v2944
  %4995 = vmatpush1.bf16.msra.mxu0 %v2943
  %4996 = vmatprep.subr.bf16.mxu0 %v2940
  %4997 = vmatpush1.bf16.msra.mxu0 %v2939
  %4998 = vmatprep.subr.bf16.mxu0 %v2936
  %4999 = vmatpush1.bf16.msra.mxu0 %v2935
  %5000 = vmatprep.subr.bf16.mxu0 %v2932
  %5001 = vmatpush1.bf16.msra.mxu0 %v2931
  %5002 = vmatprep.subr.bf16.mxu0 %v2928
  %5003 = vmatpush1.bf16.msra.mxu0 %v2927
  %5004 = vmatprep.subr.bf16.mxu0 %v2924
  %5005 = vmatpush1.bf16.msra.mxu0 %v2923
  %5006 = vmatprep.subr.bf16.mxu0 %v2920
  %5007 = vmatpush1.bf16.msra.mxu0 %v2919
  %5008 = vmatprep.subr.bf16.mxu0 %v2980
  %5009 = vmatpush2.bf16.msra.mxu0 %v2979
  %5010 = vmatprep.subr.bf16.mxu0 %v2976
  %5011 = vmatpush2.bf16.msra.mxu0 %v2975
  %5012 = vmatprep.subr.bf16.mxu0 %v2972
  %5013 = vmatpush2.bf16.msra.mxu0 %v2971
  %5014 = vmatprep.subr.bf16.mxu0 %v2968
  %5015 = vmatpush2.bf16.msra.mxu0 %v2967
  %5016 = vmatprep.subr.bf16.mxu0 %v2964
  %5017 = vmatpush2.bf16.msra.mxu0 %v2963
  %5018 = vmatprep.subr.bf16.mxu0 %v2960
  %5019 = vmatpush2.bf16.msra.mxu0 %v2959
  %5020 = vmatprep.subr.bf16.mxu0 %v2956
  %5021 = vmatpush2.bf16.msra.mxu0 %v2955
  %5022 = vmatprep.subr.bf16.mxu0 %v2952
  %5023 = vmatpush2.bf16.msra.mxu0 %v2951
  %5024 = vmatprep.mubr.bf16.mxu0 %v100
  %5025 = vmatmul.mubr.bf16.gmra.mxu0 %v99
  %v5026 = vpop.f32.mrf.mxu0
  %v5027 = vadd.f32 %v4986, %v5026
  %v5028 = vpop.f32.mrf.mxu0
  %v5029 = vadd.f32 %v4988, %v5028
  %v5030 = vpop.f32.mrf.mxu0
  %v5031 = vpop.f32.mrf.mxu0
  %5032 = vdwg.mxu0
  %v5033 = vsub.f32 %v3920, %v5027
  %v5034 = vsub.f32 %v3922, %v5029
  %v5035 = vld [vmem:[%s3] sm:$0x3]
  %v5037 = vlaneseq
  %v5038 = vshrl.u32 %v5037, 7
  %v5039 = vsub.s32 0, %v5038
  %v5040 = vrot.slane %v5035, %v5039
  %v5041 = vlaneseq
  %v5042 = vshrl.u32 %v5041, 7
  %v5043 = vsub.s32 1, %v5042
  %v5044 = vrot.slane %v5035, %v5043
  %v5047 = vadd.f32 %v5033, %v5040
  %v5048 = vadd.f32 %v5034, %v5044
  %v5049 = vadd.f32 %v4658, %v4289
  %v5050 = vadd.f32 %v4660, %v4291
  %v5051 = vld [vmem:[%s4] sm:$0x3]
  %v5053 = vlaneseq
  %v5054 = vshrl.u32 %v5053, 7
  %v5055 = vsub.s32 0, %v5054
  %v5056 = vrot.slane %v5051, %v5055
  %v5057 = vlaneseq
  %v5058 = vshrl.u32 %v5057, 7
  %v5059 = vsub.s32 1, %v5058
  %v5060 = vrot.slane %v5051, %v5059
  %v5063 = vadd.f32 %v5049, %v5056
  %v5064 = vadd.f32 %v5050, %v5060
  %v5065 = vtanh.pop %v5047
  %v5066 = vtanh.pop %v5048
  %v5067 = vtanh.pop %v5063
  %v5068 = vtanh.pop %v5064
  %v5069 = vld [vmem:[%s5] sm:$0xff]
  %v5070 = vld [vmem:[%s5 + $0x8] sm:$0xff]
  %v5071 = vld [vmem:[%s5 + $0x10] sm:$0xff]
  %v5072 = vld [vmem:[%s5 + $0x18] sm:$0xff]
  %v5073 = vld [vmem:[%s5 + $0x20] sm:$0xff]
  %v5074 = vld [vmem:[%s5 + $0x28] sm:$0xff]
  %v5075 = vld [vmem:[%s5 + $0x30] sm:$0xff]
  %v5076 = vld [vmem:[%s5 + $0x38] sm:$0xff]
  %v5077 = vld [vmem:[%s5 + $0x40] sm:$0xff]
  %v5078 = vld [vmem:[%s5 + $0x48] sm:$0xff]
  %v5079 = vld [vmem:[%s5 + $0x50] sm:$0xff]
  %v5080 = vld [vmem:[%s5 + $0x58] sm:$0xff]
  %v5081 = vld [vmem:[%s5 + $0x60] sm:$0xff]
  %v5082 = vld [vmem:[%s5 + $0x68] sm:$0xff]
  %v5083 = vld [vmem:[%s5 + $0x70] sm:$0xff]
  %v5084 = vld [vmem:[%s5 + $0x78] sm:$0xff]
  %v5085 = vld [vmem:[%s5 + $0x80] sm:$0xff]
  %v5086 = vld [vmem:[%s5 + $0x88] sm:$0xff]
  %v5087 = vld [vmem:[%s5 + $0x90] sm:$0xff]
  %v5088 = vld [vmem:[%s5 + $0x98] sm:$0xff]
  %v5089 = vld [vmem:[%s5 + $0xa0] sm:$0xff]
  %v5090 = vld [vmem:[%s5 + $0xa8] sm:$0xff]
  %v5091 = vld [vmem:[%s5 + $0xb0] sm:$0xff]
  %v5092 = vld [vmem:[%s5 + $0xb8] sm:$0xff]
  %v5093 = vld [vmem:[%s5 + $0xc0] sm:$0xff]
  %v5094 = vld [vmem:[%s5 + $0xc8] sm:$0xff]
  %v5095 = vld [vmem:[%s5 + $0xd0] sm:$0xff]
  %v5096 = vld [vmem:[%s5 + $0xd8] sm:$0xff]
  %v5097 = vld [vmem:[%s5 + $0xe0] sm:$0xff]
  %v5098 = vld [vmem:[%s5 + $0xe8] sm:$0xff]
  %v5099 = vld [vmem:[%s5 + $0xf0] sm:$0xff]
  %v5100 = vld [vmem:[%s5 + $0xf8] sm:$0xff]
  %v5101 = vld [vmem:[%s6] sm:$0xff]
  %v5102 = vld [vmem:[%s6 + $0x8] sm:$0xff]
  %v5103 = vld [vmem:[%s6 + $0x10] sm:$0xff]
  %v5104 = vld [vmem:[%s6 + $0x18] sm:$0xff]
  %v5105 = vld [vmem:[%s6 + $0x20] sm:$0xff]
  %v5106 = vld [vmem:[%s6 + $0x28] sm:$0xff]
  %v5107 = vld [vmem:[%s6 + $0x30] sm:$0xff]
  %v5108 = vld [vmem:[%s6 + $0x38] sm:$0xff]
  %v5109 = vld [vmem:[%s6 + $0x40] sm:$0xff]
  %v5110 = vld [vmem:[%s6 + $0x48] sm:$0xff]
  %v5111 = vld [vmem:[%s6 + $0x50] sm:$0xff]
  %v5112 = vld [vmem:[%s6 + $0x58] sm:$0xff]
  %v5113 = vld [vmem:[%s6 + $0x60] sm:$0xff]
  %v5114 = vld [vmem:[%s6 + $0x68] sm:$0xff]
  %v5115 = vld [vmem:[%s6 + $0x70] sm:$0xff]
  %v5116 = vld [vmem:[%s6 + $0x78] sm:$0xff]
  %v5117 = vld [vmem:[%s6 + $0x80] sm:$0xff]
  %v5118 = vld [vmem:[%s6 + $0x88] sm:$0xff]
  %v5119 = vld [vmem:[%s6 + $0x90] sm:$0xff]
  %v5120 = vld [vmem:[%s6 + $0x98] sm:$0xff]
  %v5121 = vld [vmem:[%s6 + $0xa0] sm:$0xff]
  %v5122 = vld [vmem:[%s6 + $0xa8] sm:$0xff]
  %v5123 = vld [vmem:[%s6 + $0xb0] sm:$0xff]
  %v5124 = vld [vmem:[%s6 + $0xb8] sm:$0xff]
  %v5125 = vld [vmem:[%s6 + $0xc0] sm:$0xff]
  %v5126 = vld [vmem:[%s6 + $0xc8] sm:$0xff]
  %v5127 = vld [vmem:[%s6 + $0xd0] sm:$0xff]
  %v5128 = vld [vmem:[%s6 + $0xd8] sm:$0xff]
  %v5129 = vld [vmem:[%s6 + $0xe0] sm:$0xff]
  %v5130 = vld [vmem:[%s6 + $0xe8] sm:$0xff]
  %v5131 = vld [vmem:[%s6 + $0xf0] sm:$0xff]
  %v5132 = vld [vmem:[%s6 + $0xf8] sm:$0xff]
  %5133 = vmatprep.subr.mxu0 0.0
  %5134 = vmatpush1.msra.mxu0 %v5116
  %5135 = vmatprep.subr.mxu0 0.0
  %5136 = vmatpush1.msra.mxu0 %v5115
  %5137 = vmatprep.subr.mxu0 0.0
  %5138 = vmatpush1.msra.mxu0 %v5114
  %5139 = vmatprep.subr.mxu0 0.0
  %5140 = vmatpush1.msra.mxu0 %v5113
  %5141 = vmatprep.subr.mxu0 0.0
  %5142 = vmatpush1.msra.mxu0 %v5112
  %5143 = vmatprep.subr.mxu0 0.0
  %5144 = vmatpush1.msra.mxu0 %v5111
  %5145 = vmatprep.subr.mxu0 0.0
  %5146 = vmatpush1.msra.mxu0 %v5110
  %5147 = vmatprep.subr.mxu0 0.0
  %5148 = vmatpush1.msra.mxu0 %v5109
  %5149 = vmatprep.subr.mxu0 0.0
  %5150 = vmatpush1.msra.mxu0 %v5108
  %5151 = vmatprep.subr.mxu0 0.0
  %5152 = vmatpush1.msra.mxu0 %v5107
  %5153 = vmatprep.subr.mxu0 0.0
  %5154 = vmatpush1.msra.mxu0 %v5106
  %5155 = vmatprep.subr.mxu0 0.0
  %5156 = vmatpush1.msra.mxu0 %v5105
  %5157 = vmatprep.subr.mxu0 0.0
  %5158 = vmatpush1.msra.mxu0 %v5104
  %5159 = vmatprep.subr.mxu0 0.0
  %5160 = vmatpush1.msra.mxu0 %v5103
  %5161 = vmatprep.subr.mxu0 0.0
  %5162 = vmatpush1.msra.mxu0 %v5102
  %5163 = vmatprep.subr.mxu0 0.0
  %5164 = vmatpush1.msra.mxu0 %v5101
  %5165 = vmatprep.subr.mxu0 0.0
  %5166 = vmatpush2.msra.mxu0 %v5132
  %5167 = vmatprep.subr.mxu0 0.0
  %5168 = vmatpush2.msra.mxu0 %v5131
  %5169 = vmatprep.subr.mxu0 0.0
  %5170 = vmatpush2.msra.mxu0 %v5130
  %5171 = vmatprep.subr.mxu0 0.0
  %5172 = vmatpush2.msra.mxu0 %v5129
  %5173 = vmatprep.subr.mxu0 0.0
  %5174 = vmatpush2.msra.mxu0 %v5128
  %5175 = vmatprep.subr.mxu0 0.0
  %5176 = vmatpush2.msra.mxu0 %v5127
  %5177 = vmatprep.subr.mxu0 0.0
  %5178 = vmatpush2.msra.mxu0 %v5126
  %5179 = vmatprep.subr.mxu0 0.0
  %5180 = vmatpush2.msra.mxu0 %v5125
  %5181 = vmatprep.subr.mxu0 0.0
  %5182 = vmatpush2.msra.mxu0 %v5124
  %5183 = vmatprep.subr.mxu0 0.0
  %5184 = vmatpush2.msra.mxu0 %v5123
  %5185 = vmatprep.subr.mxu0 0.0
  %5186 = vmatpush2.msra.mxu0 %v5122
  %5187 = vmatprep.subr.mxu0 0.0
  %5188 = vmatpush2.msra.mxu0 %v5121
  %5189 = vmatprep.subr.mxu0 0.0
  %5190 = vmatpush2.msra.mxu0 %v5120
  %5191 = vmatprep.subr.mxu0 0.0
  %5192 = vmatpush2.msra.mxu0 %v5119
  %5193 = vmatprep.subr.mxu0 0.0
  %5194 = vmatpush2.msra.mxu0 %v5118
  %5195 = vmatprep.subr.mxu0 0.0
  %5196 = vmatpush2.msra.mxu0 %v5117
  %5197 = vmatprep.mubr.f32.mxu0 %v5068
  %5198 = vmatmul.mubr.f32.gmra.mxu0 %v5067
  %v5199 = vpop.f32.mrf.mxu0
  %v5200 = vadd.f32 0.0, %v5199
  %v5201 = vpop.f32.mrf.mxu0
  %5202 = vdwg.mxu0
  %5203 = vmatprep.subr.mxu0 0.0
  %5204 = vmatpush1.msra.mxu0 %v5084
  %5205 = vmatprep.subr.mxu0 0.0
  %5206 = vmatpush1.msra.mxu0 %v5083
  %5207 = vmatprep.subr.mxu0 0.0
  %5208 = vmatpush1.msra.mxu0 %v5082
  %5209 = vmatprep.subr.mxu0 0.0
  %5210 = vmatpush1.msra.mxu0 %v5081
  %5211 = vmatprep.subr.mxu0 0.0
  %5212 = vmatpush1.msra.mxu0 %v5080
  %5213 = vmatprep.subr.mxu0 0.0
  %5214 = vmatpush1.msra.mxu0 %v5079
  %5215 = vmatprep.subr.mxu0 0.0
  %5216 = vmatpush1.msra.mxu0 %v5078
  %5217 = vmatprep.subr.mxu0 0.0
  %5218 = vmatpush1.msra.mxu0 %v5077
  %5219 = vmatprep.subr.mxu0 0.0
  %5220 = vmatpush1.msra.mxu0 %v5076
  %5221 = vmatprep.subr.mxu0 0.0
  %5222 = vmatpush1.msra.mxu0 %v5075
  %5223 = vmatprep.subr.mxu0 0.0
  %5224 = vmatpush1.msra.mxu0 %v5074
  %5225 = vmatprep.subr.mxu0 0.0
  %5226 = vmatpush1.msra.mxu0 %v5073
  %5227 = vmatprep.subr.mxu0 0.0
  %5228 = vmatpush1.msra.mxu0 %v5072
  %5229 = vmatprep.subr.mxu0 0.0
  %5230 = vmatpush1.msra.mxu0 %v5071
  %5231 = vmatprep.subr.mxu0 0.0
  %5232 = vmatpush1.msra.mxu0 %v5070
  %5233 = vmatprep.subr.mxu0 0.0
  %5234 = vmatpush1.msra.mxu0 %v5069
  %5235 = vmatprep.subr.mxu0 0.0
  %5236 = vmatpush2.msra.mxu0 %v5100
  %5237 = vmatprep.subr.mxu0 0.0
  %5238 = vmatpush2.msra.mxu0 %v5099
  %5239 = vmatprep.subr.mxu0 0.0
  %5240 = vmatpush2.msra.mxu0 %v5098
  %5241 = vmatprep.subr.mxu0 0.0
  %5242 = vmatpush2.msra.mxu0 %v5097
  %5243 = vmatprep.subr.mxu0 0.0
  %5244 = vmatpush2.msra.mxu0 %v5096
  %5245 = vmatprep.subr.mxu0 0.0
  %5246 = vmatpush2.msra.mxu0 %v5095
  %5247 = vmatprep.subr.mxu0 0.0
  %5248 = vmatpush2.msra.mxu0 %v5094
  %5249 = vmatprep.subr.mxu0 0.0
  %5250 = vmatpush2.msra.mxu0 %v5093
  %5251 = vmatprep.subr.mxu0 0.0
  %5252 = vmatpush2.msra.mxu0 %v5092
  %5253 = vmatprep.subr.mxu0 0.0
  %5254 = vmatpush2.msra.mxu0 %v5091
  %5255 = vmatprep.subr.mxu0 0.0
  %5256 = vmatpush2.msra.mxu0 %v5090
  %5257 = vmatprep.subr.mxu0 0.0
  %5258 = vmatpush2.msra.mxu0 %v5089
  %5259 = vmatprep.subr.mxu0 0.0
  %5260 = vmatpush2.msra.mxu0 %v5088
  %5261 = vmatprep.subr.mxu0 0.0
  %5262 = vmatpush2.msra.mxu0 %v5087
  %5263 = vmatprep.subr.mxu0 0.0
  %5264 = vmatpush2.msra.mxu0 %v5086
  %5265 = vmatprep.subr.mxu0 0.0
  %5266 = vmatpush2.msra.mxu0 %v5085
  %5267 = vmatprep.mubr.f32.mxu0 %v5066
  %5268 = vmatmul.mubr.f32.gmra.mxu0 %v5065
  %v5269 = vpop.f32.mrf.mxu0
  %v5270 = vadd.f32 %v5200, %v5269
  %v5271 = vpop.f32.mrf.mxu0
  %5272 = vdwg.mxu0
  %v5273 = vld [vmem:[%s7] sm:$0x1]
  %v5275 = vlaneseq
  %v5276 = vshrl.u32 %v5275, 7
  %v5277 = vsub.s32 0, %v5276
  %v5278 = vrot.slane %v5273, %v5277
  %v5280 = vadd.f32 %v5270, %v5278
  %vm5281 = vcmask 15360
  %5282 = vst.msk [vmem:[%s8] sm:$0xff] %vm5281, %v5280
  // Predicated region
  $region34: #{complex_linear_model.1} parent=0 // pred_check
    _
  $region35: #{complex_linear_model.1} parent=0 // pred_check_branch
    %5284 = sbr.rel (0) target = $region37
  $region36: #{complex_linear_model.1} parent=0 // pred_region
    _
  $region37: #{complex_linear_model.1} parent=0 // pred_fallthru
    _
  // Predicated region
  $region38: #{complex_linear_model.1} parent=0 // pred_check
    _
  $region39: #{complex_linear_model.1} parent=0 // pred_check_branch
    %5286 = sbr.rel (0) target = $region41
  $region40: #{complex_linear_model.1} parent=0 // pred_region
    _
  $region41: #{complex_linear_model.1} parent=0 // pred_fallthru
    _

</llo_original>
